<compile_context>
chip_gen: v7x
topology: tpu7x:2x2x1
jax: 0.10.0
libtpu: 0.0.40
codegen_flags: <defaults>
</compile_context>

<pallas_src>
import math
import jax
import jax.numpy as jnp
from jax import lax
from jax.experimental import pallas as pl
from jax.experimental.pallas import tpu as pltpu

# ---- synthetic "config" (small shapes) ----
HIDDEN = 32          # config.hidden_size
NUM_HEADS = 4        # config.transformer['num_heads']
HEAD_DIM = HIDDEN // NUM_HEADS
MLP_DIM = 64         # config.transformer['mlp_dim']
NUM_LAYERS = 2       # config.transformer['num_layers']
LN_EPS = 1e-6

PARAM_ORDER = ["ln1g", "ln1b",
               "wq", "bq", "wk", "bk", "wv", "bv", "wo", "bo",
               "ln2g", "ln2b",
               "w1", "b1", "w2", "b2",
               "lnfg", "lnfb"]

# order of the packed (kernel-ready) parameters
PACKED_ORDER = ["ln1g", "ln1b", "wqkv", "bqkv", "wo", "bo",
                "ln2g", "ln2b", "w1", "b1", "w2", "b2", "lnfg", "lnfb"]

_SQRT_2_OVER_PI = math.sqrt(2.0 / math.pi)


# ---------------- in-kernel math helpers ----------------
def _gelu_tanh(x):
    # tanh-approx GELU: single EUP tanh instead of a long VALU erf polynomial.
    return 0.5 * x * (1.0 + jnp.tanh(_SQRT_2_OVER_PI * (x + 0.044715 * x * x * x)))


def _layernorm(x, g, b):
    mu = jnp.mean(x, axis=-1, keepdims=True)
    xc = x - mu
    var = jnp.mean(xc * xc, axis=-1, keepdims=True)   # biased var, like torch LayerNorm
    return xc * lax.rsqrt(var + LN_EPS) * g + b


# ---------------- the Pallas kernel (whole batch in one invocation) ----------------
def make_encoder_kernel(B, S):
    H, NH, D, L = HIDDEN, NUM_HEADS, HEAD_DIM, NUM_LAYERS

    def kernel(x_ref,
               ln1g_ref, ln1b_ref,
               wqkv_ref, bqkv_ref, wo_ref, bo_ref,
               ln2g_ref, ln2b_ref,
               w1_ref, b1_ref, w2_ref, b2_ref,
               lnfg_ref, lnfb_ref,
               out_ref):
        x = x_ref[...].astype(jnp.float32)               # (B*S, H) canonical 2-D activation

        for l in range(L):                               # unrolled -> static weight indexing
            # ---------- attention sub-block ----------
            h = x
            xn = _layernorm(x, ln1g_ref[l], ln1b_ref[l])

            # one fused QKV matmul: (B*S, H) @ (H, 3H) -> (B*S, 96); scale folded into Wq/bq
            qkv = jnp.dot(xn.astype(jnp.bfloat16), wqkv_ref[l],
                          preferred_element_type=jnp.float32) + bqkv_ref[l]
            qkvb = qkv.astype(jnp.bfloat16)              # single bf16 cast over all 96 lanes

            def gather(off):
                # columns [off : off+H] hold one of q/k/v in the original head-major layout;
                # build a (B*NH, S, D) array with a single LEADING batch axis for the einsums.
                return jnp.stack(
                    [qkvb[b * S:(b + 1) * S, off + hh * D: off + (hh + 1) * D]
                     for b in range(B) for hh in range(NH)],
                    axis=0)

            q = gather(0)            # (B*NH, S, D), scale already applied
            k = gather(H)
            v = gather(2 * H)

            s = jnp.einsum("nqd,nkd->nqk", q, k,
                           preferred_element_type=jnp.float32)          # (B*NH, S, S)
            m = jnp.max(s, axis=-1, keepdims=True)
            e = jnp.exp(s - m)
            p = e * pl.reciprocal(jnp.sum(e, axis=-1, keepdims=True), approx=True)
            ctx = jnp.einsum("nqk,nkd->nqd", p.astype(jnp.bfloat16), v,
                             preferred_element_type=jnp.float32)        # (B*NH, S, D)

            # merge heads back to a lane-dense (B*S, H) context
            # (same column layout as torch's context_layer) -> ONE K=32 output projection.
            ctx2d = jnp.concatenate(
                [jnp.concatenate([ctx[b * NH + hh] for hh in range(NH)], axis=-1)
                 for b in range(B)],
                axis=0)                                                  # (B*S, H)

            x = jnp.dot(ctx2d.astype(jnp.bfloat16), wo_ref[l],
                        preferred_element_type=jnp.float32) + bo_ref[l] + h
            # attn/proj dropout = identity (inference)

            # ---------- MLP sub-block ----------
            h = x
            xn = _layernorm(x, ln2g_ref[l], ln2b_ref[l])
            y = jnp.dot(xn.astype(jnp.bfloat16), w1_ref[l],
                        preferred_element_type=jnp.float32) + b1_ref[l]
            y = _gelu_tanh(y)
            y = jnp.dot(y.astype(jnp.bfloat16), w2_ref[l],
                        preferred_element_type=jnp.float32) + b2_ref[l]
            x = y + h                                    # dropout = identity

        out_ref[...] = _layernorm(x, lnfg_ref[0], lnfb_ref[0]).astype(out_ref.dtype)

    return kernel


# ---------------- parameter packing (one-time constant transform, outside kernel) ----------------
def pack_params(p):
    scale = 1.0 / math.sqrt(HEAD_DIM)
    # fold 1/sqrt(D) into Wq / bq; pack [q | k | v] along the lane axis -> (L, H, 3H)
    wqkv = jnp.concatenate([p["wq"] * scale, p["wk"], p["wv"]], axis=-1).astype(jnp.bfloat16)
    bqkv = jnp.concatenate([p["bq"] * scale, p["bk"], p["bv"]], axis=-1).astype(jnp.float32)

    return {
        "ln1g": p["ln1g"], "ln1b": p["ln1b"],
        "wqkv": wqkv, "bqkv": bqkv,
        "wo": p["wo"].astype(jnp.bfloat16), "bo": p["bo"],
        "ln2g": p["ln2g"], "ln2b": p["ln2b"],
        "w1": p["w1"].astype(jnp.bfloat16), "b1": p["b1"],
        "w2": p["w2"].astype(jnp.bfloat16), "b2": p["b2"],
        "lnfg": p["lnfg"], "lnfb": p["lnfb"],
    }


# ---------------- wrapper ----------------
def encoder_forward(hidden_states, params):
    """Returns (encoded, attn_weights) like Encoder.forward with vis=False."""
    B, S, H = hidden_states.shape
    packed = pack_params(params)
    flat = [packed[name] for name in PACKED_ORDER]

    x2 = hidden_states.reshape(B * S, H)                 # flatten once in the wrapper

    def full_spec(shape):                                # full-array, kernel-resident block
        nd = len(shape)
        return pl.BlockSpec(shape, lambda i, nd=nd: (0,) * nd)

    in_specs = [full_spec(x2.shape)] + [full_spec(a.shape) for a in flat]

    out = pl.pallas_call(
        make_encoder_kernel(B, S),
        out_shape=jax.ShapeDtypeStruct((B * S, H), hidden_states.dtype),
        grid=(1,),                                       # whole batch in one invocation
        in_specs=in_specs,
        out_specs=full_spec((B * S, H)),
        compiler_params=pltpu.CompilerParams(dimension_semantics=("arbitrary",)),
    )(x2, *flat)

    encoded = out.reshape(B, S, H)
    attn_weights = []   # vis=False
    return encoded, attn_weights


# ---------------- deterministic synthetic parameters ----------------
def init_params(key):
    shapes = {
        "ln1g": (NUM_LAYERS, HIDDEN), "ln1b": (NUM_LAYERS, HIDDEN),
        "wq": (NUM_LAYERS, HIDDEN, HIDDEN), "bq": (NUM_LAYERS, HIDDEN),
        "wk": (NUM_LAYERS, HIDDEN, HIDDEN), "bk": (NUM_LAYERS, HIDDEN),
        "wv": (NUM_LAYERS, HIDDEN, HIDDEN), "bv": (NUM_LAYERS, HIDDEN),
        "wo": (NUM_LAYERS, HIDDEN, HIDDEN), "bo": (NUM_LAYERS, HIDDEN),
        "ln2g": (NUM_LAYERS, HIDDEN), "ln2b": (NUM_LAYERS, HIDDEN),
        "w1": (NUM_LAYERS, HIDDEN, MLP_DIM), "b1": (NUM_LAYERS, MLP_DIM),
        "w2": (NUM_LAYERS, MLP_DIM, HIDDEN), "b2": (NUM_LAYERS, HIDDEN),
        "lnfg": (1, HIDDEN), "lnfb": (1, HIDDEN),
    }
    params = {}
    keys = jax.random.split(key, len(PARAM_ORDER))
    for k, name in zip(keys, PARAM_ORDER):
        shp = shapes[name]
        if name.startswith("ln") and name.endswith("g"):
            params[name] = jnp.ones(shp, jnp.float32)            # LayerNorm weight
        elif name.startswith("ln") and name.endswith("b"):
            params[name] = jnp.zeros(shp, jnp.float32)           # LayerNorm bias
        elif name.startswith("w"):
            params[name] = 0.05 * jax.random.normal(k, shp, jnp.float32)
        else:  # linear biases
            params[name] = 0.01 * jax.random.normal(k, shp, jnp.float32)
    return params


# ---------------- pure-JAX reference (for sanity check) ----------------
def reference_forward(x, p):
    def ln(x, g, b):
        mu = x.mean(-1, keepdims=True)
        var = ((x - mu) ** 2).mean(-1, keepdims=True)
        return (x - mu) / jnp.sqrt(var + LN_EPS) * g + b

    B, S, H = x.shape
    for l in range(NUM_LAYERS):
        h = x
        xn = ln(x, p["ln1g"][l], p["ln1b"][l])
        q = xn @ p["wq"][l] + p["bq"][l]
        k = xn @ p["wk"][l] + p["bk"][l]
        v = xn @ p["wv"][l] + p["bv"][l]

        def split(t):
            return t.reshape(B, S, NUM_HEADS, HEAD_DIM).transpose(0, 2, 1, 3)

        qh, kh, vh = split(q), split(k), split(v)
        s = jnp.einsum("bhqd,bhkd->bhqk", qh, kh) / math.sqrt(HEAD_DIM)
        pr = jax.nn.softmax(s, axis=-1)
        c = jnp.einsum("bhqk,bhkd->bhqd", pr, vh)
        c = c.transpose(0, 2, 1, 3).reshape(B, S, H)
        x = c @ p["wo"][l] + p["bo"][l] + h

        h = x
        xn = ln(x, p["ln2g"][l], p["ln2b"][l])
        y = jax.nn.gelu(xn @ p["w1"][l] + p["b1"][l], approximate=False)
        x = y @ p["w2"][l] + p["b2"][l] + h
    return ln(x, p["lnfg"][0], p["lnfb"][0])


if __name__ == "__main__":
    key = jax.random.PRNGKey(0)
    kx, kp = jax.random.split(key)
    B, S = 2, 8
    x = jax.random.normal(kx, (B, S, HIDDEN), jnp.float32)
    params = init_params(kp)

    encoded, attn_weights = encoder_forward(x, params)
    encoded = jax.block_until_ready(encoded)

    ref = reference_forward(x, params)
    err = float(jnp.max(jnp.abs(encoded - ref)))
    assert encoded.shape == (B, S, HIDDEN)
    assert attn_weights == []
    # bf16 matmul operands + tanh-GELU + approx reciprocal => small, bounded deviation
    assert err < 2e-2, f"max abs error vs reference: {err}"
    print("KERNEL_OK")
</pallas_src>

<mosaic_0001>
module attributes {stable_mosaic.version = 11 : i64} {
  func.func @kernel(%arg0: i32, %arg1: memref<16x32xf32, #tpu.memory_space<vmem>>, %arg2: memref<2x32xf32, #tpu.memory_space<vmem>>, %arg3: memref<2x32xf32, #tpu.memory_space<vmem>>, %arg4: memref<2x32x96xbf16, #tpu.memory_space<vmem>>, %arg5: memref<2x96xf32, #tpu.memory_space<vmem>>, %arg6: memref<2x32x32xbf16, #tpu.memory_space<vmem>>, %arg7: memref<2x32xf32, #tpu.memory_space<vmem>>, %arg8: memref<2x32xf32, #tpu.memory_space<vmem>>, %arg9: memref<2x32xf32, #tpu.memory_space<vmem>>, %arg10: memref<2x32x64xbf16, #tpu.memory_space<vmem>>, %arg11: memref<2x64xf32, #tpu.memory_space<vmem>>, %arg12: memref<2x64x32xbf16, #tpu.memory_space<vmem>>, %arg13: memref<2x32xf32, #tpu.memory_space<vmem>>, %arg14: memref<1x32xf32, #tpu.memory_space<vmem>>, %arg15: memref<1x32xf32, #tpu.memory_space<vmem>>, %arg16: memref<16x32xf32, #tpu.memory_space<vmem>>) attributes {dimension_semantics = [#tpu.dimension_semantics<arbitrary>], iteration_bounds = array<i64: 1>, scalar_prefetch = 0 : i64, scratch_operands = 0 : i64, tpu.core_type = #tpu.core_type<tc>, window_params = [{pipeline_mode = #tpu.pipeline_mode<synchronous>, transform_indices = @transform_0, window_bounds = array<i64: 16, 32>}, {pipeline_mode = #tpu.pipeline_mode<synchronous>, transform_indices = @transform_1, window_bounds = array<i64: 2, 32>}, {pipeline_mode = #tpu.pipeline_mode<synchronous>, transform_indices = @transform_2, window_bounds = array<i64: 2, 32>}, {pipeline_mode = #tpu.pipeline_mode<synchronous>, transform_indices = @transform_3, window_bounds = array<i64: 2, 32, 96>}, {pipeline_mode = #tpu.pipeline_mode<synchronous>, transform_indices = @transform_4, window_bounds = array<i64: 2, 96>}, {pipeline_mode = #tpu.pipeline_mode<synchronous>, transform_indices = @transform_5, window_bounds = array<i64: 2, 32, 32>}, {pipeline_mode = #tpu.pipeline_mode<synchronous>, transform_indices = @transform_6, window_bounds = array<i64: 2, 32>}, {pipeline_mode = #tpu.pipeline_mode<synchronous>, transform_indices = @transform_7, window_bounds = array<i64: 2, 32>}, {pipeline_mode = #tpu.pipeline_mode<synchronous>, transform_indices = @transform_8, window_bounds = array<i64: 2, 32>}, {pipeline_mode = #tpu.pipeline_mode<synchronous>, transform_indices = @transform_9, window_bounds = array<i64: 2, 32, 64>}, {pipeline_mode = #tpu.pipeline_mode<synchronous>, transform_indices = @transform_10, window_bounds = array<i64: 2, 64>}, {pipeline_mode = #tpu.pipeline_mode<synchronous>, transform_indices = @transform_11, window_bounds = array<i64: 2, 64, 32>}, {pipeline_mode = #tpu.pipeline_mode<synchronous>, transform_indices = @transform_12, window_bounds = array<i64: 2, 32>}, {pipeline_mode = #tpu.pipeline_mode<synchronous>, transform_indices = @transform_13, window_bounds = array<i64: 1, 32>}, {pipeline_mode = #tpu.pipeline_mode<synchronous>, transform_indices = @transform_14, window_bounds = array<i64: 1, 32>}, {pipeline_mode = #tpu.pipeline_mode<synchronous>, transform_indices = @transform_15, window_bounds = array<i64: 16, 32>}]} {
    %c0 = arith.constant 0 : index
    %c0_0 = arith.constant 0 : index
    %0 = vector.load %arg1[%c0, %c0_0] : memref<16x32xf32, #tpu.memory_space<vmem>>, vector<16x32xf32>
    %c0_1 = arith.constant 0 : index
    %c0_2 = arith.constant 0 : index
    %1 = vector.load %arg2[%c0_1, %c0_2] : memref<2x32xf32, #tpu.memory_space<vmem>>, vector<1x32xf32>
    %2 = vector.shape_cast %1 : vector<1x32xf32> to vector<32xf32>
    %c0_3 = arith.constant 0 : index
    %c0_4 = arith.constant 0 : index
    %3 = vector.load %arg3[%c0_3, %c0_4] : memref<2x32xf32, #tpu.memory_space<vmem>>, vector<1x32xf32>
    %4 = vector.shape_cast %3 : vector<1x32xf32> to vector<32xf32>
    %cst = arith.constant dense<0.000000e+00> : vector<16xf32>
    %5 = vector.multi_reduction <add>, %0, %cst [1] : vector<16x32xf32> to vector<16xf32>
    %6 = vector.shape_cast %5 : vector<16xf32> to vector<16x1xf32>
    %cst_5 = arith.constant 3.200000e+01 : f32
    %7 = vector.broadcast %cst_5 : f32 to vector<16x1xf32>
    %8 = arith.divf %6, %7 : vector<16x1xf32>
    %9 = vector.broadcast %8 : vector<16x1xf32> to vector<16x32xf32>
    %10 = arith.subf %0, %9 : vector<16x32xf32>
    %11 = arith.mulf %10, %10 : vector<16x32xf32>
    %cst_6 = arith.constant dense<0.000000e+00> : vector<16xf32>
    %12 = vector.multi_reduction <add>, %11, %cst_6 [1] : vector<16x32xf32> to vector<16xf32>
    %13 = vector.shape_cast %12 : vector<16xf32> to vector<16x1xf32>
    %cst_7 = arith.constant 3.200000e+01 : f32
    %14 = vector.broadcast %cst_7 : f32 to vector<16x1xf32>
    %15 = arith.divf %13, %14 : vector<16x1xf32>
    %cst_8 = arith.constant 9.99999997E-7 : f32
    %16 = vector.broadcast %cst_8 : f32 to vector<16x1xf32>
    %17 = arith.addf %15, %16 : vector<16x1xf32>
    %18 = math.rsqrt %17 : vector<16x1xf32>
    %19 = vector.broadcast %18 : vector<16x1xf32> to vector<16x32xf32>
    %20 = arith.mulf %10, %19 : vector<16x32xf32>
    %21 = vector.shape_cast %2 : vector<32xf32> to vector<1x32xf32>
    %22 = vector.broadcast %21 : vector<1x32xf32> to vector<16x32xf32>
    %23 = arith.mulf %20, %22 : vector<16x32xf32>
    %24 = vector.shape_cast %4 : vector<32xf32> to vector<1x32xf32>
    %25 = vector.broadcast %24 : vector<1x32xf32> to vector<16x32xf32>
    %26 = arith.addf %23, %25 : vector<16x32xf32>
    %27 = arith.truncf %26 : vector<16x32xf32> to vector<16x32xbf16>
    %c0_9 = arith.constant 0 : index
    %c0_10 = arith.constant 0 : index
    %c0_11 = arith.constant 0 : index
    %28 = vector.load %arg4[%c0_9, %c0_10, %c0_11] : memref<2x32x96xbf16, #tpu.memory_space<vmem>>, vector<1x32x96xbf16>
    %29 = vector.shape_cast %28 : vector<1x32x96xbf16> to vector<32x96xbf16>
    %cst_12 = arith.constant dense<0.000000e+00> : vector<16x96xf32>
    %30 = tpu.matmul %27, %29, %cst_12 {dimension_numbers = #tpu.dot_dimension_numbers<[1], [0], [0], [1], [0, 0, 1, 1], [], []>} : vector<16x32xbf16>, vector<32x96xbf16>, vector<16x96xf32> -> vector<16x96xf32>
    %c0_13 = arith.constant 0 : index
    %c0_14 = arith.constant 0 : index
    %31 = vector.load %arg5[%c0_13, %c0_14] : memref<2x96xf32, #tpu.memory_space<vmem>>, vector<1x96xf32>
    %32 = vector.shape_cast %31 : vector<1x96xf32> to vector<96xf32>
    %33 = vector.shape_cast %32 : vector<96xf32> to vector<1x96xf32>
    %34 = vector.broadcast %33 : vector<1x96xf32> to vector<16x96xf32>
    %35 = arith.addf %30, %34 : vector<16x96xf32>
    %36 = arith.truncf %35 : vector<16x96xf32> to vector<16x96xbf16>
    %37 = vector.extract_strided_slice %36 {offsets = [0, 0], sizes = [8, 8], strides = [1, 1]} : vector<16x96xbf16> to vector<8x8xbf16>
    %38 = vector.extract_strided_slice %36 {offsets = [0, 8], sizes = [8, 8], strides = [1, 1]} : vector<16x96xbf16> to vector<8x8xbf16>
    %39 = vector.extract_strided_slice %36 {offsets = [0, 16], sizes = [8, 8], strides = [1, 1]} : vector<16x96xbf16> to vector<8x8xbf16>
    %40 = vector.extract_strided_slice %36 {offsets = [0, 24], sizes = [8, 8], strides = [1, 1]} : vector<16x96xbf16> to vector<8x8xbf16>
    %41 = vector.extract_strided_slice %36 {offsets = [8, 0], sizes = [8, 8], strides = [1, 1]} : vector<16x96xbf16> to vector<8x8xbf16>
    %42 = vector.extract_strided_slice %36 {offsets = [8, 8], sizes = [8, 8], strides = [1, 1]} : vector<16x96xbf16> to vector<8x8xbf16>
    %43 = vector.extract_strided_slice %36 {offsets = [8, 16], sizes = [8, 8], strides = [1, 1]} : vector<16x96xbf16> to vector<8x8xbf16>
    %44 = vector.extract_strided_slice %36 {offsets = [8, 24], sizes = [8, 8], strides = [1, 1]} : vector<16x96xbf16> to vector<8x8xbf16>
    %45 = vector.shape_cast %37 : vector<8x8xbf16> to vector<1x8x8xbf16>
    %46 = vector.shape_cast %38 : vector<8x8xbf16> to vector<1x8x8xbf16>
    %47 = vector.shape_cast %39 : vector<8x8xbf16> to vector<1x8x8xbf16>
    %48 = vector.shape_cast %40 : vector<8x8xbf16> to vector<1x8x8xbf16>
    %49 = vector.shape_cast %41 : vector<8x8xbf16> to vector<1x8x8xbf16>
    %50 = vector.shape_cast %42 : vector<8x8xbf16> to vector<1x8x8xbf16>
    %51 = vector.shape_cast %43 : vector<8x8xbf16> to vector<1x8x8xbf16>
    %52 = vector.shape_cast %44 : vector<8x8xbf16> to vector<1x8x8xbf16>
    %53 = tpu.concatenate %45, %46, %47, %48, %49, %50, %51, %52 in 0 : vector<1x8x8xbf16>, vector<1x8x8xbf16>, vector<1x8x8xbf16>, vector<1x8x8xbf16>, vector<1x8x8xbf16>, vector<1x8x8xbf16>, vector<1x8x8xbf16>, vector<1x8x8xbf16> -> vector<8x8x8xbf16>
    %54 = vector.extract_strided_slice %36 {offsets = [0, 32], sizes = [8, 8], strides = [1, 1]} : vector<16x96xbf16> to vector<8x8xbf16>
    %55 = vector.extract_strided_slice %36 {offsets = [0, 40], sizes = [8, 8], strides = [1, 1]} : vector<16x96xbf16> to vector<8x8xbf16>
    %56 = vector.extract_strided_slice %36 {offsets = [0, 48], sizes = [8, 8], strides = [1, 1]} : vector<16x96xbf16> to vector<8x8xbf16>
    %57 = vector.extract_strided_slice %36 {offsets = [0, 56], sizes = [8, 8], strides = [1, 1]} : vector<16x96xbf16> to vector<8x8xbf16>
    %58 = vector.extract_strided_slice %36 {offsets = [8, 32], sizes = [8, 8], strides = [1, 1]} : vector<16x96xbf16> to vector<8x8xbf16>
    %59 = vector.extract_strided_slice %36 {offsets = [8, 40], sizes = [8, 8], strides = [1, 1]} : vector<16x96xbf16> to vector<8x8xbf16>
    %60 = vector.extract_strided_slice %36 {offsets = [8, 48], sizes = [8, 8], strides = [1, 1]} : vector<16x96xbf16> to vector<8x8xbf16>
    %61 = vector.extract_strided_slice %36 {offsets = [8, 56], sizes = [8, 8], strides = [1, 1]} : vector<16x96xbf16> to vector<8x8xbf16>
    %62 = vector.shape_cast %54 : vector<8x8xbf16> to vector<1x8x8xbf16>
    %63 = vector.shape_cast %55 : vector<8x8xbf16> to vector<1x8x8xbf16>
    %64 = vector.shape_cast %56 : vector<8x8xbf16> to vector<1x8x8xbf16>
    %65 = vector.shape_cast %57 : vector<8x8xbf16> to vector<1x8x8xbf16>
    %66 = vector.shape_cast %58 : vector<8x8xbf16> to vector<1x8x8xbf16>
    %67 = vector.shape_cast %59 : vector<8x8xbf16> to vector<1x8x8xbf16>
    %68 = vector.shape_cast %60 : vector<8x8xbf16> to vector<1x8x8xbf16>
    %69 = vector.shape_cast %61 : vector<8x8xbf16> to vector<1x8x8xbf16>
    %70 = tpu.concatenate %62, %63, %64, %65, %66, %67, %68, %69 in 0 : vector<1x8x8xbf16>, vector<1x8x8xbf16>, vector<1x8x8xbf16>, vector<1x8x8xbf16>, vector<1x8x8xbf16>, vector<1x8x8xbf16>, vector<1x8x8xbf16>, vector<1x8x8xbf16> -> vector<8x8x8xbf16>
    %71 = vector.extract_strided_slice %36 {offsets = [0, 64], sizes = [8, 8], strides = [1, 1]} : vector<16x96xbf16> to vector<8x8xbf16>
    %72 = vector.extract_strided_slice %36 {offsets = [0, 72], sizes = [8, 8], strides = [1, 1]} : vector<16x96xbf16> to vector<8x8xbf16>
    %73 = vector.extract_strided_slice %36 {offsets = [0, 80], sizes = [8, 8], strides = [1, 1]} : vector<16x96xbf16> to vector<8x8xbf16>
    %74 = vector.extract_strided_slice %36 {offsets = [0, 88], sizes = [8, 8], strides = [1, 1]} : vector<16x96xbf16> to vector<8x8xbf16>
    %75 = vector.extract_strided_slice %36 {offsets = [8, 64], sizes = [8, 8], strides = [1, 1]} : vector<16x96xbf16> to vector<8x8xbf16>
    %76 = vector.extract_strided_slice %36 {offsets = [8, 72], sizes = [8, 8], strides = [1, 1]} : vector<16x96xbf16> to vector<8x8xbf16>
    %77 = vector.extract_strided_slice %36 {offsets = [8, 80], sizes = [8, 8], strides = [1, 1]} : vector<16x96xbf16> to vector<8x8xbf16>
    %78 = vector.extract_strided_slice %36 {offsets = [8, 88], sizes = [8, 8], strides = [1, 1]} : vector<16x96xbf16> to vector<8x8xbf16>
    %79 = vector.shape_cast %71 : vector<8x8xbf16> to vector<1x8x8xbf16>
    %80 = vector.shape_cast %72 : vector<8x8xbf16> to vector<1x8x8xbf16>
    %81 = vector.shape_cast %73 : vector<8x8xbf16> to vector<1x8x8xbf16>
    %82 = vector.shape_cast %74 : vector<8x8xbf16> to vector<1x8x8xbf16>
    %83 = vector.shape_cast %75 : vector<8x8xbf16> to vector<1x8x8xbf16>
    %84 = vector.shape_cast %76 : vector<8x8xbf16> to vector<1x8x8xbf16>
    %85 = vector.shape_cast %77 : vector<8x8xbf16> to vector<1x8x8xbf16>
    %86 = vector.shape_cast %78 : vector<8x8xbf16> to vector<1x8x8xbf16>
    %87 = tpu.concatenate %79, %80, %81, %82, %83, %84, %85, %86 in 0 : vector<1x8x8xbf16>, vector<1x8x8xbf16>, vector<1x8x8xbf16>, vector<1x8x8xbf16>, vector<1x8x8xbf16>, vector<1x8x8xbf16>, vector<1x8x8xbf16>, vector<1x8x8xbf16> -> vector<8x8x8xbf16>
    "tpu.trace_start"() <{level = 10 : i32, message = "nqd,nkd->nqk"}> : () -> ()
    %cst_15 = arith.constant dense<0.000000e+00> : vector<8x8x8xf32>
    %88 = tpu.matmul %53, %70, %cst_15 {dimension_numbers = #tpu.dot_dimension_numbers<[2], [2], [1], [1], [0, 0, 0, 1, 1, 1], [0], [0]>} : vector<8x8x8xbf16>, vector<8x8x8xbf16>, vector<8x8x8xf32> -> vector<8x8x8xf32>
    "tpu.trace_stop"() : () -> ()
    %cst_16 = arith.constant dense<0xFF800000> : vector<8x8xf32>
    %89 = vector.multi_reduction <maximumf>, %88, %cst_16 [2] : vector<8x8x8xf32> to vector<8x8xf32>
    %90 = vector.shape_cast %89 : vector<8x8xf32> to vector<8x8x1xf32>
    %91 = vector.broadcast %90 : vector<8x8x1xf32> to vector<8x8x8xf32>
    %92 = arith.subf %88, %91 : vector<8x8x8xf32>
    %93 = math.exp %92 : vector<8x8x8xf32>
    %cst_17 = arith.constant dense<0.000000e+00> : vector<8x8xf32>
    %94 = vector.multi_reduction <add>, %93, %cst_17 [2] : vector<8x8x8xf32> to vector<8x8xf32>
    %95 = vector.shape_cast %94 : vector<8x8xf32> to vector<8x8x1xf32>
    %96 = tpu.reciprocal %95 {approx = true} : vector<8x8x1xf32> -> vector<8x8x1xf32>
    %97 = vector.broadcast %96 : vector<8x8x1xf32> to vector<8x8x8xf32>
    %98 = arith.mulf %93, %97 : vector<8x8x8xf32>
    %99 = arith.truncf %98 : vector<8x8x8xf32> to vector<8x8x8xbf16>
    "tpu.trace_start"() <{level = 10 : i32, message = "nqk,nkd->nqd"}> : () -> ()
    %cst_18 = arith.constant dense<0.000000e+00> : vector<8x8x8xf32>
    %100 = tpu.matmul %99, %87, %cst_18 {dimension_numbers = #tpu.dot_dimension_numbers<[2], [1], [1], [2], [0, 0, 0, 1, 1, 2], [0], [0]>} : vector<8x8x8xbf16>, vector<8x8x8xbf16>, vector<8x8x8xf32> -> vector<8x8x8xf32>
    "tpu.trace_stop"() : () -> ()
    %101 = vector.extract_strided_slice %100 {offsets = [0, 0, 0], sizes = [1, 8, 8], strides = [1, 1, 1]} : vector<8x8x8xf32> to vector<1x8x8xf32>
    %102 = vector.shape_cast %101 : vector<1x8x8xf32> to vector<8x8xf32>
    %103 = vector.extract_strided_slice %100 {offsets = [1, 0, 0], sizes = [1, 8, 8], strides = [1, 1, 1]} : vector<8x8x8xf32> to vector<1x8x8xf32>
    %104 = vector.shape_cast %103 : vector<1x8x8xf32> to vector<8x8xf32>
    %105 = vector.extract_strided_slice %100 {offsets = [2, 0, 0], sizes = [1, 8, 8], strides = [1, 1, 1]} : vector<8x8x8xf32> to vector<1x8x8xf32>
    %106 = vector.shape_cast %105 : vector<1x8x8xf32> to vector<8x8xf32>
    %107 = vector.extract_strided_slice %100 {offsets = [3, 0, 0], sizes = [1, 8, 8], strides = [1, 1, 1]} : vector<8x8x8xf32> to vector<1x8x8xf32>
    %108 = vector.shape_cast %107 : vector<1x8x8xf32> to vector<8x8xf32>
    %109 = tpu.concatenate %102, %104, %106, %108 in 1 : vector<8x8xf32>, vector<8x8xf32>, vector<8x8xf32>, vector<8x8xf32> -> vector<8x32xf32>
    %110 = vector.extract_strided_slice %100 {offsets = [4, 0, 0], sizes = [1, 8, 8], strides = [1, 1, 1]} : vector<8x8x8xf32> to vector<1x8x8xf32>
    %111 = vector.shape_cast %110 : vector<1x8x8xf32> to vector<8x8xf32>
    %112 = vector.extract_strided_slice %100 {offsets = [5, 0, 0], sizes = [1, 8, 8], strides = [1, 1, 1]} : vector<8x8x8xf32> to vector<1x8x8xf32>
    %113 = vector.shape_cast %112 : vector<1x8x8xf32> to vector<8x8xf32>
    %114 = vector.extract_strided_slice %100 {offsets = [6, 0, 0], sizes = [1, 8, 8], strides = [1, 1, 1]} : vector<8x8x8xf32> to vector<1x8x8xf32>
    %115 = vector.shape_cast %114 : vector<1x8x8xf32> to vector<8x8xf32>
    %116 = vector.extract_strided_slice %100 {offsets = [7, 0, 0], sizes = [1, 8, 8], strides = [1, 1, 1]} : vector<8x8x8xf32> to vector<1x8x8xf32>
    %117 = vector.shape_cast %116 : vector<1x8x8xf32> to vector<8x8xf32>
    %118 = tpu.concatenate %111, %113, %115, %117 in 1 : vector<8x8xf32>, vector<8x8xf32>, vector<8x8xf32>, vector<8x8xf32> -> vector<8x32xf32>
    %119 = tpu.concatenate %109, %118 in 0 : vector<8x32xf32>, vector<8x32xf32> -> vector<16x32xf32>
    %120 = arith.truncf %119 : vector<16x32xf32> to vector<16x32xbf16>
    %c0_19 = arith.constant 0 : index
    %c0_20 = arith.constant 0 : index
    %c0_21 = arith.constant 0 : index
    %121 = vector.load %arg6[%c0_19, %c0_20, %c0_21] : memref<2x32x32xbf16, #tpu.memory_space<vmem>>, vector<1x32x32xbf16>
    %122 = vector.shape_cast %121 : vector<1x32x32xbf16> to vector<32x32xbf16>
    %cst_22 = arith.constant dense<0.000000e+00> : vector<16x32xf32>
    %123 = tpu.matmul %120, %122, %cst_22 {dimension_numbers = #tpu.dot_dimension_numbers<[1], [0], [0], [1], [0, 0, 1, 1], [], []>} : vector<16x32xbf16>, vector<32x32xbf16>, vector<16x32xf32> -> vector<16x32xf32>
    %c0_23 = arith.constant 0 : index
    %c0_24 = arith.constant 0 : index
    %124 = vector.load %arg7[%c0_23, %c0_24] : memref<2x32xf32, #tpu.memory_space<vmem>>, vector<1x32xf32>
    %125 = vector.shape_cast %124 : vector<1x32xf32> to vector<32xf32>
    %126 = vector.shape_cast %125 : vector<32xf32> to vector<1x32xf32>
    %127 = vector.broadcast %126 : vector<1x32xf32> to vector<16x32xf32>
    %128 = arith.addf %123, %127 : vector<16x32xf32>
    %129 = arith.addf %128, %0 : vector<16x32xf32>
    %c0_25 = arith.constant 0 : index
    %c0_26 = arith.constant 0 : index
    %130 = vector.load %arg8[%c0_25, %c0_26] : memref<2x32xf32, #tpu.memory_space<vmem>>, vector<1x32xf32>
    %131 = vector.shape_cast %130 : vector<1x32xf32> to vector<32xf32>
    %c0_27 = arith.constant 0 : index
    %c0_28 = arith.constant 0 : index
    %132 = vector.load %arg9[%c0_27, %c0_28] : memref<2x32xf32, #tpu.memory_space<vmem>>, vector<1x32xf32>
    %133 = vector.shape_cast %132 : vector<1x32xf32> to vector<32xf32>
    %cst_29 = arith.constant dense<0.000000e+00> : vector<16xf32>
    %134 = vector.multi_reduction <add>, %129, %cst_29 [1] : vector<16x32xf32> to vector<16xf32>
    %135 = vector.shape_cast %134 : vector<16xf32> to vector<16x1xf32>
    %cst_30 = arith.constant 3.200000e+01 : f32
    %136 = vector.broadcast %cst_30 : f32 to vector<16x1xf32>
    %137 = arith.divf %135, %136 : vector<16x1xf32>
    %138 = vector.broadcast %137 : vector<16x1xf32> to vector<16x32xf32>
    %139 = arith.subf %129, %138 : vector<16x32xf32>
    %140 = arith.mulf %139, %139 : vector<16x32xf32>
    %cst_31 = arith.constant dense<0.000000e+00> : vector<16xf32>
    %141 = vector.multi_reduction <add>, %140, %cst_31 [1] : vector<16x32xf32> to vector<16xf32>
    %142 = vector.shape_cast %141 : vector<16xf32> to vector<16x1xf32>
    %cst_32 = arith.constant 3.200000e+01 : f32
    %143 = vector.broadcast %cst_32 : f32 to vector<16x1xf32>
    %144 = arith.divf %142, %143 : vector<16x1xf32>
    %cst_33 = arith.constant 9.99999997E-7 : f32
    %145 = vector.broadcast %cst_33 : f32 to vector<16x1xf32>
    %146 = arith.addf %144, %145 : vector<16x1xf32>
    %147 = math.rsqrt %146 : vector<16x1xf32>
    %148 = vector.broadcast %147 : vector<16x1xf32> to vector<16x32xf32>
    %149 = arith.mulf %139, %148 : vector<16x32xf32>
    %150 = vector.shape_cast %131 : vector<32xf32> to vector<1x32xf32>
    %151 = vector.broadcast %150 : vector<1x32xf32> to vector<16x32xf32>
    %152 = arith.mulf %149, %151 : vector<16x32xf32>
    %153 = vector.shape_cast %133 : vector<32xf32> to vector<1x32xf32>
    %154 = vector.broadcast %153 : vector<1x32xf32> to vector<16x32xf32>
    %155 = arith.addf %152, %154 : vector<16x32xf32>
    %156 = arith.truncf %155 : vector<16x32xf32> to vector<16x32xbf16>
    %c0_34 = arith.constant 0 : index
    %c0_35 = arith.constant 0 : index
    %c0_36 = arith.constant 0 : index
    %157 = vector.load %arg10[%c0_34, %c0_35, %c0_36] : memref<2x32x64xbf16, #tpu.memory_space<vmem>>, vector<1x32x64xbf16>
    %158 = vector.shape_cast %157 : vector<1x32x64xbf16> to vector<32x64xbf16>
    %cst_37 = arith.constant dense<0.000000e+00> : vector<16x64xf32>
    %159 = tpu.matmul %156, %158, %cst_37 {dimension_numbers = #tpu.dot_dimension_numbers<[1], [0], [0], [1], [0, 0, 1, 1], [], []>} : vector<16x32xbf16>, vector<32x64xbf16>, vector<16x64xf32> -> vector<16x64xf32>
    %c0_38 = arith.constant 0 : index
    %c0_39 = arith.constant 0 : index
    %160 = vector.load %arg11[%c0_38, %c0_39] : memref<2x64xf32, #tpu.memory_space<vmem>>, vector<1x64xf32>
    %161 = vector.shape_cast %160 : vector<1x64xf32> to vector<64xf32>
    %162 = vector.shape_cast %161 : vector<64xf32> to vector<1x64xf32>
    %163 = vector.broadcast %162 : vector<1x64xf32> to vector<16x64xf32>
    %164 = arith.addf %159, %163 : vector<16x64xf32>
    %cst_40 = arith.constant 5.000000e-01 : f32
    %165 = vector.broadcast %cst_40 : f32 to vector<16x64xf32>
    %166 = arith.mulf %165, %164 : vector<16x64xf32>
    %cst_41 = arith.constant 4.471500e-02 : f32
    %167 = vector.broadcast %cst_41 : f32 to vector<16x64xf32>
    %168 = arith.mulf %167, %164 : vector<16x64xf32>
    %169 = arith.mulf %168, %164 : vector<16x64xf32>
    %170 = arith.mulf %169, %164 : vector<16x64xf32>
    %171 = arith.addf %164, %170 : vector<16x64xf32>
    %cst_42 = arith.constant 0.797884583 : f32
    %172 = vector.broadcast %cst_42 : f32 to vector<16x64xf32>
    %173 = arith.mulf %172, %171 : vector<16x64xf32>
    %174 = math.tanh %173 : vector<16x64xf32>
    %cst_43 = arith.constant 1.000000e+00 : f32
    %175 = vector.broadcast %cst_43 : f32 to vector<16x64xf32>
    %176 = arith.addf %175, %174 : vector<16x64xf32>
    %177 = arith.mulf %166, %176 : vector<16x64xf32>
    %178 = arith.truncf %177 : vector<16x64xf32> to vector<16x64xbf16>
    %c0_44 = arith.constant 0 : index
    %c0_45 = arith.constant 0 : index
    %c0_46 = arith.constant 0 : index
    %179 = vector.load %arg12[%c0_44, %c0_45, %c0_46] : memref<2x64x32xbf16, #tpu.memory_space<vmem>>, vector<1x64x32xbf16>
    %180 = vector.shape_cast %179 : vector<1x64x32xbf16> to vector<64x32xbf16>
    %cst_47 = arith.constant dense<0.000000e+00> : vector<16x32xf32>
    %181 = tpu.matmul %178, %180, %cst_47 {dimension_numbers = #tpu.dot_dimension_numbers<[1], [0], [0], [1], [0, 0, 1, 1], [], []>} : vector<16x64xbf16>, vector<64x32xbf16>, vector<16x32xf32> -> vector<16x32xf32>
    %c0_48 = arith.constant 0 : index
    %c0_49 = arith.constant 0 : index
    %182 = vector.load %arg13[%c0_48, %c0_49] : memref<2x32xf32, #tpu.memory_space<vmem>>, vector<1x32xf32>
    %183 = vector.shape_cast %182 : vector<1x32xf32> to vector<32xf32>
    %184 = vector.shape_cast %183 : vector<32xf32> to vector<1x32xf32>
    %185 = vector.broadcast %184 : vector<1x32xf32> to vector<16x32xf32>
    %186 = arith.addf %181, %185 : vector<16x32xf32>
    %187 = arith.addf %186, %129 : vector<16x32xf32>
    %c1 = arith.constant 1 : index
    %c0_50 = arith.constant 0 : index
    %188 = vector.load %arg2[%c1, %c0_50] : memref<2x32xf32, #tpu.memory_space<vmem>>, vector<1x32xf32>
    %189 = vector.shape_cast %188 : vector<1x32xf32> to vector<32xf32>
    %c1_51 = arith.constant 1 : index
    %c0_52 = arith.constant 0 : index
    %190 = vector.load %arg3[%c1_51, %c0_52] : memref<2x32xf32, #tpu.memory_space<vmem>>, vector<1x32xf32>
    %191 = vector.shape_cast %190 : vector<1x32xf32> to vector<32xf32>
    %cst_53 = arith.constant dense<0.000000e+00> : vector<16xf32>
    %192 = vector.multi_reduction <add>, %187, %cst_53 [1] : vector<16x32xf32> to vector<16xf32>
    %193 = vector.shape_cast %192 : vector<16xf32> to vector<16x1xf32>
    %cst_54 = arith.constant 3.200000e+01 : f32
    %194 = vector.broadcast %cst_54 : f32 to vector<16x1xf32>
    %195 = arith.divf %193, %194 : vector<16x1xf32>
    %196 = vector.broadcast %195 : vector<16x1xf32> to vector<16x32xf32>
    %197 = arith.subf %187, %196 : vector<16x32xf32>
    %198 = arith.mulf %197, %197 : vector<16x32xf32>
    %cst_55 = arith.constant dense<0.000000e+00> : vector<16xf32>
    %199 = vector.multi_reduction <add>, %198, %cst_55 [1] : vector<16x32xf32> to vector<16xf32>
    %200 = vector.shape_cast %199 : vector<16xf32> to vector<16x1xf32>
    %cst_56 = arith.constant 3.200000e+01 : f32
    %201 = vector.broadcast %cst_56 : f32 to vector<16x1xf32>
    %202 = arith.divf %200, %201 : vector<16x1xf32>
    %cst_57 = arith.constant 9.99999997E-7 : f32
    %203 = vector.broadcast %cst_57 : f32 to vector<16x1xf32>
    %204 = arith.addf %202, %203 : vector<16x1xf32>
    %205 = math.rsqrt %204 : vector<16x1xf32>
    %206 = vector.broadcast %205 : vector<16x1xf32> to vector<16x32xf32>
    %207 = arith.mulf %197, %206 : vector<16x32xf32>
    %208 = vector.shape_cast %189 : vector<32xf32> to vector<1x32xf32>
    %209 = vector.broadcast %208 : vector<1x32xf32> to vector<16x32xf32>
    %210 = arith.mulf %207, %209 : vector<16x32xf32>
    %211 = vector.shape_cast %191 : vector<32xf32> to vector<1x32xf32>
    %212 = vector.broadcast %211 : vector<1x32xf32> to vector<16x32xf32>
    %213 = arith.addf %210, %212 : vector<16x32xf32>
    %214 = arith.truncf %213 : vector<16x32xf32> to vector<16x32xbf16>
    %c1_58 = arith.constant 1 : index
    %c0_59 = arith.constant 0 : index
    %c0_60 = arith.constant 0 : index
    %215 = vector.load %arg4[%c1_58, %c0_59, %c0_60] : memref<2x32x96xbf16, #tpu.memory_space<vmem>>, vector<1x32x96xbf16>
    %216 = vector.shape_cast %215 : vector<1x32x96xbf16> to vector<32x96xbf16>
    %cst_61 = arith.constant dense<0.000000e+00> : vector<16x96xf32>
    %217 = tpu.matmul %214, %216, %cst_61 {dimension_numbers = #tpu.dot_dimension_numbers<[1], [0], [0], [1], [0, 0, 1, 1], [], []>} : vector<16x32xbf16>, vector<32x96xbf16>, vector<16x96xf32> -> vector<16x96xf32>
    %c1_62 = arith.constant 1 : index
    %c0_63 = arith.constant 0 : index
    %218 = vector.load %arg5[%c1_62, %c0_63] : memref<2x96xf32, #tpu.memory_space<vmem>>, vector<1x96xf32>
    %219 = vector.shape_cast %218 : vector<1x96xf32> to vector<96xf32>
    %220 = vector.shape_cast %219 : vector<96xf32> to vector<1x96xf32>
    %221 = vector.broadcast %220 : vector<1x96xf32> to vector<16x96xf32>
    %222 = arith.addf %217, %221 : vector<16x96xf32>
    %223 = arith.truncf %222 : vector<16x96xf32> to vector<16x96xbf16>
    %224 = vector.extract_strided_slice %223 {offsets = [0, 0], sizes = [8, 8], strides = [1, 1]} : vector<16x96xbf16> to vector<8x8xbf16>
    %225 = vector.extract_strided_slice %223 {offsets = [0, 8], sizes = [8, 8], strides = [1, 1]} : vector<16x96xbf16> to vector<8x8xbf16>
    %226 = vector.extract_strided_slice %223 {offsets = [0, 16], sizes = [8, 8], strides = [1, 1]} : vector<16x96xbf16> to vector<8x8xbf16>
    %227 = vector.extract_strided_slice %223 {offsets = [0, 24], sizes = [8, 8], strides = [1, 1]} : vector<16x96xbf16> to vector<8x8xbf16>
    %228 = vector.extract_strided_slice %223 {offsets = [8, 0], sizes = [8, 8], strides = [1, 1]} : vector<16x96xbf16> to vector<8x8xbf16>
    %229 = vector.extract_strided_slice %223 {offsets = [8, 8], sizes = [8, 8], strides = [1, 1]} : vector<16x96xbf16> to vector<8x8xbf16>
    %230 = vector.extract_strided_slice %223 {offsets = [8, 16], sizes = [8, 8], strides = [1, 1]} : vector<16x96xbf16> to vector<8x8xbf16>
    %231 = vector.extract_strided_slice %223 {offsets = [8, 24], sizes = [8, 8], strides = [1, 1]} : vector<16x96xbf16> to vector<8x8xbf16>
    %232 = vector.shape_cast %224 : vector<8x8xbf16> to vector<1x8x8xbf16>
    %233 = vector.shape_cast %225 : vector<8x8xbf16> to vector<1x8x8xbf16>
    %234 = vector.shape_cast %226 : vector<8x8xbf16> to vector<1x8x8xbf16>
    %235 = vector.shape_cast %227 : vector<8x8xbf16> to vector<1x8x8xbf16>
    %236 = vector.shape_cast %228 : vector<8x8xbf16> to vector<1x8x8xbf16>
    %237 = vector.shape_cast %229 : vector<8x8xbf16> to vector<1x8x8xbf16>
    %238 = vector.shape_cast %230 : vector<8x8xbf16> to vector<1x8x8xbf16>
    %239 = vector.shape_cast %231 : vector<8x8xbf16> to vector<1x8x8xbf16>
    %240 = tpu.concatenate %232, %233, %234, %235, %236, %237, %238, %239 in 0 : vector<1x8x8xbf16>, vector<1x8x8xbf16>, vector<1x8x8xbf16>, vector<1x8x8xbf16>, vector<1x8x8xbf16>, vector<1x8x8xbf16>, vector<1x8x8xbf16>, vector<1x8x8xbf16> -> vector<8x8x8xbf16>
    %241 = vector.extract_strided_slice %223 {offsets = [0, 32], sizes = [8, 8], strides = [1, 1]} : vector<16x96xbf16> to vector<8x8xbf16>
    %242 = vector.extract_strided_slice %223 {offsets = [0, 40], sizes = [8, 8], strides = [1, 1]} : vector<16x96xbf16> to vector<8x8xbf16>
    %243 = vector.extract_strided_slice %223 {offsets = [0, 48], sizes = [8, 8], strides = [1, 1]} : vector<16x96xbf16> to vector<8x8xbf16>
    %244 = vector.extract_strided_slice %223 {offsets = [0, 56], sizes = [8, 8], strides = [1, 1]} : vector<16x96xbf16> to vector<8x8xbf16>
    %245 = vector.extract_strided_slice %223 {offsets = [8, 32], sizes = [8, 8], strides = [1, 1]} : vector<16x96xbf16> to vector<8x8xbf16>
    %246 = vector.extract_strided_slice %223 {offsets = [8, 40], sizes = [8, 8], strides = [1, 1]} : vector<16x96xbf16> to vector<8x8xbf16>
    %247 = vector.extract_strided_slice %223 {offsets = [8, 48], sizes = [8, 8], strides = [1, 1]} : vector<16x96xbf16> to vector<8x8xbf16>
    %248 = vector.extract_strided_slice %223 {offsets = [8, 56], sizes = [8, 8], strides = [1, 1]} : vector<16x96xbf16> to vector<8x8xbf16>
    %249 = vector.shape_cast %241 : vector<8x8xbf16> to vector<1x8x8xbf16>
    %250 = vector.shape_cast %242 : vector<8x8xbf16> to vector<1x8x8xbf16>
    %251 = vector.shape_cast %243 : vector<8x8xbf16> to vector<1x8x8xbf16>
    %252 = vector.shape_cast %244 : vector<8x8xbf16> to vector<1x8x8xbf16>
    %253 = vector.shape_cast %245 : vector<8x8xbf16> to vector<1x8x8xbf16>
    %254 = vector.shape_cast %246 : vector<8x8xbf16> to vector<1x8x8xbf16>
    %255 = vector.shape_cast %247 : vector<8x8xbf16> to vector<1x8x8xbf16>
    %256 = vector.shape_cast %248 : vector<8x8xbf16> to vector<1x8x8xbf16>
    %257 = tpu.concatenate %249, %250, %251, %252, %253, %254, %255, %256 in 0 : vector<1x8x8xbf16>, vector<1x8x8xbf16>, vector<1x8x8xbf16>, vector<1x8x8xbf16>, vector<1x8x8xbf16>, vector<1x8x8xbf16>, vector<1x8x8xbf16>, vector<1x8x8xbf16> -> vector<8x8x8xbf16>
    %258 = vector.extract_strided_slice %223 {offsets = [0, 64], sizes = [8, 8], strides = [1, 1]} : vector<16x96xbf16> to vector<8x8xbf16>
    %259 = vector.extract_strided_slice %223 {offsets = [0, 72], sizes = [8, 8], strides = [1, 1]} : vector<16x96xbf16> to vector<8x8xbf16>
    %260 = vector.extract_strided_slice %223 {offsets = [0, 80], sizes = [8, 8], strides = [1, 1]} : vector<16x96xbf16> to vector<8x8xbf16>
    %261 = vector.extract_strided_slice %223 {offsets = [0, 88], sizes = [8, 8], strides = [1, 1]} : vector<16x96xbf16> to vector<8x8xbf16>
    %262 = vector.extract_strided_slice %223 {offsets = [8, 64], sizes = [8, 8], strides = [1, 1]} : vector<16x96xbf16> to vector<8x8xbf16>
    %263 = vector.extract_strided_slice %223 {offsets = [8, 72], sizes = [8, 8], strides = [1, 1]} : vector<16x96xbf16> to vector<8x8xbf16>
    %264 = vector.extract_strided_slice %223 {offsets = [8, 80], sizes = [8, 8], strides = [1, 1]} : vector<16x96xbf16> to vector<8x8xbf16>
    %265 = vector.extract_strided_slice %223 {offsets = [8, 88], sizes = [8, 8], strides = [1, 1]} : vector<16x96xbf16> to vector<8x8xbf16>
    %266 = vector.shape_cast %258 : vector<8x8xbf16> to vector<1x8x8xbf16>
    %267 = vector.shape_cast %259 : vector<8x8xbf16> to vector<1x8x8xbf16>
    %268 = vector.shape_cast %260 : vector<8x8xbf16> to vector<1x8x8xbf16>
    %269 = vector.shape_cast %261 : vector<8x8xbf16> to vector<1x8x8xbf16>
    %270 = vector.shape_cast %262 : vector<8x8xbf16> to vector<1x8x8xbf16>
    %271 = vector.shape_cast %263 : vector<8x8xbf16> to vector<1x8x8xbf16>
    %272 = vector.shape_cast %264 : vector<8x8xbf16> to vector<1x8x8xbf16>
    %273 = vector.shape_cast %265 : vector<8x8xbf16> to vector<1x8x8xbf16>
    %274 = tpu.concatenate %266, %267, %268, %269, %270, %271, %272, %273 in 0 : vector<1x8x8xbf16>, vector<1x8x8xbf16>, vector<1x8x8xbf16>, vector<1x8x8xbf16>, vector<1x8x8xbf16>, vector<1x8x8xbf16>, vector<1x8x8xbf16>, vector<1x8x8xbf16> -> vector<8x8x8xbf16>
    "tpu.trace_start"() <{level = 10 : i32, message = "nqd,nkd->nqk"}> : () -> ()
    %cst_64 = arith.constant dense<0.000000e+00> : vector<8x8x8xf32>
    %275 = tpu.matmul %240, %257, %cst_64 {dimension_numbers = #tpu.dot_dimension_numbers<[2], [2], [1], [1], [0, 0, 0, 1, 1, 1], [0], [0]>} : vector<8x8x8xbf16>, vector<8x8x8xbf16>, vector<8x8x8xf32> -> vector<8x8x8xf32>
    "tpu.trace_stop"() : () -> ()
    %cst_65 = arith.constant dense<0xFF800000> : vector<8x8xf32>
    %276 = vector.multi_reduction <maximumf>, %275, %cst_65 [2] : vector<8x8x8xf32> to vector<8x8xf32>
    %277 = vector.shape_cast %276 : vector<8x8xf32> to vector<8x8x1xf32>
    %278 = vector.broadcast %277 : vector<8x8x1xf32> to vector<8x8x8xf32>
    %279 = arith.subf %275, %278 : vector<8x8x8xf32>
    %280 = math.exp %279 : vector<8x8x8xf32>
    %cst_66 = arith.constant dense<0.000000e+00> : vector<8x8xf32>
    %281 = vector.multi_reduction <add>, %280, %cst_66 [2] : vector<8x8x8xf32> to vector<8x8xf32>
    %282 = vector.shape_cast %281 : vector<8x8xf32> to vector<8x8x1xf32>
    %283 = tpu.reciprocal %282 {approx = true} : vector<8x8x1xf32> -> vector<8x8x1xf32>
    %284 = vector.broadcast %283 : vector<8x8x1xf32> to vector<8x8x8xf32>
    %285 = arith.mulf %280, %284 : vector<8x8x8xf32>
    %286 = arith.truncf %285 : vector<8x8x8xf32> to vector<8x8x8xbf16>
    "tpu.trace_start"() <{level = 10 : i32, message = "nqk,nkd->nqd"}> : () -> ()
    %cst_67 = arith.constant dense<0.000000e+00> : vector<8x8x8xf32>
    %287 = tpu.matmul %286, %274, %cst_67 {dimension_numbers = #tpu.dot_dimension_numbers<[2], [1], [1], [2], [0, 0, 0, 1, 1, 2], [0], [0]>} : vector<8x8x8xbf16>, vector<8x8x8xbf16>, vector<8x8x8xf32> -> vector<8x8x8xf32>
    "tpu.trace_stop"() : () -> ()
    %288 = vector.extract_strided_slice %287 {offsets = [0, 0, 0], sizes = [1, 8, 8], strides = [1, 1, 1]} : vector<8x8x8xf32> to vector<1x8x8xf32>
    %289 = vector.shape_cast %288 : vector<1x8x8xf32> to vector<8x8xf32>
    %290 = vector.extract_strided_slice %287 {offsets = [1, 0, 0], sizes = [1, 8, 8], strides = [1, 1, 1]} : vector<8x8x8xf32> to vector<1x8x8xf32>
    %291 = vector.shape_cast %290 : vector<1x8x8xf32> to vector<8x8xf32>
    %292 = vector.extract_strided_slice %287 {offsets = [2, 0, 0], sizes = [1, 8, 8], strides = [1, 1, 1]} : vector<8x8x8xf32> to vector<1x8x8xf32>
    %293 = vector.shape_cast %292 : vector<1x8x8xf32> to vector<8x8xf32>
    %294 = vector.extract_strided_slice %287 {offsets = [3, 0, 0], sizes = [1, 8, 8], strides = [1, 1, 1]} : vector<8x8x8xf32> to vector<1x8x8xf32>
    %295 = vector.shape_cast %294 : vector<1x8x8xf32> to vector<8x8xf32>
    %296 = tpu.concatenate %289, %291, %293, %295 in 1 : vector<8x8xf32>, vector<8x8xf32>, vector<8x8xf32>, vector<8x8xf32> -> vector<8x32xf32>
    %297 = vector.extract_strided_slice %287 {offsets = [4, 0, 0], sizes = [1, 8, 8], strides = [1, 1, 1]} : vector<8x8x8xf32> to vector<1x8x8xf32>
    %298 = vector.shape_cast %297 : vector<1x8x8xf32> to vector<8x8xf32>
    %299 = vector.extract_strided_slice %287 {offsets = [5, 0, 0], sizes = [1, 8, 8], strides = [1, 1, 1]} : vector<8x8x8xf32> to vector<1x8x8xf32>
    %300 = vector.shape_cast %299 : vector<1x8x8xf32> to vector<8x8xf32>
    %301 = vector.extract_strided_slice %287 {offsets = [6, 0, 0], sizes = [1, 8, 8], strides = [1, 1, 1]} : vector<8x8x8xf32> to vector<1x8x8xf32>
    %302 = vector.shape_cast %301 : vector<1x8x8xf32> to vector<8x8xf32>
    %303 = vector.extract_strided_slice %287 {offsets = [7, 0, 0], sizes = [1, 8, 8], strides = [1, 1, 1]} : vector<8x8x8xf32> to vector<1x8x8xf32>
    %304 = vector.shape_cast %303 : vector<1x8x8xf32> to vector<8x8xf32>
    %305 = tpu.concatenate %298, %300, %302, %304 in 1 : vector<8x8xf32>, vector<8x8xf32>, vector<8x8xf32>, vector<8x8xf32> -> vector<8x32xf32>
    %306 = tpu.concatenate %296, %305 in 0 : vector<8x32xf32>, vector<8x32xf32> -> vector<16x32xf32>
    %307 = arith.truncf %306 : vector<16x32xf32> to vector<16x32xbf16>
    %c1_68 = arith.constant 1 : index
    %c0_69 = arith.constant 0 : index
    %c0_70 = arith.constant 0 : index
    %308 = vector.load %arg6[%c1_68, %c0_69, %c0_70] : memref<2x32x32xbf16, #tpu.memory_space<vmem>>, vector<1x32x32xbf16>
    %309 = vector.shape_cast %308 : vector<1x32x32xbf16> to vector<32x32xbf16>
    %cst_71 = arith.constant dense<0.000000e+00> : vector<16x32xf32>
    %310 = tpu.matmul %307, %309, %cst_71 {dimension_numbers = #tpu.dot_dimension_numbers<[1], [0], [0], [1], [0, 0, 1, 1], [], []>} : vector<16x32xbf16>, vector<32x32xbf16>, vector<16x32xf32> -> vector<16x32xf32>
    %c1_72 = arith.constant 1 : index
    %c0_73 = arith.constant 0 : index
    %311 = vector.load %arg7[%c1_72, %c0_73] : memref<2x32xf32, #tpu.memory_space<vmem>>, vector<1x32xf32>
    %312 = vector.shape_cast %311 : vector<1x32xf32> to vector<32xf32>
    %313 = vector.shape_cast %312 : vector<32xf32> to vector<1x32xf32>
    %314 = vector.broadcast %313 : vector<1x32xf32> to vector<16x32xf32>
    %315 = arith.addf %310, %314 : vector<16x32xf32>
    %316 = arith.addf %315, %187 : vector<16x32xf32>
    %c1_74 = arith.constant 1 : index
    %c0_75 = arith.constant 0 : index
    %317 = vector.load %arg8[%c1_74, %c0_75] : memref<2x32xf32, #tpu.memory_space<vmem>>, vector<1x32xf32>
    %318 = vector.shape_cast %317 : vector<1x32xf32> to vector<32xf32>
    %c1_76 = arith.constant 1 : index
    %c0_77 = arith.constant 0 : index
    %319 = vector.load %arg9[%c1_76, %c0_77] : memref<2x32xf32, #tpu.memory_space<vmem>>, vector<1x32xf32>
    %320 = vector.shape_cast %319 : vector<1x32xf32> to vector<32xf32>
    %cst_78 = arith.constant dense<0.000000e+00> : vector<16xf32>
    %321 = vector.multi_reduction <add>, %316, %cst_78 [1] : vector<16x32xf32> to vector<16xf32>
    %322 = vector.shape_cast %321 : vector<16xf32> to vector<16x1xf32>
    %cst_79 = arith.constant 3.200000e+01 : f32
    %323 = vector.broadcast %cst_79 : f32 to vector<16x1xf32>
    %324 = arith.divf %322, %323 : vector<16x1xf32>
    %325 = vector.broadcast %324 : vector<16x1xf32> to vector<16x32xf32>
    %326 = arith.subf %316, %325 : vector<16x32xf32>
    %327 = arith.mulf %326, %326 : vector<16x32xf32>
    %cst_80 = arith.constant dense<0.000000e+00> : vector<16xf32>
    %328 = vector.multi_reduction <add>, %327, %cst_80 [1] : vector<16x32xf32> to vector<16xf32>
    %329 = vector.shape_cast %328 : vector<16xf32> to vector<16x1xf32>
    %cst_81 = arith.constant 3.200000e+01 : f32
    %330 = vector.broadcast %cst_81 : f32 to vector<16x1xf32>
    %331 = arith.divf %329, %330 : vector<16x1xf32>
    %cst_82 = arith.constant 9.99999997E-7 : f32
    %332 = vector.broadcast %cst_82 : f32 to vector<16x1xf32>
    %333 = arith.addf %331, %332 : vector<16x1xf32>
    %334 = math.rsqrt %333 : vector<16x1xf32>
    %335 = vector.broadcast %334 : vector<16x1xf32> to vector<16x32xf32>
    %336 = arith.mulf %326, %335 : vector<16x32xf32>
    %337 = vector.shape_cast %318 : vector<32xf32> to vector<1x32xf32>
    %338 = vector.broadcast %337 : vector<1x32xf32> to vector<16x32xf32>
    %339 = arith.mulf %336, %338 : vector<16x32xf32>
    %340 = vector.shape_cast %320 : vector<32xf32> to vector<1x32xf32>
    %341 = vector.broadcast %340 : vector<1x32xf32> to vector<16x32xf32>
    %342 = arith.addf %339, %341 : vector<16x32xf32>
    %343 = arith.truncf %342 : vector<16x32xf32> to vector<16x32xbf16>
    %c1_83 = arith.constant 1 : index
    %c0_84 = arith.constant 0 : index
    %c0_85 = arith.constant 0 : index
    %344 = vector.load %arg10[%c1_83, %c0_84, %c0_85] : memref<2x32x64xbf16, #tpu.memory_space<vmem>>, vector<1x32x64xbf16>
    %345 = vector.shape_cast %344 : vector<1x32x64xbf16> to vector<32x64xbf16>
    %cst_86 = arith.constant dense<0.000000e+00> : vector<16x64xf32>
    %346 = tpu.matmul %343, %345, %cst_86 {dimension_numbers = #tpu.dot_dimension_numbers<[1], [0], [0], [1], [0, 0, 1, 1], [], []>} : vector<16x32xbf16>, vector<32x64xbf16>, vector<16x64xf32> -> vector<16x64xf32>
    %c1_87 = arith.constant 1 : index
    %c0_88 = arith.constant 0 : index
    %347 = vector.load %arg11[%c1_87, %c0_88] : memref<2x64xf32, #tpu.memory_space<vmem>>, vector<1x64xf32>
    %348 = vector.shape_cast %347 : vector<1x64xf32> to vector<64xf32>
    %349 = vector.shape_cast %348 : vector<64xf32> to vector<1x64xf32>
    %350 = vector.broadcast %349 : vector<1x64xf32> to vector<16x64xf32>
    %351 = arith.addf %346, %350 : vector<16x64xf32>
    %cst_89 = arith.constant 5.000000e-01 : f32
    %352 = vector.broadcast %cst_89 : f32 to vector<16x64xf32>
    %353 = arith.mulf %352, %351 : vector<16x64xf32>
    %cst_90 = arith.constant 4.471500e-02 : f32
    %354 = vector.broadcast %cst_90 : f32 to vector<16x64xf32>
    %355 = arith.mulf %354, %351 : vector<16x64xf32>
    %356 = arith.mulf %355, %351 : vector<16x64xf32>
    %357 = arith.mulf %356, %351 : vector<16x64xf32>
    %358 = arith.addf %351, %357 : vector<16x64xf32>
    %cst_91 = arith.constant 0.797884583 : f32
    %359 = vector.broadcast %cst_91 : f32 to vector<16x64xf32>
    %360 = arith.mulf %359, %358 : vector<16x64xf32>
    %361 = math.tanh %360 : vector<16x64xf32>
    %cst_92 = arith.constant 1.000000e+00 : f32
    %362 = vector.broadcast %cst_92 : f32 to vector<16x64xf32>
    %363 = arith.addf %362, %361 : vector<16x64xf32>
    %364 = arith.mulf %353, %363 : vector<16x64xf32>
    %365 = arith.truncf %364 : vector<16x64xf32> to vector<16x64xbf16>
    %c1_93 = arith.constant 1 : index
    %c0_94 = arith.constant 0 : index
    %c0_95 = arith.constant 0 : index
    %366 = vector.load %arg12[%c1_93, %c0_94, %c0_95] : memref<2x64x32xbf16, #tpu.memory_space<vmem>>, vector<1x64x32xbf16>
    %367 = vector.shape_cast %366 : vector<1x64x32xbf16> to vector<64x32xbf16>
    %cst_96 = arith.constant dense<0.000000e+00> : vector<16x32xf32>
    %368 = tpu.matmul %365, %367, %cst_96 {dimension_numbers = #tpu.dot_dimension_numbers<[1], [0], [0], [1], [0, 0, 1, 1], [], []>} : vector<16x64xbf16>, vector<64x32xbf16>, vector<16x32xf32> -> vector<16x32xf32>
    %c1_97 = arith.constant 1 : index
    %c0_98 = arith.constant 0 : index
    %369 = vector.load %arg13[%c1_97, %c0_98] : memref<2x32xf32, #tpu.memory_space<vmem>>, vector<1x32xf32>
    %370 = vector.shape_cast %369 : vector<1x32xf32> to vector<32xf32>
    %371 = vector.shape_cast %370 : vector<32xf32> to vector<1x32xf32>
    %372 = vector.broadcast %371 : vector<1x32xf32> to vector<16x32xf32>
    %373 = arith.addf %368, %372 : vector<16x32xf32>
    %374 = arith.addf %373, %316 : vector<16x32xf32>
    %c0_99 = arith.constant 0 : index
    %c0_100 = arith.constant 0 : index
    %375 = vector.load %arg14[%c0_99, %c0_100] : memref<1x32xf32, #tpu.memory_space<vmem>>, vector<1x32xf32>
    %376 = vector.shape_cast %375 : vector<1x32xf32> to vector<32xf32>
    %c0_101 = arith.constant 0 : index
    %c0_102 = arith.constant 0 : index
    %377 = vector.load %arg15[%c0_101, %c0_102] : memref<1x32xf32, #tpu.memory_space<vmem>>, vector<1x32xf32>
    %378 = vector.shape_cast %377 : vector<1x32xf32> to vector<32xf32>
    %cst_103 = arith.constant dense<0.000000e+00> : vector<16xf32>
    %379 = vector.multi_reduction <add>, %374, %cst_103 [1] : vector<16x32xf32> to vector<16xf32>
    %380 = vector.shape_cast %379 : vector<16xf32> to vector<16x1xf32>
    %cst_104 = arith.constant 3.200000e+01 : f32
    %381 = vector.broadcast %cst_104 : f32 to vector<16x1xf32>
    %382 = arith.divf %380, %381 : vector<16x1xf32>
    %383 = vector.broadcast %382 : vector<16x1xf32> to vector<16x32xf32>
    %384 = arith.subf %374, %383 : vector<16x32xf32>
    %385 = arith.mulf %384, %384 : vector<16x32xf32>
    %cst_105 = arith.constant dense<0.000000e+00> : vector<16xf32>
    %386 = vector.multi_reduction <add>, %385, %cst_105 [1] : vector<16x32xf32> to vector<16xf32>
    %387 = vector.shape_cast %386 : vector<16xf32> to vector<16x1xf32>
    %cst_106 = arith.constant 3.200000e+01 : f32
    %388 = vector.broadcast %cst_106 : f32 to vector<16x1xf32>
    %389 = arith.divf %387, %388 : vector<16x1xf32>
    %cst_107 = arith.constant 9.99999997E-7 : f32
    %390 = vector.broadcast %cst_107 : f32 to vector<16x1xf32>
    %391 = arith.addf %389, %390 : vector<16x1xf32>
    %392 = math.rsqrt %391 : vector<16x1xf32>
    %393 = vector.broadcast %392 : vector<16x1xf32> to vector<16x32xf32>
    %394 = arith.mulf %384, %393 : vector<16x32xf32>
    %395 = vector.shape_cast %376 : vector<32xf32> to vector<1x32xf32>
    %396 = vector.broadcast %395 : vector<1x32xf32> to vector<16x32xf32>
    %397 = arith.mulf %394, %396 : vector<16x32xf32>
    %398 = vector.shape_cast %378 : vector<32xf32> to vector<1x32xf32>
    %399 = vector.broadcast %398 : vector<1x32xf32> to vector<16x32xf32>
    %400 = arith.addf %397, %399 : vector<16x32xf32>
    %c0_108 = arith.constant 0 : index
    %c0_109 = arith.constant 0 : index
    %401 = vector.load %arg16[%c0_108, %c0_109] : memref<16x32xf32, #tpu.memory_space<vmem>>, vector<16x32xf32>
    tpu.vector_store %arg16[%c0_108, %c0_109], %400 {strides = array<i32>} : memref<16x32xf32, #tpu.memory_space<vmem>>, vector<16x32xf32>,
    return
  }
  func.func @transform_0(%arg0: i32) -> (i32, i32) {
    %c0_i32 = arith.constant 0 : i32
    %c0_i32_0 = arith.constant 0 : i32
    %c0_i32_1 = arith.constant 0 : i32
    return %c0_i32, %c0_i32_0 : i32, i32
  }
  func.func @transform_1(%arg0: i32) -> (i32, i32) {
    %c0_i32 = arith.constant 0 : i32
    %c0_i32_0 = arith.constant 0 : i32
    %c0_i32_1 = arith.constant 0 : i32
    return %c0_i32, %c0_i32_0 : i32, i32
  }
  func.func @transform_2(%arg0: i32) -> (i32, i32) {
    %c0_i32 = arith.constant 0 : i32
    %c0_i32_0 = arith.constant 0 : i32
    %c0_i32_1 = arith.constant 0 : i32
    return %c0_i32, %c0_i32_0 : i32, i32
  }
  func.func @transform_3(%arg0: i32) -> (i32, i32, i32) {
    %c0_i32 = arith.constant 0 : i32
    %c0_i32_0 = arith.constant 0 : i32
    %c0_i32_1 = arith.constant 0 : i32
    %c0_i32_2 = arith.constant 0 : i32
    return %c0_i32, %c0_i32_0, %c0_i32_1 : i32, i32, i32
  }
  func.func @transform_4(%arg0: i32) -> (i32, i32) {
    %c0_i32 = arith.constant 0 : i32
    %c0_i32_0 = arith.constant 0 : i32
    %c0_i32_1 = arith.constant 0 : i32
    return %c0_i32, %c0_i32_0 : i32, i32
  }
  func.func @transform_5(%arg0: i32) -> (i32, i32, i32) {
    %c0_i32 = arith.constant 0 : i32
    %c0_i32_0 = arith.constant 0 : i32
    %c0_i32_1 = arith.constant 0 : i32
    %c0_i32_2 = arith.constant 0 : i32
    return %c0_i32, %c0_i32_0, %c0_i32_1 : i32, i32, i32
  }
  func.func @transform_6(%arg0: i32) -> (i32, i32) {
    %c0_i32 = arith.constant 0 : i32
    %c0_i32_0 = arith.constant 0 : i32
    %c0_i32_1 = arith.constant 0 : i32
    return %c0_i32, %c0_i32_0 : i32, i32
  }
  func.func @transform_7(%arg0: i32) -> (i32, i32) {
    %c0_i32 = arith.constant 0 : i32
    %c0_i32_0 = arith.constant 0 : i32
    %c0_i32_1 = arith.constant 0 : i32
    return %c0_i32, %c0_i32_0 : i32, i32
  }
  func.func @transform_8(%arg0: i32) -> (i32, i32) {
    %c0_i32 = arith.constant 0 : i32
    %c0_i32_0 = arith.constant 0 : i32
    %c0_i32_1 = arith.constant 0 : i32
    return %c0_i32, %c0_i32_0 : i32, i32
  }
  func.func @transform_9(%arg0: i32) -> (i32, i32, i32) {
    %c0_i32 = arith.constant 0 : i32
    %c0_i32_0 = arith.constant 0 : i32
    %c0_i32_1 = arith.constant 0 : i32
    %c0_i32_2 = arith.constant 0 : i32
    return %c0_i32, %c0_i32_0, %c0_i32_1 : i32, i32, i32
  }
  func.func @transform_10(%arg0: i32) -> (i32, i32) {
    %c0_i32 = arith.constant 0 : i32
    %c0_i32_0 = arith.constant 0 : i32
    %c0_i32_1 = arith.constant 0 : i32
    return %c0_i32, %c0_i32_0 : i32, i32
  }
  func.func @transform_11(%arg0: i32) -> (i32, i32, i32) {
    %c0_i32 = arith.constant 0 : i32
    %c0_i32_0 = arith.constant 0 : i32
    %c0_i32_1 = arith.constant 0 : i32
    %c0_i32_2 = arith.constant 0 : i32
    return %c0_i32, %c0_i32_0, %c0_i32_1 : i32, i32, i32
  }
  func.func @transform_12(%arg0: i32) -> (i32, i32) {
    %c0_i32 = arith.constant 0 : i32
    %c0_i32_0 = arith.constant 0 : i32
    %c0_i32_1 = arith.constant 0 : i32
    return %c0_i32, %c0_i32_0 : i32, i32
  }
  func.func @transform_13(%arg0: i32) -> (i32, i32) {
    %c0_i32 = arith.constant 0 : i32
    %c0_i32_0 = arith.constant 0 : i32
    %c0_i32_1 = arith.constant 0 : i32
    return %c0_i32, %c0_i32_0 : i32, i32
  }
  func.func @transform_14(%arg0: i32) -> (i32, i32) {
    %c0_i32 = arith.constant 0 : i32
    %c0_i32_0 = arith.constant 0 : i32
    %c0_i32_1 = arith.constant 0 : i32
    return %c0_i32, %c0_i32_0 : i32, i32
  }
  func.func @transform_15(%arg0: i32) -> (i32, i32) {
    %c0_i32 = arith.constant 0 : i32
    %c0_i32_0 = arith.constant 0 : i32
    %c0_i32_1 = arith.constant 0 : i32
    return %c0_i32, %c0_i32_0 : i32, i32
  }
}

</mosaic_0001>

<llo_original>
// kernel: tpu_custom_call.1
$region0: #{tpu_custom_call.1}
  #allocation0 [shape = 'u32[]', space=smem, size = 0x4, offset = 0x4, fixed_abs, tag = 'smem constant byte address 0x4 - core index']
  #allocation1 [shape = 'u32[144,128]{1,0:T(1,128)}', space=vmem, size = 0x12000, scoped, tag = 'internal scratch']
  %s0 = inlined_call_operand.hbm [shape: f32[16,32], index: 0, kind: input, shape index: {}]
  %s1 = inlined_call_operand.vmem [shape: f32[2,32], index: 1, kind: input, shape index: {}]
  %s2 = inlined_call_operand.vmem [shape: f32[2,32], index: 2, kind: input, shape index: {}]
  %s3 = inlined_call_operand.vmem [shape: bf16[2,32,96], index: 3, kind: input, shape index: {}]
  %s4 = inlined_call_operand.vmem [shape: f32[2,96], index: 4, kind: input, shape index: {}]
  %s5 = inlined_call_operand.vmem [shape: bf16[2,32,32], index: 5, kind: input, shape index: {}]
  %s6 = inlined_call_operand.vmem [shape: f32[2,32], index: 6, kind: input, shape index: {}]
  %s7 = inlined_call_operand.hbm [shape: f32[2,32], index: 7, kind: input, shape index: {}]
  %s8 = inlined_call_operand.hbm [shape: f32[2,32], index: 8, kind: input, shape index: {}]
  %s9 = inlined_call_operand.vmem [shape: bf16[2,32,64], index: 9, kind: input, shape index: {}]
  %s10 = inlined_call_operand.hbm [shape: f32[2,64], index: 10, kind: input, shape index: {}]
  %s11 = inlined_call_operand.vmem [shape: bf16[2,64,32], index: 11, kind: input, shape index: {}]
  %s12 = inlined_call_operand.vmem [shape: f32[2,32], index: 12, kind: input, shape index: {}]
  %s13 = inlined_call_operand.vmem [shape: f32[1,32], index: 13, kind: input, shape index: {}]
  %s14 = inlined_call_operand.vmem [shape: f32[1,32], index: 14, kind: input, shape index: {}]
  %s15 = inlined_call_operand.hbm [shape: f32[16,32], index: 15, kind: output, shape index: {}]
  %s16 = sld [smem:[#allocation0]]
  $region86: #{tpu_custom_call.1} parent=0
    _
  %s18 = ssub.s32 1, %s16
  %s19 = scalar_select 0, %s18, %s16
  $region1: #{tpu_custom_call.1} parent=0
    #allocation2 [shape = 'u8[8192]{0}', space=vmem, size = 0x2000, scoped, tag = 'input window, operand 0, single buffered']
    #allocation3 [shape = 's32[1]{0}', space=sflag, size = 0x4, scoped, tag = 'scoped memory for tpu_custom_call.1']
    #allocation4 [shape = 's32[1]{0}', space=sflag, size = 0x4, scoped, tag = 'scoped memory for tpu_custom_call.1']
    #allocation5 [shape = 'u8[1024]{0}', space=vmem, size = 0x400, scoped, tag = 'input window, operand 7, single buffered']
    #allocation6 [shape = 's32[1]{0}', space=sflag, size = 0x4, scoped, tag = 'scoped memory for tpu_custom_call.1']
    #allocation7 [shape = 'u8[1024]{0}', space=vmem, size = 0x400, scoped, tag = 'input window, operand 8, single buffered']
    #allocation8 [shape = 'u8[1024]{0}', space=vmem, size = 0x400, scoped, tag = 'input window, operand 10, single buffered']
    #allocation9 [shape = 's32[1]{0}', space=sflag, size = 0x4, scoped, tag = 'scoped memory for tpu_custom_call.1']
    #allocation10 [shape = 'u8[8192]{0}', space=vmem, size = 0x2000, scoped, tag = 'output window, operand 0, single buffered']
    %20 = vsyncpa [#allocation3], 0
    %21 = vsyncpa [#allocation6], 0
    %22 = vsyncpa [#allocation9], 0
    %23 = vsyncpa [#allocation4], 0
    // Predicated region
    $region2: #{tpu_custom_call.1} parent=1 // pred_check
      _
    $region3: #{tpu_custom_call.1} parent=1 // pred_check_branch
      %25 = sbr.rel (0) target = $region5
    $region4: #{tpu_custom_call.1} parent=1 // pred_region
      %s27 = ssub.s32 256, 256
      %28 = vsyncadd [#allocation3], %s27
      %s29 = sshll.u32 [#allocation2], 4
      %s30 = int_to_ptr.vmem [resolvable:$true] %s29
      %35 = dma.hbm_to_vmem [thread:$0]  %s0, 256, %s30, [#allocation3], 128, 128, 8
    $region5: #{tpu_custom_call.1} parent=1 // pred_fallthru
      _
    // Predicated region
    $region6: #{tpu_custom_call.1} parent=1 // pred_check
      _
    $region7: #{tpu_custom_call.1} parent=1 // pred_check_branch
      %37 = sbr.rel (0) target = $region9
    $region8: #{tpu_custom_call.1} parent=1 // pred_region
      _
    $region9: #{tpu_custom_call.1} parent=1 // pred_fallthru
      _
    // Predicated region
    $region10: #{tpu_custom_call.1} parent=1 // pred_check
      _
    $region11: #{tpu_custom_call.1} parent=1 // pred_check_branch
      %39 = sbr.rel (0) target = $region13
    $region12: #{tpu_custom_call.1} parent=1 // pred_region
      _
    $region13: #{tpu_custom_call.1} parent=1 // pred_fallthru
      _
    // Predicated region
    $region14: #{tpu_custom_call.1} parent=1 // pred_check
      _
    $region15: #{tpu_custom_call.1} parent=1 // pred_check_branch
      %41 = sbr.rel (0) target = $region17
    $region16: #{tpu_custom_call.1} parent=1 // pred_region
      _
    $region17: #{tpu_custom_call.1} parent=1 // pred_fallthru
      _
    // Predicated region
    $region18: #{tpu_custom_call.1} parent=1 // pred_check
      _
    $region19: #{tpu_custom_call.1} parent=1 // pred_check_branch
      %43 = sbr.rel (0) target = $region21
    $region20: #{tpu_custom_call.1} parent=1 // pred_region
      _
    $region21: #{tpu_custom_call.1} parent=1 // pred_fallthru
      _
    // Predicated region
    $region22: #{tpu_custom_call.1} parent=1 // pred_check
      _
    $region23: #{tpu_custom_call.1} parent=1 // pred_check_branch
      %45 = sbr.rel (0) target = $region25
    $region24: #{tpu_custom_call.1} parent=1 // pred_region
      _
    $region25: #{tpu_custom_call.1} parent=1 // pred_fallthru
      _
    // Predicated region
    $region26: #{tpu_custom_call.1} parent=1 // pred_check
      _
    $region27: #{tpu_custom_call.1} parent=1 // pred_check_branch
      %47 = sbr.rel (0) target = $region29
    $region28: #{tpu_custom_call.1} parent=1 // pred_region
      _
    $region29: #{tpu_custom_call.1} parent=1 // pred_fallthru
      _
    // Predicated region
    $region30: #{tpu_custom_call.1} parent=1 // pred_check
      _
    $region31: #{tpu_custom_call.1} parent=1 // pred_check_branch
      %49 = sbr.rel (0) target = $region33
    $region32: #{tpu_custom_call.1} parent=1 // pred_region
      %s51 = ssub.s32 32, 32
      %52 = vsyncadd [#allocation6], %s51
      %s54 = sshll.u32 [#allocation5], 4
      %s55 = int_to_ptr.vmem [resolvable:$true] %s54
      %57 = dma.hbm_to_vmem [thread:$0]  %s7, 32, %s55, [#allocation6]
    $region33: #{tpu_custom_call.1} parent=1 // pred_fallthru
      _
    // Predicated region
    $region34: #{tpu_custom_call.1} parent=1 // pred_check
      _
    $region35: #{tpu_custom_call.1} parent=1 // pred_check_branch
      %59 = sbr.rel (0) target = $region37
    $region36: #{tpu_custom_call.1} parent=1 // pred_region
      %s61 = ssub.s32 32, 32
      %62 = vsyncadd [#allocation6], %s61
      %s64 = sshll.u32 [#allocation7], 4
      %s65 = int_to_ptr.vmem [resolvable:$true] %s64
      %67 = dma.hbm_to_vmem [thread:$0]  %s8, 32, %s65, [#allocation6]
    $region37: #{tpu_custom_call.1} parent=1 // pred_fallthru
      _
    // Predicated region
    $region38: #{tpu_custom_call.1} parent=1 // pred_check
      _
    $region39: #{tpu_custom_call.1} parent=1 // pred_check_branch
      %69 = sbr.rel (0) target = $region41
    $region40: #{tpu_custom_call.1} parent=1 // pred_region
      _
    $region41: #{tpu_custom_call.1} parent=1 // pred_fallthru
      _
    // Predicated region
    $region42: #{tpu_custom_call.1} parent=1 // pred_check
      _
    $region43: #{tpu_custom_call.1} parent=1 // pred_check_branch
      %71 = sbr.rel (0) target = $region45
    $region44: #{tpu_custom_call.1} parent=1 // pred_region
      %s73 = ssub.s32 32, 32
      %74 = vsyncadd [#allocation9], %s73
      %s76 = sshll.u32 [#allocation8], 4
      %s77 = int_to_ptr.vmem [resolvable:$true] %s76
      %79 = dma.hbm_to_vmem [thread:$0]  %s10, 32, %s77, [#allocation9]
    $region45: #{tpu_custom_call.1} parent=1 // pred_fallthru
      _
    // Predicated region
    $region46: #{tpu_custom_call.1} parent=1 // pred_check
      _
    $region47: #{tpu_custom_call.1} parent=1 // pred_check_branch
      %81 = sbr.rel (0) target = $region49
    $region48: #{tpu_custom_call.1} parent=1 // pred_region
      _
    $region49: #{tpu_custom_call.1} parent=1 // pred_fallthru
      _
    // Predicated region
    $region50: #{tpu_custom_call.1} parent=1 // pred_check
      _
    $region51: #{tpu_custom_call.1} parent=1 // pred_check_branch
      %83 = sbr.rel (0) target = $region53
    $region52: #{tpu_custom_call.1} parent=1 // pred_region
      _
    $region53: #{tpu_custom_call.1} parent=1 // pred_fallthru
      _
    // Predicated region
    $region54: #{tpu_custom_call.1} parent=1 // pred_check
      _
    $region55: #{tpu_custom_call.1} parent=1 // pred_check_branch
      %85 = sbr.rel (0) target = $region57
    $region56: #{tpu_custom_call.1} parent=1 // pred_region
      _
    $region57: #{tpu_custom_call.1} parent=1 // pred_fallthru
      _
    // Predicated region
    $region58: #{tpu_custom_call.1} parent=1 // pred_check
      _
    $region59: #{tpu_custom_call.1} parent=1 // pred_check_branch
      %87 = sbr.rel (0) target = $region61
    $region60: #{tpu_custom_call.1} parent=1 // pred_region
      _
    $region61: #{tpu_custom_call.1} parent=1 // pred_fallthru
      _
    // Predicated region
    $region62: #{tpu_custom_call.1} parent=1 // pred_check
      _
    $region63: #{tpu_custom_call.1} parent=1 // pred_check_branch
      %89 = sbr.rel (0) target = $region65
    $region64: #{tpu_custom_call.1} parent=1 // pred_region
      %90 = dma.done [#allocation3], 256
    $region65: #{tpu_custom_call.1} parent=1 // pred_fallthru
      _
    // Predicated region
    $region66: #{tpu_custom_call.1} parent=1 // pred_check
      _
    $region67: #{tpu_custom_call.1} parent=1 // pred_check_branch
      %92 = sbr.rel (0) target = $region69
    $region68: #{tpu_custom_call.1} parent=1 // pred_region
      %93 = dma.done [#allocation6], 32
    $region69: #{tpu_custom_call.1} parent=1 // pred_fallthru
      _
    // Predicated region
    $region70: #{tpu_custom_call.1} parent=1 // pred_check
      _
    $region71: #{tpu_custom_call.1} parent=1 // pred_check_branch
      %95 = sbr.rel (0) target = $region73
    $region72: #{tpu_custom_call.1} parent=1 // pred_region
      %96 = dma.done [#allocation6], 32
    $region73: #{tpu_custom_call.1} parent=1 // pred_fallthru
      _
    // Predicated region
    $region74: #{tpu_custom_call.1} parent=1 // pred_check
      _
    $region75: #{tpu_custom_call.1} parent=1 // pred_check_branch
      %98 = sbr.rel (0) target = $region77
    $region76: #{tpu_custom_call.1} parent=1 // pred_region
      %99 = dma.done [#allocation9], 32
    $region77: #{tpu_custom_call.1} parent=1 // pred_fallthru
      _
    %v101 = vld [vmem:[#allocation2] sm:$0xff]
    %v102 = vld [vmem:[#allocation2 + $0x8] sm:$0xff]
    %v103 = vld [vmem:[%s1] sm:$0x1]
    %v104 = vld [vmem:[%s2] sm:$0x1]
    %vm105 = vcmask 261120
    %v106 = vsel %vm105, %v101, 0.0
    %107 = vadd.xlane.f32.xlu0 %v106
    %v108 = vpop.xlane.xlu0 %107
    %v109 = vsel %vm105, %v102, 0.0
    %110 = vadd.xlane.f32.xlu0 %v109
    %v111 = vpop.xlane.xlu0 %110
    %v112 = vrcp.pop 32.0
    %v113 = vmul.f32 %v108, %v112
    %v114 = vmul.f32 %v111, %v112
    %v115 = vsub.f32 %v101, %v113
    %v116 = vsub.f32 %v102, %v114
    %v117 = vmul.f32 %v115, %v115
    %v118 = vmul.f32 %v116, %v116
    %v119 = vsel %vm105, %v117, 0.0
    %120 = vadd.xlane.f32.xlu0 %v119
    %v121 = vpop.xlane.xlu0 %120
    %v122 = vsel %vm105, %v118, 0.0
    %123 = vadd.xlane.f32.xlu0 %v122
    %v124 = vpop.xlane.xlu0 %123
    %v125 = vmul.f32 %v121, %v112
    %v126 = vmul.f32 %v124, %v112
    %v127 = vadd.f32 %v125, 1e-06
    %v128 = vadd.f32 %v126, 1e-06
    %v129 = vrsqrt.pop %v127
    %v130 = vrsqrt.pop %v128
    %v131 = vmul.f32 %v115, %v129
    %v132 = vmul.f32 %v116, %v130
    %v133 = vlaneseq
    %v134 = vshrl.u32 %v133, 7
    %v135 = vsub.s32 0, %v134
    %v136 = vrot.slane %v103, %v135
    %v137 = vmul.f32 %v131, %v136
    %v138 = vmul.f32 %v132, %v136
    %v139 = vlaneseq
    %v140 = vshrl.u32 %v139, 7
    %v141 = vsub.s32 0, %v140
    %v142 = vrot.slane %v104, %v141
    %v143 = vadd.f32 %v137, %v142
    %v144 = vadd.f32 %v138, %v142
    %v145 = vpack.c.bf16 %v144, %v143
    %v146 = vld [vmem:[%s3] sm:$0xf]
    %v147 = vld [vmem:[%s3 + $0x4] sm:$0xf]
    %v148 = vld [vmem:[%s3 + $0x8] sm:$0xf]
    %v149 = vld [vmem:[%s3 + $0xc] sm:$0xf]
    %v150 = vld [vmem:[%s4] sm:$0x1]
    %v151 = vlaneseq
    %v152 = vshrl.u32 %v151, 7
    %v153 = vsub.s32 0, %v152
    %v154 = vrot.slane %v150, %v153
    %v159 = vunpack.c.l.b16 %v146
    %v160 = vunpack.c.l.b16 %v147
    %v161 = vunpack.c.l.b16 %v148
    %v162 = vunpack.c.l.b16 %v149
    %v163 = vpack.c.b16 %v160, %v159
    %v164 = vpack.c.b16 %v162, %v161
    %v168 = vsel %vm105, %v145, 0
    %170 = vmatprep.subr.bf16.mxu0 0
    %171 = vmatpush1.bf16.msra.mxu0 %v163
    %172 = vmatprep.subr.bf16.mxu0 0
    %173 = vmatpush1.bf16.msra.mxu0 %v164
    %174 = vmatprep.subr.bf16.mxu0 0
    %175 = vmatpush1.bf16.msra.mxu0 0
    %176 = vmatprep.subr.bf16.mxu0 0
    %177 = vmatpush1.bf16.msra.mxu0 0
    %178 = vmatprep.subr.bf16.mxu0 0
    %179 = vmatpush1.bf16.msra.mxu0 0
    %180 = vmatprep.subr.bf16.mxu0 0
    %181 = vmatpush1.bf16.msra.mxu0 0
    %182 = vmatprep.subr.bf16.mxu0 0
    %183 = vmatpush1.bf16.msra.mxu0 0
    %184 = vmatprep.subr.bf16.mxu0 0
    %185 = vmatpush1.bf16.msra.mxu0 0
    %186 = vmatprep.subr.bf16.mxu0 0
    %187 = vmatpush1.bf16.msra.mxu0 0
    %188 = vmatprep.subr.bf16.mxu0 0
    %189 = vmatpush1.bf16.msra.mxu0 0
    %190 = vmatprep.subr.bf16.mxu0 0
    %191 = vmatpush1.bf16.msra.mxu0 0
    %192 = vmatprep.subr.bf16.mxu0 0
    %193 = vmatpush1.bf16.msra.mxu0 0
    %194 = vmatprep.subr.bf16.mxu0 0
    %195 = vmatpush1.bf16.msra.mxu0 0
    %196 = vmatprep.subr.bf16.mxu0 0
    %197 = vmatpush1.bf16.msra.mxu0 0
    %198 = vmatprep.subr.bf16.mxu0 0
    %199 = vmatpush1.bf16.msra.mxu0 0
    %200 = vmatprep.subr.bf16.mxu0 0
    %201 = vmatpush1.bf16.msra.mxu0 0
    %202 = vmatprep.mubr.bf16.mxu0 0
    %203 = vmatmul.mubr.bf16.gmra.mrb[0].mxu0 %v168
    %v204 = vpop.f32.mrb[0].mxu0
    %v205 = vadd.f32 %v154, %v204
    %v206 = vpop.f32.mrb[0].mxu0
    %v207 = vpop.f32.mrb[0].mxu0
    %v208 = vadd.f32 %v154, %v207
    %v209 = vpop.f32.mrb[0].mxu0
    %210 = vdwg.mxu0
    %v211 = vpack.c.bf16 %v208, %v205
    %213 = vrot.lane.b32.xlu0 %v211, 120
    %v214 = vpop.permute.xlu0 %213
    %215 = vrot.lane.b32.xlu0 %v211, 112
    %v216 = vpop.permute.xlu0 %215
    %217 = vrot.lane.b32.xlu0 %v211, 104
    %v218 = vpop.permute.xlu0 %217
    %v219 = vrot.slane %v211, 4
    %220 = vrot.lane.b32.xlu0 %v219, 120
    %v221 = vpop.permute.xlu0 %220
    %222 = vrot.lane.b32.xlu0 %v219, 112
    %v223 = vpop.permute.xlu0 %222
    %224 = vrot.lane.b32.xlu0 %v219, 104
    %v225 = vpop.permute.xlu0 %224
    %226 = vrot.lane.b32.xlu0 %v211, 96
    %v227 = vpop.permute.xlu0 %226
    %vm228 = vcmask 64512
    %v230 = vsel %vm228, %v211, 0
    %v233 = vsel %vm228, %v227, 0
    %235 = vmatprep.subr.bf16.mxu0 0
    %236 = vmatpush1.bf16.xpose.msra.mxu0 %v233
    %237 = vmatprep.subr.bf16.mxu0 0
    %238 = vmatpush1.bf16.xpose.msra.mxu0 0
    %239 = vmatprep.subr.bf16.mxu0 0
    %240 = vmatpush1.bf16.xpose.msra.mxu0 0
    %241 = vmatprep.subr.bf16.mxu0 0
    %242 = vmatpush1.bf16.xpose.msra.mxu0 0
    %243 = vmatprep.subr.bf16.mxu0 0
    %244 = vmatpush1.bf16.xpose.msra.mxu0 0
    %245 = vmatprep.subr.bf16.mxu0 0
    %246 = vmatpush1.bf16.xpose.msra.mxu0 0
    %247 = vmatprep.subr.bf16.mxu0 0
    %248 = vmatpush1.bf16.xpose.msra.mxu0 0
    %249 = vmatprep.subr.bf16.mxu0 0
    %250 = vmatpush1.bf16.xpose.msra.mxu0 0
    %251 = vmatprep.subr.bf16.mxu0 0
    %252 = vmatpush1.bf16.xpose.msra.mxu0 0
    %253 = vmatprep.subr.bf16.mxu0 0
    %254 = vmatpush1.bf16.xpose.msra.mxu0 0
    %255 = vmatprep.subr.bf16.mxu0 0
    %256 = vmatpush1.bf16.xpose.msra.mxu0 0
    %257 = vmatprep.subr.bf16.mxu0 0
    %258 = vmatpush1.bf16.xpose.msra.mxu0 0
    %259 = vmatprep.subr.bf16.mxu0 0
    %260 = vmatpush1.bf16.xpose.msra.mxu0 0
    %261 = vmatprep.subr.bf16.mxu0 0
    %262 = vmatpush1.bf16.xpose.msra.mxu0 0
    %263 = vmatprep.subr.bf16.mxu0 0
    %264 = vmatpush1.bf16.xpose.msra.mxu0 0
    %265 = vmatprep.subr.bf16.mxu0 0
    %266 = vmatpush1.bf16.xpose.msra.mxu0 0
    %267 = vmatprep.mubr.bf16.mxu0 0
    %268 = vmatmul.mubr.bf16.gmra.mrb[0].mxu0 %v230
    %v269 = vpop.f32.mrb[0].mxu0
    %v270 = vadd.f32 0.0, %v269
    %v271 = vpop.f32.mrb[0].mxu0
    %v272 = vpop.f32.mrb[0].mxu0
    %v273 = vpop.f32.mrb[0].mxu0
    %274 = vdwg.mxu0
    %275 = vrot.lane.b32.xlu0 %v214, 96
    %v276 = vpop.permute.xlu0 %275
    %v278 = vsel %vm228, %v214, 0
    %v281 = vsel %vm228, %v276, 0
    %283 = vmatprep.subr.bf16.mxu0 0
    %284 = vmatpush1.bf16.xpose.msra.mxu0 %v281
    %285 = vmatprep.subr.bf16.mxu0 0
    %286 = vmatpush1.bf16.xpose.msra.mxu0 0
    %287 = vmatprep.subr.bf16.mxu0 0
    %288 = vmatpush1.bf16.xpose.msra.mxu0 0
    %289 = vmatprep.subr.bf16.mxu0 0
    %290 = vmatpush1.bf16.xpose.msra.mxu0 0
    %291 = vmatprep.subr.bf16.mxu0 0
    %292 = vmatpush1.bf16.xpose.msra.mxu0 0
    %293 = vmatprep.subr.bf16.mxu0 0
    %294 = vmatpush1.bf16.xpose.msra.mxu0 0
    %295 = vmatprep.subr.bf16.mxu0 0
    %296 = vmatpush1.bf16.xpose.msra.mxu0 0
    %297 = vmatprep.subr.bf16.mxu0 0
    %298 = vmatpush1.bf16.xpose.msra.mxu0 0
    %299 = vmatprep.subr.bf16.mxu0 0
    %300 = vmatpush1.bf16.xpose.msra.mxu0 0
    %301 = vmatprep.subr.bf16.mxu0 0
    %302 = vmatpush1.bf16.xpose.msra.mxu0 0
    %303 = vmatprep.subr.bf16.mxu0 0
    %304 = vmatpush1.bf16.xpose.msra.mxu0 0
    %305 = vmatprep.subr.bf16.mxu0 0
    %306 = vmatpush1.bf16.xpose.msra.mxu0 0
    %307 = vmatprep.subr.bf16.mxu0 0
    %308 = vmatpush1.bf16.xpose.msra.mxu0 0
    %309 = vmatprep.subr.bf16.mxu0 0
    %310 = vmatpush1.bf16.xpose.msra.mxu0 0
    %311 = vmatprep.subr.bf16.mxu0 0
    %312 = vmatpush1.bf16.xpose.msra.mxu0 0
    %313 = vmatprep.subr.bf16.mxu0 0
    %314 = vmatpush1.bf16.xpose.msra.mxu0 0
    %315 = vmatprep.mubr.bf16.mxu0 0
    %316 = vmatmul.mubr.bf16.gmra.mrb[0].mxu0 %v278
    %v317 = vpop.f32.mrb[0].mxu0
    %v318 = vadd.f32 0.0, %v317
    %v319 = vpop.f32.mrb[0].mxu0
    %v320 = vpop.f32.mrb[0].mxu0
    %v321 = vpop.f32.mrb[0].mxu0
    %322 = vdwg.mxu0
    %323 = vrot.lane.b32.xlu0 %v216, 96
    %v324 = vpop.permute.xlu0 %323
    %v326 = vsel %vm228, %v216, 0
    %v329 = vsel %vm228, %v324, 0
    %331 = vmatprep.subr.bf16.mxu0 0
    %332 = vmatpush1.bf16.xpose.msra.mxu0 %v329
    %333 = vmatprep.subr.bf16.mxu0 0
    %334 = vmatpush1.bf16.xpose.msra.mxu0 0
    %335 = vmatprep.subr.bf16.mxu0 0
    %336 = vmatpush1.bf16.xpose.msra.mxu0 0
    %337 = vmatprep.subr.bf16.mxu0 0
    %338 = vmatpush1.bf16.xpose.msra.mxu0 0
    %339 = vmatprep.subr.bf16.mxu0 0
    %340 = vmatpush1.bf16.xpose.msra.mxu0 0
    %341 = vmatprep.subr.bf16.mxu0 0
    %342 = vmatpush1.bf16.xpose.msra.mxu0 0
    %343 = vmatprep.subr.bf16.mxu0 0
    %344 = vmatpush1.bf16.xpose.msra.mxu0 0
    %345 = vmatprep.subr.bf16.mxu0 0
    %346 = vmatpush1.bf16.xpose.msra.mxu0 0
    %347 = vmatprep.subr.bf16.mxu0 0
    %348 = vmatpush1.bf16.xpose.msra.mxu0 0
    %349 = vmatprep.subr.bf16.mxu0 0
    %350 = vmatpush1.bf16.xpose.msra.mxu0 0
    %351 = vmatprep.subr.bf16.mxu0 0
    %352 = vmatpush1.bf16.xpose.msra.mxu0 0
    %353 = vmatprep.subr.bf16.mxu0 0
    %354 = vmatpush1.bf16.xpose.msra.mxu0 0
    %355 = vmatprep.subr.bf16.mxu0 0
    %356 = vmatpush1.bf16.xpose.msra.mxu0 0
    %357 = vmatprep.subr.bf16.mxu0 0
    %358 = vmatpush1.bf16.xpose.msra.mxu0 0
    %359 = vmatprep.subr.bf16.mxu0 0
    %360 = vmatpush1.bf16.xpose.msra.mxu0 0
    %361 = vmatprep.subr.bf16.mxu0 0
    %362 = vmatpush1.bf16.xpose.msra.mxu0 0
    %363 = vmatprep.mubr.bf16.mxu0 0
    %364 = vmatmul.mubr.bf16.gmra.mrb[0].mxu0 %v326
    %v365 = vpop.f32.mrb[0].mxu0
    %v366 = vadd.f32 0.0, %v365
    %v367 = vpop.f32.mrb[0].mxu0
    %v368 = vpop.f32.mrb[0].mxu0
    %v369 = vpop.f32.mrb[0].mxu0
    %370 = vdwg.mxu0
    %371 = vrot.lane.b32.xlu0 %v218, 96
    %v372 = vpop.permute.xlu0 %371
    %v374 = vsel %vm228, %v218, 0
    %v377 = vsel %vm228, %v372, 0
    %379 = vmatprep.subr.bf16.mxu0 0
    %380 = vmatpush1.bf16.xpose.msra.mxu0 %v377
    %381 = vmatprep.subr.bf16.mxu0 0
    %382 = vmatpush1.bf16.xpose.msra.mxu0 0
    %383 = vmatprep.subr.bf16.mxu0 0
    %384 = vmatpush1.bf16.xpose.msra.mxu0 0
    %385 = vmatprep.subr.bf16.mxu0 0
    %386 = vmatpush1.bf16.xpose.msra.mxu0 0
    %387 = vmatprep.subr.bf16.mxu0 0
    %388 = vmatpush1.bf16.xpose.msra.mxu0 0
    %389 = vmatprep.subr.bf16.mxu0 0
    %390 = vmatpush1.bf16.xpose.msra.mxu0 0
    %391 = vmatprep.subr.bf16.mxu0 0
    %392 = vmatpush1.bf16.xpose.msra.mxu0 0
    %393 = vmatprep.subr.bf16.mxu0 0
    %394 = vmatpush1.bf16.xpose.msra.mxu0 0
    %395 = vmatprep.subr.bf16.mxu0 0
    %396 = vmatpush1.bf16.xpose.msra.mxu0 0
    %397 = vmatprep.subr.bf16.mxu0 0
    %398 = vmatpush1.bf16.xpose.msra.mxu0 0
    %399 = vmatprep.subr.bf16.mxu0 0
    %400 = vmatpush1.bf16.xpose.msra.mxu0 0
    %401 = vmatprep.subr.bf16.mxu0 0
    %402 = vmatpush1.bf16.xpose.msra.mxu0 0
    %403 = vmatprep.subr.bf16.mxu0 0
    %404 = vmatpush1.bf16.xpose.msra.mxu0 0
    %405 = vmatprep.subr.bf16.mxu0 0
    %406 = vmatpush1.bf16.xpose.msra.mxu0 0
    %407 = vmatprep.subr.bf16.mxu0 0
    %408 = vmatpush1.bf16.xpose.msra.mxu0 0
    %409 = vmatprep.subr.bf16.mxu0 0
    %410 = vmatpush1.bf16.xpose.msra.mxu0 0
    %411 = vmatprep.mubr.bf16.mxu0 0
    %412 = vmatmul.mubr.bf16.gmra.mrb[0].mxu0 %v374
    %v413 = vpop.f32.mrb[0].mxu0
    %v414 = vadd.f32 0.0, %v413
    %v415 = vpop.f32.mrb[0].mxu0
    %v416 = vpop.f32.mrb[0].mxu0
    %v417 = vpop.f32.mrb[0].mxu0
    %418 = vdwg.mxu0
    %419 = vrot.lane.b32.xlu0 %v219, 96
    %v420 = vpop.permute.xlu0 %419
    %v422 = vsel %vm228, %v219, 0
    %v425 = vsel %vm228, %v420, 0
    %427 = vmatprep.subr.bf16.mxu0 0
    %428 = vmatpush1.bf16.xpose.msra.mxu0 %v425
    %429 = vmatprep.subr.bf16.mxu0 0
    %430 = vmatpush1.bf16.xpose.msra.mxu0 0
    %431 = vmatprep.subr.bf16.mxu0 0
    %432 = vmatpush1.bf16.xpose.msra.mxu0 0
    %433 = vmatprep.subr.bf16.mxu0 0
    %434 = vmatpush1.bf16.xpose.msra.mxu0 0
    %435 = vmatprep.subr.bf16.mxu0 0
    %436 = vmatpush1.bf16.xpose.msra.mxu0 0
    %437 = vmatprep.subr.bf16.mxu0 0
    %438 = vmatpush1.bf16.xpose.msra.mxu0 0
    %439 = vmatprep.subr.bf16.mxu0 0
    %440 = vmatpush1.bf16.xpose.msra.mxu0 0
    %441 = vmatprep.subr.bf16.mxu0 0
    %442 = vmatpush1.bf16.xpose.msra.mxu0 0
    %443 = vmatprep.subr.bf16.mxu0 0
    %444 = vmatpush1.bf16.xpose.msra.mxu0 0
    %445 = vmatprep.subr.bf16.mxu0 0
    %446 = vmatpush1.bf16.xpose.msra.mxu0 0
    %447 = vmatprep.subr.bf16.mxu0 0
    %448 = vmatpush1.bf16.xpose.msra.mxu0 0
    %449 = vmatprep.subr.bf16.mxu0 0
    %450 = vmatpush1.bf16.xpose.msra.mxu0 0
    %451 = vmatprep.subr.bf16.mxu0 0
    %452 = vmatpush1.bf16.xpose.msra.mxu0 0
    %453 = vmatprep.subr.bf16.mxu0 0
    %454 = vmatpush1.bf16.xpose.msra.mxu0 0
    %455 = vmatprep.subr.bf16.mxu0 0
    %456 = vmatpush1.bf16.xpose.msra.mxu0 0
    %457 = vmatprep.subr.bf16.mxu0 0
    %458 = vmatpush1.bf16.xpose.msra.mxu0 0
    %459 = vmatprep.mubr.bf16.mxu0 0
    %460 = vmatmul.mubr.bf16.gmra.mrb[0].mxu0 %v422
    %v461 = vpop.f32.mrb[0].mxu0
    %v462 = vadd.f32 0.0, %v461
    %v463 = vpop.f32.mrb[0].mxu0
    %v464 = vpop.f32.mrb[0].mxu0
    %v465 = vpop.f32.mrb[0].mxu0
    %466 = vdwg.mxu0
    %467 = vrot.lane.b32.xlu0 %v221, 96
    %v468 = vpop.permute.xlu0 %467
    %v470 = vsel %vm228, %v221, 0
    %v473 = vsel %vm228, %v468, 0
    %475 = vmatprep.subr.bf16.mxu0 0
    %476 = vmatpush1.bf16.xpose.msra.mxu0 %v473
    %477 = vmatprep.subr.bf16.mxu0 0
    %478 = vmatpush1.bf16.xpose.msra.mxu0 0
    %479 = vmatprep.subr.bf16.mxu0 0
    %480 = vmatpush1.bf16.xpose.msra.mxu0 0
    %481 = vmatprep.subr.bf16.mxu0 0
    %482 = vmatpush1.bf16.xpose.msra.mxu0 0
    %483 = vmatprep.subr.bf16.mxu0 0
    %484 = vmatpush1.bf16.xpose.msra.mxu0 0
    %485 = vmatprep.subr.bf16.mxu0 0
    %486 = vmatpush1.bf16.xpose.msra.mxu0 0
    %487 = vmatprep.subr.bf16.mxu0 0
    %488 = vmatpush1.bf16.xpose.msra.mxu0 0
    %489 = vmatprep.subr.bf16.mxu0 0
    %490 = vmatpush1.bf16.xpose.msra.mxu0 0
    %491 = vmatprep.subr.bf16.mxu0 0
    %492 = vmatpush1.bf16.xpose.msra.mxu0 0
    %493 = vmatprep.subr.bf16.mxu0 0
    %494 = vmatpush1.bf16.xpose.msra.mxu0 0
    %495 = vmatprep.subr.bf16.mxu0 0
    %496 = vmatpush1.bf16.xpose.msra.mxu0 0
    %497 = vmatprep.subr.bf16.mxu0 0
    %498 = vmatpush1.bf16.xpose.msra.mxu0 0
    %499 = vmatprep.subr.bf16.mxu0 0
    %500 = vmatpush1.bf16.xpose.msra.mxu0 0
    %501 = vmatprep.subr.bf16.mxu0 0
    %502 = vmatpush1.bf16.xpose.msra.mxu0 0
    %503 = vmatprep.subr.bf16.mxu0 0
    %504 = vmatpush1.bf16.xpose.msra.mxu0 0
    %505 = vmatprep.subr.bf16.mxu0 0
    %506 = vmatpush1.bf16.xpose.msra.mxu0 0
    %507 = vmatprep.mubr.bf16.mxu0 0
    %508 = vmatmul.mubr.bf16.gmra.mrb[0].mxu0 %v470
    %v509 = vpop.f32.mrb[0].mxu0
    %v510 = vadd.f32 0.0, %v509
    %v511 = vpop.f32.mrb[0].mxu0
    %v512 = vpop.f32.mrb[0].mxu0
    %v513 = vpop.f32.mrb[0].mxu0
    %514 = vdwg.mxu0
    %515 = vrot.lane.b32.xlu0 %v223, 96
    %v516 = vpop.permute.xlu0 %515
    %v518 = vsel %vm228, %v223, 0
    %v521 = vsel %vm228, %v516, 0
    %523 = vmatprep.subr.bf16.mxu0 0
    %524 = vmatpush1.bf16.xpose.msra.mxu0 %v521
    %525 = vmatprep.subr.bf16.mxu0 0
    %526 = vmatpush1.bf16.xpose.msra.mxu0 0
    %527 = vmatprep.subr.bf16.mxu0 0
    %528 = vmatpush1.bf16.xpose.msra.mxu0 0
    %529 = vmatprep.subr.bf16.mxu0 0
    %530 = vmatpush1.bf16.xpose.msra.mxu0 0
    %531 = vmatprep.subr.bf16.mxu0 0
    %532 = vmatpush1.bf16.xpose.msra.mxu0 0
    %533 = vmatprep.subr.bf16.mxu0 0
    %534 = vmatpush1.bf16.xpose.msra.mxu0 0
    %535 = vmatprep.subr.bf16.mxu0 0
    %536 = vmatpush1.bf16.xpose.msra.mxu0 0
    %537 = vmatprep.subr.bf16.mxu0 0
    %538 = vmatpush1.bf16.xpose.msra.mxu0 0
    %539 = vmatprep.subr.bf16.mxu0 0
    %540 = vmatpush1.bf16.xpose.msra.mxu0 0
    %541 = vmatprep.subr.bf16.mxu0 0
    %542 = vmatpush1.bf16.xpose.msra.mxu0 0
    %543 = vmatprep.subr.bf16.mxu0 0
    %544 = vmatpush1.bf16.xpose.msra.mxu0 0
    %545 = vmatprep.subr.bf16.mxu0 0
    %546 = vmatpush1.bf16.xpose.msra.mxu0 0
    %547 = vmatprep.subr.bf16.mxu0 0
    %548 = vmatpush1.bf16.xpose.msra.mxu0 0
    %549 = vmatprep.subr.bf16.mxu0 0
    %550 = vmatpush1.bf16.xpose.msra.mxu0 0
    %551 = vmatprep.subr.bf16.mxu0 0
    %552 = vmatpush1.bf16.xpose.msra.mxu0 0
    %553 = vmatprep.subr.bf16.mxu0 0
    %554 = vmatpush1.bf16.xpose.msra.mxu0 0
    %555 = vmatprep.mubr.bf16.mxu0 0
    %556 = vmatmul.mubr.bf16.gmra.mrb[0].mxu0 %v518
    %v557 = vpop.f32.mrb[0].mxu0
    %v558 = vadd.f32 0.0, %v557
    %v559 = vpop.f32.mrb[0].mxu0
    %v560 = vpop.f32.mrb[0].mxu0
    %v561 = vpop.f32.mrb[0].mxu0
    %562 = vdwg.mxu0
    %563 = vrot.lane.b32.xlu0 %v225, 96
    %v564 = vpop.permute.xlu0 %563
    %v566 = vsel %vm228, %v225, 0
    %v569 = vsel %vm228, %v564, 0
    %571 = vmatprep.subr.bf16.mxu0 0
    %572 = vmatpush1.bf16.xpose.msra.mxu0 %v569
    %573 = vmatprep.subr.bf16.mxu0 0
    %574 = vmatpush1.bf16.xpose.msra.mxu0 0
    %575 = vmatprep.subr.bf16.mxu0 0
    %576 = vmatpush1.bf16.xpose.msra.mxu0 0
    %577 = vmatprep.subr.bf16.mxu0 0
    %578 = vmatpush1.bf16.xpose.msra.mxu0 0
    %579 = vmatprep.subr.bf16.mxu0 0
    %580 = vmatpush1.bf16.xpose.msra.mxu0 0
    %581 = vmatprep.subr.bf16.mxu0 0
    %582 = vmatpush1.bf16.xpose.msra.mxu0 0
    %583 = vmatprep.subr.bf16.mxu0 0
    %584 = vmatpush1.bf16.xpose.msra.mxu0 0
    %585 = vmatprep.subr.bf16.mxu0 0
    %586 = vmatpush1.bf16.xpose.msra.mxu0 0
    %587 = vmatprep.subr.bf16.mxu0 0
    %588 = vmatpush1.bf16.xpose.msra.mxu0 0
    %589 = vmatprep.subr.bf16.mxu0 0
    %590 = vmatpush1.bf16.xpose.msra.mxu0 0
    %591 = vmatprep.subr.bf16.mxu0 0
    %592 = vmatpush1.bf16.xpose.msra.mxu0 0
    %593 = vmatprep.subr.bf16.mxu0 0
    %594 = vmatpush1.bf16.xpose.msra.mxu0 0
    %595 = vmatprep.subr.bf16.mxu0 0
    %596 = vmatpush1.bf16.xpose.msra.mxu0 0
    %597 = vmatprep.subr.bf16.mxu0 0
    %598 = vmatpush1.bf16.xpose.msra.mxu0 0
    %599 = vmatprep.subr.bf16.mxu0 0
    %600 = vmatpush1.bf16.xpose.msra.mxu0 0
    %601 = vmatprep.subr.bf16.mxu0 0
    %602 = vmatpush1.bf16.xpose.msra.mxu0 0
    %603 = vmatprep.mubr.bf16.mxu0 0
    %604 = vmatmul.mubr.bf16.gmra.mrb[0].mxu0 %v566
    %v605 = vpop.f32.mrb[0].mxu0
    %v606 = vadd.f32 0.0, %v605
    %v607 = vpop.f32.mrb[0].mxu0
    %v608 = vpop.f32.mrb[0].mxu0
    %v609 = vpop.f32.mrb[0].mxu0
    %610 = vdwg.mxu0
    %v611 = vsel %vm228, %v270, -inf
    %612 = vmax.xlane.f32.xlu0 %v611
    %v613 = vpop.xlane.xlu0 %612
    %v614 = vsel %vm228, %v318, -inf
    %615 = vmax.xlane.f32.xlu0 %v614
    %v616 = vpop.xlane.xlu0 %615
    %v617 = vsel %vm228, %v366, -inf
    %618 = vmax.xlane.f32.xlu0 %v617
    %v619 = vpop.xlane.xlu0 %618
    %v620 = vsel %vm228, %v414, -inf
    %621 = vmax.xlane.f32.xlu0 %v620
    %v622 = vpop.xlane.xlu0 %621
    %v623 = vsel %vm228, %v462, -inf
    %624 = vmax.xlane.f32.xlu0 %v623
    %v625 = vpop.xlane.xlu0 %624
    %v626 = vsel %vm228, %v510, -inf
    %627 = vmax.xlane.f32.xlu0 %v626
    %v628 = vpop.xlane.xlu0 %627
    %v629 = vsel %vm228, %v558, -inf
    %630 = vmax.xlane.f32.xlu0 %v629
    %v631 = vpop.xlane.xlu0 %630
    %v632 = vsel %vm228, %v606, -inf
    %633 = vmax.xlane.f32.xlu0 %v632
    %v634 = vpop.xlane.xlu0 %633
    %v635 = vsub.f32 %v270, %v613
    %v636 = vsub.f32 %v318, %v616
    %v637 = vsub.f32 %v366, %v619
    %v638 = vsub.f32 %v414, %v622
    %v639 = vsub.f32 %v462, %v625
    %v640 = vsub.f32 %v510, %v628
    %v641 = vsub.f32 %v558, %v631
    %v642 = vsub.f32 %v606, %v634
    %v643 = vmul.f32 %v635, 1.442695
    %v644 = vpow.pop %v643
    %v645 = vmul.f32 %v636, 1.442695
    %v646 = vpow.pop %v645
    %v647 = vmul.f32 %v637, 1.442695
    %v648 = vpow.pop %v647
    %v649 = vmul.f32 %v638, 1.442695
    %v650 = vpow.pop %v649
    %v651 = vmul.f32 %v639, 1.442695
    %v652 = vpow.pop %v651
    %v653 = vmul.f32 %v640, 1.442695
    %v654 = vpow.pop %v653
    %v655 = vmul.f32 %v641, 1.442695
    %v656 = vpow.pop %v655
    %v657 = vmul.f32 %v642, 1.442695
    %v658 = vpow.pop %v657
    %v659 = vsel %vm228, %v644, 0.0
    %660 = vadd.xlane.f32.xlu0 %v659
    %v661 = vpop.xlane.xlu0 %660
    %v662 = vsel %vm228, %v646, 0.0
    %663 = vadd.xlane.f32.xlu0 %v662
    %v664 = vpop.xlane.xlu0 %663
    %v665 = vsel %vm228, %v648, 0.0
    %666 = vadd.xlane.f32.xlu0 %v665
    %v667 = vpop.xlane.xlu0 %666
    %v668 = vsel %vm228, %v650, 0.0
    %669 = vadd.xlane.f32.xlu0 %v668
    %v670 = vpop.xlane.xlu0 %669
    %v671 = vsel %vm228, %v652, 0.0
    %672 = vadd.xlane.f32.xlu0 %v671
    %v673 = vpop.xlane.xlu0 %672
    %v674 = vsel %vm228, %v654, 0.0
    %675 = vadd.xlane.f32.xlu0 %v674
    %v676 = vpop.xlane.xlu0 %675
    %v677 = vsel %vm228, %v656, 0.0
    %678 = vadd.xlane.f32.xlu0 %v677
    %v679 = vpop.xlane.xlu0 %678
    %v680 = vsel %vm228, %v658, 0.0
    %681 = vadd.xlane.f32.xlu0 %v680
    %v682 = vpop.xlane.xlu0 %681
    %v683 = vrcp.pop %v661
    %v684 = vrcp.pop %v664
    %v685 = vrcp.pop %v667
    %v686 = vrcp.pop %v670
    %v687 = vrcp.pop %v673
    %v688 = vrcp.pop %v676
    %v689 = vrcp.pop %v679
    %v690 = vrcp.pop %v682
    %v691 = vmul.f32 %v644, %v683
    %v692 = vmul.f32 %v646, %v684
    %v693 = vmul.f32 %v648, %v685
    %v694 = vmul.f32 %v650, %v686
    %v695 = vmul.f32 %v652, %v687
    %v696 = vmul.f32 %v654, %v688
    %v697 = vmul.f32 %v656, %v689
    %v698 = vmul.f32 %v658, %v690
    %v699 = vpack.c.bf16 %v691, %v691
    %v700 = vpack.c.bf16 %v692, %v692
    %v701 = vpack.c.bf16 %v693, %v693
    %v702 = vpack.c.bf16 %v694, %v694
    %v703 = vpack.c.bf16 %v695, %v695
    %v704 = vpack.c.bf16 %v696, %v696
    %v705 = vpack.c.bf16 %v697, %v697
    %v706 = vpack.c.bf16 %v698, %v698
    %707 = vrot.lane.b32.xlu0 %v211, 64
    %v708 = vpop.permute.xlu0 %707
    %v710 = vsel %vm228, %v699, 0
    %vm712 = vcmask 1043456
    %v714 = vsel %vm712, %v708, 0
    %716 = vmatprep.subr.bf16.mxu0 0
    %717 = vmatpush1.bf16.msra.mxu0 %v714
    %718 = vmatprep.subr.bf16.mxu0 0
    %719 = vmatpush1.bf16.msra.mxu0 0
    %720 = vmatprep.subr.bf16.mxu0 0
    %721 = vmatpush1.bf16.msra.mxu0 0
    %722 = vmatprep.subr.bf16.mxu0 0
    %723 = vmatpush1.bf16.msra.mxu0 0
    %724 = vmatprep.subr.bf16.mxu0 0
    %725 = vmatpush1.bf16.msra.mxu0 0
    %726 = vmatprep.subr.bf16.mxu0 0
    %727 = vmatpush1.bf16.msra.mxu0 0
    %728 = vmatprep.subr.bf16.mxu0 0
    %729 = vmatpush1.bf16.msra.mxu0 0
    %730 = vmatprep.subr.bf16.mxu0 0
    %731 = vmatpush1.bf16.msra.mxu0 0
    %732 = vmatprep.subr.bf16.mxu0 0
    %733 = vmatpush1.bf16.msra.mxu0 0
    %734 = vmatprep.subr.bf16.mxu0 0
    %735 = vmatpush1.bf16.msra.mxu0 0
    %736 = vmatprep.subr.bf16.mxu0 0
    %737 = vmatpush1.bf16.msra.mxu0 0
    %738 = vmatprep.subr.bf16.mxu0 0
    %739 = vmatpush1.bf16.msra.mxu0 0
    %740 = vmatprep.subr.bf16.mxu0 0
    %741 = vmatpush1.bf16.msra.mxu0 0
    %742 = vmatprep.subr.bf16.mxu0 0
    %743 = vmatpush1.bf16.msra.mxu0 0
    %744 = vmatprep.subr.bf16.mxu0 0
    %745 = vmatpush1.bf16.msra.mxu0 0
    %746 = vmatprep.subr.bf16.mxu0 0
    %747 = vmatpush1.bf16.msra.mxu0 0
    %748 = vmatprep.mubr.bf16.mxu0 0
    %749 = vmatmul.mubr.bf16.gmra.mrb[0].mxu0 %v710
    %v750 = vpop.f32.mrb[0].mxu0
    %v751 = vadd.f32 0.0, %v750
    %v752 = vpop.f32.mrb[0].mxu0
    %v753 = vpop.f32.mrb[0].mxu0
    %v754 = vpop.f32.mrb[0].mxu0
    %755 = vdwg.mxu0
    %756 = vrot.lane.b32.xlu0 %v214, 64
    %v757 = vpop.permute.xlu0 %756
    %v759 = vsel %vm228, %v700, 0
    %v762 = vsel %vm712, %v757, 0
    %764 = vmatprep.subr.bf16.mxu0 0
    %765 = vmatpush1.bf16.msra.mxu0 %v762
    %766 = vmatprep.subr.bf16.mxu0 0
    %767 = vmatpush1.bf16.msra.mxu0 0
    %768 = vmatprep.subr.bf16.mxu0 0
    %769 = vmatpush1.bf16.msra.mxu0 0
    %770 = vmatprep.subr.bf16.mxu0 0
    %771 = vmatpush1.bf16.msra.mxu0 0
    %772 = vmatprep.subr.bf16.mxu0 0
    %773 = vmatpush1.bf16.msra.mxu0 0
    %774 = vmatprep.subr.bf16.mxu0 0
    %775 = vmatpush1.bf16.msra.mxu0 0
    %776 = vmatprep.subr.bf16.mxu0 0
    %777 = vmatpush1.bf16.msra.mxu0 0
    %778 = vmatprep.subr.bf16.mxu0 0
    %779 = vmatpush1.bf16.msra.mxu0 0
    %780 = vmatprep.subr.bf16.mxu0 0
    %781 = vmatpush1.bf16.msra.mxu0 0
    %782 = vmatprep.subr.bf16.mxu0 0
    %783 = vmatpush1.bf16.msra.mxu0 0
    %784 = vmatprep.subr.bf16.mxu0 0
    %785 = vmatpush1.bf16.msra.mxu0 0
    %786 = vmatprep.subr.bf16.mxu0 0
    %787 = vmatpush1.bf16.msra.mxu0 0
    %788 = vmatprep.subr.bf16.mxu0 0
    %789 = vmatpush1.bf16.msra.mxu0 0
    %790 = vmatprep.subr.bf16.mxu0 0
    %791 = vmatpush1.bf16.msra.mxu0 0
    %792 = vmatprep.subr.bf16.mxu0 0
    %793 = vmatpush1.bf16.msra.mxu0 0
    %794 = vmatprep.subr.bf16.mxu0 0
    %795 = vmatpush1.bf16.msra.mxu0 0
    %796 = vmatprep.mubr.bf16.mxu0 0
    %797 = vmatmul.mubr.bf16.gmra.mrb[0].mxu0 %v759
    %v798 = vpop.f32.mrb[0].mxu0
    %v799 = vadd.f32 0.0, %v798
    %v800 = vpop.f32.mrb[0].mxu0
    %v801 = vpop.f32.mrb[0].mxu0
    %v802 = vpop.f32.mrb[0].mxu0
    %803 = vdwg.mxu0
    %804 = vrot.lane.b32.xlu0 %v216, 64
    %v805 = vpop.permute.xlu0 %804
    %v807 = vsel %vm228, %v701, 0
    %v810 = vsel %vm712, %v805, 0
    %812 = vmatprep.subr.bf16.mxu0 0
    %813 = vmatpush1.bf16.msra.mxu0 %v810
    %814 = vmatprep.subr.bf16.mxu0 0
    %815 = vmatpush1.bf16.msra.mxu0 0
    %816 = vmatprep.subr.bf16.mxu0 0
    %817 = vmatpush1.bf16.msra.mxu0 0
    %818 = vmatprep.subr.bf16.mxu0 0
    %819 = vmatpush1.bf16.msra.mxu0 0
    %820 = vmatprep.subr.bf16.mxu0 0
    %821 = vmatpush1.bf16.msra.mxu0 0
    %822 = vmatprep.subr.bf16.mxu0 0
    %823 = vmatpush1.bf16.msra.mxu0 0
    %824 = vmatprep.subr.bf16.mxu0 0
    %825 = vmatpush1.bf16.msra.mxu0 0
    %826 = vmatprep.subr.bf16.mxu0 0
    %827 = vmatpush1.bf16.msra.mxu0 0
    %828 = vmatprep.subr.bf16.mxu0 0
    %829 = vmatpush1.bf16.msra.mxu0 0
    %830 = vmatprep.subr.bf16.mxu0 0
    %831 = vmatpush1.bf16.msra.mxu0 0
    %832 = vmatprep.subr.bf16.mxu0 0
    %833 = vmatpush1.bf16.msra.mxu0 0
    %834 = vmatprep.subr.bf16.mxu0 0
    %835 = vmatpush1.bf16.msra.mxu0 0
    %836 = vmatprep.subr.bf16.mxu0 0
    %837 = vmatpush1.bf16.msra.mxu0 0
    %838 = vmatprep.subr.bf16.mxu0 0
    %839 = vmatpush1.bf16.msra.mxu0 0
    %840 = vmatprep.subr.bf16.mxu0 0
    %841 = vmatpush1.bf16.msra.mxu0 0
    %842 = vmatprep.subr.bf16.mxu0 0
    %843 = vmatpush1.bf16.msra.mxu0 0
    %844 = vmatprep.mubr.bf16.mxu0 0
    %845 = vmatmul.mubr.bf16.gmra.mrb[0].mxu0 %v807
    %v846 = vpop.f32.mrb[0].mxu0
    %v847 = vadd.f32 0.0, %v846
    %v848 = vpop.f32.mrb[0].mxu0
    %v849 = vpop.f32.mrb[0].mxu0
    %v850 = vpop.f32.mrb[0].mxu0
    %851 = vdwg.mxu0
    %852 = vrot.lane.b32.xlu0 %v218, 64
    %v853 = vpop.permute.xlu0 %852
    %v855 = vsel %vm228, %v702, 0
    %v858 = vsel %vm712, %v853, 0
    %860 = vmatprep.subr.bf16.mxu0 0
    %861 = vmatpush1.bf16.msra.mxu0 %v858
    %862 = vmatprep.subr.bf16.mxu0 0
    %863 = vmatpush1.bf16.msra.mxu0 0
    %864 = vmatprep.subr.bf16.mxu0 0
    %865 = vmatpush1.bf16.msra.mxu0 0
    %866 = vmatprep.subr.bf16.mxu0 0
    %867 = vmatpush1.bf16.msra.mxu0 0
    %868 = vmatprep.subr.bf16.mxu0 0
    %869 = vmatpush1.bf16.msra.mxu0 0
    %870 = vmatprep.subr.bf16.mxu0 0
    %871 = vmatpush1.bf16.msra.mxu0 0
    %872 = vmatprep.subr.bf16.mxu0 0
    %873 = vmatpush1.bf16.msra.mxu0 0
    %874 = vmatprep.subr.bf16.mxu0 0
    %875 = vmatpush1.bf16.msra.mxu0 0
    %876 = vmatprep.subr.bf16.mxu0 0
    %877 = vmatpush1.bf16.msra.mxu0 0
    %878 = vmatprep.subr.bf16.mxu0 0
    %879 = vmatpush1.bf16.msra.mxu0 0
    %880 = vmatprep.subr.bf16.mxu0 0
    %881 = vmatpush1.bf16.msra.mxu0 0
    %882 = vmatprep.subr.bf16.mxu0 0
    %883 = vmatpush1.bf16.msra.mxu0 0
    %884 = vmatprep.subr.bf16.mxu0 0
    %885 = vmatpush1.bf16.msra.mxu0 0
    %886 = vmatprep.subr.bf16.mxu0 0
    %887 = vmatpush1.bf16.msra.mxu0 0
    %888 = vmatprep.subr.bf16.mxu0 0
    %889 = vmatpush1.bf16.msra.mxu0 0
    %890 = vmatprep.subr.bf16.mxu0 0
    %891 = vmatpush1.bf16.msra.mxu0 0
    %892 = vmatprep.mubr.bf16.mxu0 0
    %893 = vmatmul.mubr.bf16.gmra.mrb[0].mxu0 %v855
    %v894 = vpop.f32.mrb[0].mxu0
    %v895 = vadd.f32 0.0, %v894
    %v896 = vpop.f32.mrb[0].mxu0
    %v897 = vpop.f32.mrb[0].mxu0
    %v898 = vpop.f32.mrb[0].mxu0
    %899 = vdwg.mxu0
    %900 = vrot.lane.b32.xlu0 %v219, 64
    %v901 = vpop.permute.xlu0 %900
    %v903 = vsel %vm228, %v703, 0
    %v906 = vsel %vm712, %v901, 0
    %908 = vmatprep.subr.bf16.mxu0 0
    %909 = vmatpush1.bf16.msra.mxu0 %v906
    %910 = vmatprep.subr.bf16.mxu0 0
    %911 = vmatpush1.bf16.msra.mxu0 0
    %912 = vmatprep.subr.bf16.mxu0 0
    %913 = vmatpush1.bf16.msra.mxu0 0
    %914 = vmatprep.subr.bf16.mxu0 0
    %915 = vmatpush1.bf16.msra.mxu0 0
    %916 = vmatprep.subr.bf16.mxu0 0
    %917 = vmatpush1.bf16.msra.mxu0 0
    %918 = vmatprep.subr.bf16.mxu0 0
    %919 = vmatpush1.bf16.msra.mxu0 0
    %920 = vmatprep.subr.bf16.mxu0 0
    %921 = vmatpush1.bf16.msra.mxu0 0
    %922 = vmatprep.subr.bf16.mxu0 0
    %923 = vmatpush1.bf16.msra.mxu0 0
    %924 = vmatprep.subr.bf16.mxu0 0
    %925 = vmatpush1.bf16.msra.mxu0 0
    %926 = vmatprep.subr.bf16.mxu0 0
    %927 = vmatpush1.bf16.msra.mxu0 0
    %928 = vmatprep.subr.bf16.mxu0 0
    %929 = vmatpush1.bf16.msra.mxu0 0
    %930 = vmatprep.subr.bf16.mxu0 0
    %931 = vmatpush1.bf16.msra.mxu0 0
    %932 = vmatprep.subr.bf16.mxu0 0
    %933 = vmatpush1.bf16.msra.mxu0 0
    %934 = vmatprep.subr.bf16.mxu0 0
    %935 = vmatpush1.bf16.msra.mxu0 0
    %936 = vmatprep.subr.bf16.mxu0 0
    %937 = vmatpush1.bf16.msra.mxu0 0
    %938 = vmatprep.subr.bf16.mxu0 0
    %939 = vmatpush1.bf16.msra.mxu0 0
    %940 = vmatprep.mubr.bf16.mxu0 0
    %941 = vmatmul.mubr.bf16.gmra.mrb[0].mxu0 %v903
    %v942 = vpop.f32.mrb[0].mxu0
    %v943 = vadd.f32 0.0, %v942
    %v944 = vpop.f32.mrb[0].mxu0
    %v945 = vpop.f32.mrb[0].mxu0
    %v946 = vpop.f32.mrb[0].mxu0
    %947 = vdwg.mxu0
    %948 = vrot.lane.b32.xlu0 %v221, 64
    %v949 = vpop.permute.xlu0 %948
    %v951 = vsel %vm228, %v704, 0
    %v954 = vsel %vm712, %v949, 0
    %956 = vmatprep.subr.bf16.mxu0 0
    %957 = vmatpush1.bf16.msra.mxu0 %v954
    %958 = vmatprep.subr.bf16.mxu0 0
    %959 = vmatpush1.bf16.msra.mxu0 0
    %960 = vmatprep.subr.bf16.mxu0 0
    %961 = vmatpush1.bf16.msra.mxu0 0
    %962 = vmatprep.subr.bf16.mxu0 0
    %963 = vmatpush1.bf16.msra.mxu0 0
    %964 = vmatprep.subr.bf16.mxu0 0
    %965 = vmatpush1.bf16.msra.mxu0 0
    %966 = vmatprep.subr.bf16.mxu0 0
    %967 = vmatpush1.bf16.msra.mxu0 0
    %968 = vmatprep.subr.bf16.mxu0 0
    %969 = vmatpush1.bf16.msra.mxu0 0
    %970 = vmatprep.subr.bf16.mxu0 0
    %971 = vmatpush1.bf16.msra.mxu0 0
    %972 = vmatprep.subr.bf16.mxu0 0
    %973 = vmatpush1.bf16.msra.mxu0 0
    %974 = vmatprep.subr.bf16.mxu0 0
    %975 = vmatpush1.bf16.msra.mxu0 0
    %976 = vmatprep.subr.bf16.mxu0 0
    %977 = vmatpush1.bf16.msra.mxu0 0
    %978 = vmatprep.subr.bf16.mxu0 0
    %979 = vmatpush1.bf16.msra.mxu0 0
    %980 = vmatprep.subr.bf16.mxu0 0
    %981 = vmatpush1.bf16.msra.mxu0 0
    %982 = vmatprep.subr.bf16.mxu0 0
    %983 = vmatpush1.bf16.msra.mxu0 0
    %984 = vmatprep.subr.bf16.mxu0 0
    %985 = vmatpush1.bf16.msra.mxu0 0
    %986 = vmatprep.subr.bf16.mxu0 0
    %987 = vmatpush1.bf16.msra.mxu0 0
    %988 = vmatprep.mubr.bf16.mxu0 0
    %989 = vmatmul.mubr.bf16.gmra.mrb[0].mxu0 %v951
    %v990 = vpop.f32.mrb[0].mxu0
    %v991 = vadd.f32 0.0, %v990
    %v992 = vpop.f32.mrb[0].mxu0
    %v993 = vpop.f32.mrb[0].mxu0
    %v994 = vpop.f32.mrb[0].mxu0
    %995 = vdwg.mxu0
    %996 = vrot.lane.b32.xlu0 %v223, 64
    %v997 = vpop.permute.xlu0 %996
    %v999 = vsel %vm228, %v705, 0
    %v1002 = vsel %vm712, %v997, 0
    %1004 = vmatprep.subr.bf16.mxu0 0
    %1005 = vmatpush1.bf16.msra.mxu0 %v1002
    %1006 = vmatprep.subr.bf16.mxu0 0
    %1007 = vmatpush1.bf16.msra.mxu0 0
    %1008 = vmatprep.subr.bf16.mxu0 0
    %1009 = vmatpush1.bf16.msra.mxu0 0
    %1010 = vmatprep.subr.bf16.mxu0 0
    %1011 = vmatpush1.bf16.msra.mxu0 0
    %1012 = vmatprep.subr.bf16.mxu0 0
    %1013 = vmatpush1.bf16.msra.mxu0 0
    %1014 = vmatprep.subr.bf16.mxu0 0
    %1015 = vmatpush1.bf16.msra.mxu0 0
    %1016 = vmatprep.subr.bf16.mxu0 0
    %1017 = vmatpush1.bf16.msra.mxu0 0
    %1018 = vmatprep.subr.bf16.mxu0 0
    %1019 = vmatpush1.bf16.msra.mxu0 0
    %1020 = vmatprep.subr.bf16.mxu0 0
    %1021 = vmatpush1.bf16.msra.mxu0 0
    %1022 = vmatprep.subr.bf16.mxu0 0
    %1023 = vmatpush1.bf16.msra.mxu0 0
    %1024 = vmatprep.subr.bf16.mxu0 0
    %1025 = vmatpush1.bf16.msra.mxu0 0
    %1026 = vmatprep.subr.bf16.mxu0 0
    %1027 = vmatpush1.bf16.msra.mxu0 0
    %1028 = vmatprep.subr.bf16.mxu0 0
    %1029 = vmatpush1.bf16.msra.mxu0 0
    %1030 = vmatprep.subr.bf16.mxu0 0
    %1031 = vmatpush1.bf16.msra.mxu0 0
    %1032 = vmatprep.subr.bf16.mxu0 0
    %1033 = vmatpush1.bf16.msra.mxu0 0
    %1034 = vmatprep.subr.bf16.mxu0 0
    %1035 = vmatpush1.bf16.msra.mxu0 0
    %1036 = vmatprep.mubr.bf16.mxu0 0
    %1037 = vmatmul.mubr.bf16.gmra.mrb[0].mxu0 %v999
    %v1038 = vpop.f32.mrb[0].mxu0
    %v1039 = vadd.f32 0.0, %v1038
    %v1040 = vpop.f32.mrb[0].mxu0
    %v1041 = vpop.f32.mrb[0].mxu0
    %v1042 = vpop.f32.mrb[0].mxu0
    %1043 = vdwg.mxu0
    %1044 = vrot.lane.b32.xlu0 %v225, 64
    %v1045 = vpop.permute.xlu0 %1044
    %v1047 = vsel %vm228, %v706, 0
    %v1050 = vsel %vm712, %v1045, 0
    %1052 = vmatprep.subr.bf16.mxu0 0
    %1053 = vmatpush1.bf16.msra.mxu0 %v1050
    %1054 = vmatprep.subr.bf16.mxu0 0
    %1055 = vmatpush1.bf16.msra.mxu0 0
    %1056 = vmatprep.subr.bf16.mxu0 0
    %1057 = vmatpush1.bf16.msra.mxu0 0
    %1058 = vmatprep.subr.bf16.mxu0 0
    %1059 = vmatpush1.bf16.msra.mxu0 0
    %1060 = vmatprep.subr.bf16.mxu0 0
    %1061 = vmatpush1.bf16.msra.mxu0 0
    %1062 = vmatprep.subr.bf16.mxu0 0
    %1063 = vmatpush1.bf16.msra.mxu0 0
    %1064 = vmatprep.subr.bf16.mxu0 0
    %1065 = vmatpush1.bf16.msra.mxu0 0
    %1066 = vmatprep.subr.bf16.mxu0 0
    %1067 = vmatpush1.bf16.msra.mxu0 0
    %1068 = vmatprep.subr.bf16.mxu0 0
    %1069 = vmatpush1.bf16.msra.mxu0 0
    %1070 = vmatprep.subr.bf16.mxu0 0
    %1071 = vmatpush1.bf16.msra.mxu0 0
    %1072 = vmatprep.subr.bf16.mxu0 0
    %1073 = vmatpush1.bf16.msra.mxu0 0
    %1074 = vmatprep.subr.bf16.mxu0 0
    %1075 = vmatpush1.bf16.msra.mxu0 0
    %1076 = vmatprep.subr.bf16.mxu0 0
    %1077 = vmatpush1.bf16.msra.mxu0 0
    %1078 = vmatprep.subr.bf16.mxu0 0
    %1079 = vmatpush1.bf16.msra.mxu0 0
    %1080 = vmatprep.subr.bf16.mxu0 0
    %1081 = vmatpush1.bf16.msra.mxu0 0
    %1082 = vmatprep.subr.bf16.mxu0 0
    %1083 = vmatpush1.bf16.msra.mxu0 0
    %1084 = vmatprep.mubr.bf16.mxu0 0
    %1085 = vmatmul.mubr.bf16.gmra.mrb[0].mxu0 %v1047
    %v1086 = vpop.f32.mrb[0].mxu0
    %v1087 = vadd.f32 0.0, %v1086
    %v1088 = vpop.f32.mrb[0].mxu0
    %v1089 = vpop.f32.mrb[0].mxu0
    %v1090 = vpop.f32.mrb[0].mxu0
    %1091 = vdwg.mxu0
    %1093 = vrot.lane.b32.xlu0 %v799, 8
    %v1094 = vpop.permute.xlu0 %1093
    %1097 = vrot.lane.b32.xlu0 %v847, 16
    %v1098 = vpop.permute.xlu0 %1097
    %1101 = vrot.lane.b32.xlu0 %v895, 24
    %v1102 = vpop.permute.xlu0 %1101
    %v1104 = vsel %vm228, %v751, %v1094
    %vm1105 = vcmask 130048
    %v1106 = vsel %vm1105, %v1104, %v1098
    %vm1107 = vcmask 195584
    %v1108 = vsel %vm1107, %v1106, %v1102
    %1110 = vrot.lane.b32.xlu0 %v991, 8
    %v1111 = vpop.permute.xlu0 %1110
    %1114 = vrot.lane.b32.xlu0 %v1039, 16
    %v1115 = vpop.permute.xlu0 %1114
    %1118 = vrot.lane.b32.xlu0 %v1087, 24
    %v1119 = vpop.permute.xlu0 %1118
    %v1121 = vsel %vm228, %v943, %v1111
    %v1122 = vsel %vm1105, %v1121, %v1115
    %v1123 = vsel %vm1107, %v1122, %v1119
    %v1124 = vpack.c.bf16 %v1123, %v1108
    %v1125 = vld [vmem:[%s5] sm:$0xf]
    %v1126 = vld [vmem:[%s5 + $0x4] sm:$0xf]
    %v1127 = vld [vmem:[%s5 + $0x8] sm:$0xf]
    %v1128 = vld [vmem:[%s5 + $0xc] sm:$0xf]
    %v1129 = vld [vmem:[%s6] sm:$0x1]
    %v1130 = vlaneseq
    %v1131 = vshrl.u32 %v1130, 7
    %v1132 = vsub.s32 0, %v1131
    %v1133 = vrot.slane %v1129, %v1132
    %v1138 = vunpack.c.l.b16 %v1125
    %v1139 = vunpack.c.l.b16 %v1126
    %v1140 = vunpack.c.l.b16 %v1127
    %v1141 = vunpack.c.l.b16 %v1128
    %v1142 = vpack.c.b16 %v1139, %v1138
    %v1143 = vpack.c.b16 %v1141, %v1140
    %v1147 = vsel %vm105, %v1124, 0
    %1149 = vmatprep.subr.bf16.mxu0 0
    %1150 = vmatpush1.bf16.msra.mxu0 %v1142
    %1151 = vmatprep.subr.bf16.mxu0 0
    %1152 = vmatpush1.bf16.msra.mxu0 %v1143
    %1153 = vmatprep.subr.bf16.mxu0 0
    %1154 = vmatpush1.bf16.msra.mxu0 0
    %1155 = vmatprep.subr.bf16.mxu0 0
    %1156 = vmatpush1.bf16.msra.mxu0 0
    %1157 = vmatprep.subr.bf16.mxu0 0
    %1158 = vmatpush1.bf16.msra.mxu0 0
    %1159 = vmatprep.subr.bf16.mxu0 0
    %1160 = vmatpush1.bf16.msra.mxu0 0
    %1161 = vmatprep.subr.bf16.mxu0 0
    %1162 = vmatpush1.bf16.msra.mxu0 0
    %1163 = vmatprep.subr.bf16.mxu0 0
    %1164 = vmatpush1.bf16.msra.mxu0 0
    %1165 = vmatprep.subr.bf16.mxu0 0
    %1166 = vmatpush1.bf16.msra.mxu0 0
    %1167 = vmatprep.subr.bf16.mxu0 0
    %1168 = vmatpush1.bf16.msra.mxu0 0
    %1169 = vmatprep.subr.bf16.mxu0 0
    %1170 = vmatpush1.bf16.msra.mxu0 0
    %1171 = vmatprep.subr.bf16.mxu0 0
    %1172 = vmatpush1.bf16.msra.mxu0 0
    %1173 = vmatprep.subr.bf16.mxu0 0
    %1174 = vmatpush1.bf16.msra.mxu0 0
    %1175 = vmatprep.subr.bf16.mxu0 0
    %1176 = vmatpush1.bf16.msra.mxu0 0
    %1177 = vmatprep.subr.bf16.mxu0 0
    %1178 = vmatpush1.bf16.msra.mxu0 0
    %1179 = vmatprep.subr.bf16.mxu0 0
    %1180 = vmatpush1.bf16.msra.mxu0 0
    %1181 = vmatprep.mubr.bf16.mxu0 0
    %1182 = vmatmul.mubr.bf16.gmra.mrb[0].mxu0 %v1147
    %v1183 = vpop.f32.mrb[0].mxu0
    %v1184 = vadd.f32 %v1133, %v1183
    %v1185 = vpop.f32.mrb[0].mxu0
    %v1186 = vpop.f32.mrb[0].mxu0
    %v1187 = vadd.f32 %v1133, %v1186
    %v1188 = vpop.f32.mrb[0].mxu0
    %1189 = vdwg.mxu0
    %v1190 = vadd.f32 %v1184, %v101
    %v1191 = vadd.f32 %v1187, %v102
    %v1192 = vld [vmem:[#allocation5] sm:$0x1]
    %v1193 = vld [vmem:[#allocation7] sm:$0x1]
    %v1194 = vsel %vm105, %v1190, 0.0
    %1195 = vadd.xlane.f32.xlu0 %v1194
    %v1196 = vpop.xlane.xlu0 %1195
    %v1197 = vsel %vm105, %v1191, 0.0
    %1198 = vadd.xlane.f32.xlu0 %v1197
    %v1199 = vpop.xlane.xlu0 %1198
    %v1200 = vmul.f32 %v1196, %v112
    %v1201 = vmul.f32 %v1199, %v112
    %v1202 = vsub.f32 %v1190, %v1200
    %v1203 = vsub.f32 %v1191, %v1201
    %v1204 = vmul.f32 %v1202, %v1202
    %v1205 = vmul.f32 %v1203, %v1203
    %v1206 = vsel %vm105, %v1204, 0.0
    %1207 = vadd.xlane.f32.xlu0 %v1206
    %v1208 = vpop.xlane.xlu0 %1207
    %v1209 = vsel %vm105, %v1205, 0.0
    %1210 = vadd.xlane.f32.xlu0 %v1209
    %v1211 = vpop.xlane.xlu0 %1210
    %v1212 = vmul.f32 %v1208, %v112
    %v1213 = vmul.f32 %v1211, %v112
    %v1214 = vadd.f32 %v1212, 1e-06
    %v1215 = vadd.f32 %v1213, 1e-06
    %v1216 = vrsqrt.pop %v1214
    %v1217 = vrsqrt.pop %v1215
    %v1218 = vmul.f32 %v1202, %v1216
    %v1219 = vmul.f32 %v1203, %v1217
    %v1220 = vlaneseq
    %v1221 = vshrl.u32 %v1220, 7
    %v1222 = vsub.s32 0, %v1221
    %v1223 = vrot.slane %v1192, %v1222
    %v1224 = vmul.f32 %v1218, %v1223
    %v1225 = vmul.f32 %v1219, %v1223
    %v1226 = vlaneseq
    %v1227 = vshrl.u32 %v1226, 7
    %v1228 = vsub.s32 0, %v1227
    %v1229 = vrot.slane %v1193, %v1228
    %v1230 = vadd.f32 %v1224, %v1229
    %v1231 = vadd.f32 %v1225, %v1229
    %v1232 = vpack.c.bf16 %v1231, %v1230
    %v1233 = vld [vmem:[%s9] sm:$0xf]
    %v1234 = vld [vmem:[%s9 + $0x4] sm:$0xf]
    %v1235 = vld [vmem:[%s9 + $0x8] sm:$0xf]
    %v1236 = vld [vmem:[%s9 + $0xc] sm:$0xf]
    %v1237 = vld [vmem:[#allocation8] sm:$0x1]
    %v1238 = vlaneseq
    %v1239 = vshrl.u32 %v1238, 7
    %v1240 = vsub.s32 0, %v1239
    %v1241 = vrot.slane %v1237, %v1240
    %v1246 = vunpack.c.l.b16 %v1233
    %v1247 = vunpack.c.l.b16 %v1234
    %v1248 = vunpack.c.l.b16 %v1235
    %v1249 = vunpack.c.l.b16 %v1236
    %v1250 = vpack.c.b16 %v1247, %v1246
    %v1251 = vpack.c.b16 %v1249, %v1248
    %v1255 = vsel %vm105, %v1232, 0
    %1257 = vmatprep.subr.bf16.mxu0 0
    %1258 = vmatpush1.bf16.msra.mxu0 %v1250
    %1259 = vmatprep.subr.bf16.mxu0 0
    %1260 = vmatpush1.bf16.msra.mxu0 %v1251
    %1261 = vmatprep.subr.bf16.mxu0 0
    %1262 = vmatpush1.bf16.msra.mxu0 0
    %1263 = vmatprep.subr.bf16.mxu0 0
    %1264 = vmatpush1.bf16.msra.mxu0 0
    %1265 = vmatprep.subr.bf16.mxu0 0
    %1266 = vmatpush1.bf16.msra.mxu0 0
    %1267 = vmatprep.subr.bf16.mxu0 0
    %1268 = vmatpush1.bf16.msra.mxu0 0
    %1269 = vmatprep.subr.bf16.mxu0 0
    %1270 = vmatpush1.bf16.msra.mxu0 0
    %1271 = vmatprep.subr.bf16.mxu0 0
    %1272 = vmatpush1.bf16.msra.mxu0 0
    %1273 = vmatprep.subr.bf16.mxu0 0
    %1274 = vmatpush1.bf16.msra.mxu0 0
    %1275 = vmatprep.subr.bf16.mxu0 0
    %1276 = vmatpush1.bf16.msra.mxu0 0
    %1277 = vmatprep.subr.bf16.mxu0 0
    %1278 = vmatpush1.bf16.msra.mxu0 0
    %1279 = vmatprep.subr.bf16.mxu0 0
    %1280 = vmatpush1.bf16.msra.mxu0 0
    %1281 = vmatprep.subr.bf16.mxu0 0
    %1282 = vmatpush1.bf16.msra.mxu0 0
    %1283 = vmatprep.subr.bf16.mxu0 0
    %1284 = vmatpush1.bf16.msra.mxu0 0
    %1285 = vmatprep.subr.bf16.mxu0 0
    %1286 = vmatpush1.bf16.msra.mxu0 0
    %1287 = vmatprep.subr.bf16.mxu0 0
    %1288 = vmatpush1.bf16.msra.mxu0 0
    %1289 = vmatprep.mubr.bf16.mxu0 0
    %1290 = vmatmul.mubr.bf16.gmra.mrb[0].mxu0 %v1255
    %v1291 = vpop.f32.mrb[0].mxu0
    %v1292 = vadd.f32 %v1241, %v1291
    %v1293 = vpop.f32.mrb[0].mxu0
    %v1294 = vpop.f32.mrb[0].mxu0
    %v1295 = vadd.f32 %v1241, %v1294
    %v1296 = vpop.f32.mrb[0].mxu0
    %1297 = vdwg.mxu0
    %v1298 = vmul.f32 %v1292, 0.5
    %v1299 = vmul.f32 %v1295, 0.5
    %v1300 = vmul.f32 %v1292, 0.044715
    %v1301 = vmul.f32 %v1295, 0.044715
    %v1302 = vmul.f32 %v1300, %v1292
    %v1303 = vmul.f32 %v1301, %v1295
    %v1304 = vmul.f32 %v1302, %v1292
    %v1305 = vmul.f32 %v1303, %v1295
    %v1306 = vadd.f32 %v1292, %v1304
    %v1307 = vadd.f32 %v1295, %v1305
    %v1308 = vmul.f32 %v1306, 0.7978846
    %v1309 = vmul.f32 %v1307, 0.7978846
    %v1310 = vtanh.pop %v1308
    %v1311 = vtanh.pop %v1309
    %v1312 = vadd.f32 %v1310, 1.0
    %v1313 = vadd.f32 %v1311, 1.0
    %v1314 = vmul.f32 %v1298, %v1312
    %v1315 = vmul.f32 %v1299, %v1313
    %v1316 = vpack.c.bf16 %v1315, %v1314
    %v1317 = vld [vmem:[%s11] sm:$0xf]
    %v1318 = vld [vmem:[%s11 + $0x4] sm:$0xf]
    %v1319 = vld [vmem:[%s11 + $0x8] sm:$0xf]
    %v1320 = vld [vmem:[%s11 + $0xc] sm:$0xf]
    %v1321 = vld [vmem:[%s11 + $0x10] sm:$0xf]
    %v1322 = vld [vmem:[%s11 + $0x14] sm:$0xf]
    %v1323 = vld [vmem:[%s11 + $0x18] sm:$0xf]
    %v1324 = vld [vmem:[%s11 + $0x1c] sm:$0xf]
    %v1325 = vld [vmem:[%s12] sm:$0x1]
    %v1326 = vlaneseq
    %v1327 = vshrl.u32 %v1326, 7
    %v1328 = vsub.s32 0, %v1327
    %v1329 = vrot.slane %v1325, %v1328
    %v1338 = vunpack.c.l.b16 %v1317
    %v1339 = vunpack.c.l.b16 %v1318
    %v1340 = vunpack.c.l.b16 %v1319
    %v1341 = vunpack.c.l.b16 %v1320
    %v1342 = vunpack.c.l.b16 %v1321
    %v1343 = vunpack.c.l.b16 %v1322
    %v1344 = vunpack.c.l.b16 %v1323
    %v1345 = vunpack.c.l.b16 %v1324
    %v1346 = vpack.c.b16 %v1339, %v1338
    %v1347 = vpack.c.b16 %v1341, %v1340
    %v1348 = vpack.c.b16 %v1343, %v1342
    %v1349 = vpack.c.b16 %v1345, %v1344
    %vm1354 = vcmask 523264
    %v1356 = vsel %vm1354, %v1316, 0
    %1358 = vmatprep.subr.bf16.mxu0 0
    %1359 = vmatpush1.bf16.msra.mxu0 %v1346
    %1360 = vmatprep.subr.bf16.mxu0 0
    %1361 = vmatpush1.bf16.msra.mxu0 %v1347
    %1362 = vmatprep.subr.bf16.mxu0 0
    %1363 = vmatpush1.bf16.msra.mxu0 %v1348
    %1364 = vmatprep.subr.bf16.mxu0 0
    %1365 = vmatpush1.bf16.msra.mxu0 %v1349
    %1366 = vmatprep.subr.bf16.mxu0 0
    %1367 = vmatpush1.bf16.msra.mxu0 0
    %1368 = vmatprep.subr.bf16.mxu0 0
    %1369 = vmatpush1.bf16.msra.mxu0 0
    %1370 = vmatprep.subr.bf16.mxu0 0
    %1371 = vmatpush1.bf16.msra.mxu0 0
    %1372 = vmatprep.subr.bf16.mxu0 0
    %1373 = vmatpush1.bf16.msra.mxu0 0
    %1374 = vmatprep.subr.bf16.mxu0 0
    %1375 = vmatpush1.bf16.msra.mxu0 0
    %1376 = vmatprep.subr.bf16.mxu0 0
    %1377 = vmatpush1.bf16.msra.mxu0 0
    %1378 = vmatprep.subr.bf16.mxu0 0
    %1379 = vmatpush1.bf16.msra.mxu0 0
    %1380 = vmatprep.subr.bf16.mxu0 0
    %1381 = vmatpush1.bf16.msra.mxu0 0
    %1382 = vmatprep.subr.bf16.mxu0 0
    %1383 = vmatpush1.bf16.msra.mxu0 0
    %1384 = vmatprep.subr.bf16.mxu0 0
    %1385 = vmatpush1.bf16.msra.mxu0 0
    %1386 = vmatprep.subr.bf16.mxu0 0
    %1387 = vmatpush1.bf16.msra.mxu0 0
    %1388 = vmatprep.subr.bf16.mxu0 0
    %1389 = vmatpush1.bf16.msra.mxu0 0
    %1390 = vmatprep.mubr.bf16.mxu0 0
    %1391 = vmatmul.mubr.bf16.gmra.mrb[0].mxu0 %v1356
    %v1392 = vpop.f32.mrb[0].mxu0
    %v1393 = vadd.f32 %v1329, %v1392
    %v1394 = vpop.f32.mrb[0].mxu0
    %v1395 = vpop.f32.mrb[0].mxu0
    %v1396 = vadd.f32 %v1329, %v1395
    %v1397 = vpop.f32.mrb[0].mxu0
    %1398 = vdwg.mxu0
    %v1399 = vadd.f32 %v1393, %v1190
    %v1400 = vadd.f32 %v1396, %v1191
    %v1401 = vld [vmem:[%s1 + $0x1] sm:$0x1]
    %v1402 = vld [vmem:[%s2 + $0x1] sm:$0x1]
    %v1403 = vsel %vm105, %v1399, 0.0
    %1404 = vadd.xlane.f32.xlu0 %v1403
    %v1405 = vpop.xlane.xlu0 %1404
    %v1406 = vsel %vm105, %v1400, 0.0
    %1407 = vadd.xlane.f32.xlu0 %v1406
    %v1408 = vpop.xlane.xlu0 %1407
    %v1409 = vmul.f32 %v1405, %v112
    %v1410 = vmul.f32 %v1408, %v112
    %v1411 = vsub.f32 %v1399, %v1409
    %v1412 = vsub.f32 %v1400, %v1410
    %v1413 = vmul.f32 %v1411, %v1411
    %v1414 = vmul.f32 %v1412, %v1412
    %v1415 = vsel %vm105, %v1413, 0.0
    %1416 = vadd.xlane.f32.xlu0 %v1415
    %v1417 = vpop.xlane.xlu0 %1416
    %v1418 = vsel %vm105, %v1414, 0.0
    %1419 = vadd.xlane.f32.xlu0 %v1418
    %v1420 = vpop.xlane.xlu0 %1419
    %v1421 = vmul.f32 %v1417, %v112
    %v1422 = vmul.f32 %v1420, %v112
    %v1423 = vadd.f32 %v1421, 1e-06
    %v1424 = vadd.f32 %v1422, 1e-06
    %v1425 = vrsqrt.pop %v1423
    %v1426 = vrsqrt.pop %v1424
    %v1427 = vmul.f32 %v1411, %v1425
    %v1428 = vmul.f32 %v1412, %v1426
    %v1429 = vlaneseq
    %v1430 = vshrl.u32 %v1429, 7
    %v1431 = vsub.s32 0, %v1430
    %v1432 = vrot.slane %v1401, %v1431
    %v1433 = vmul.f32 %v1427, %v1432
    %v1434 = vmul.f32 %v1428, %v1432
    %v1435 = vlaneseq
    %v1436 = vshrl.u32 %v1435, 7
    %v1437 = vsub.s32 0, %v1436
    %v1438 = vrot.slane %v1402, %v1437
    %v1439 = vadd.f32 %v1433, %v1438
    %v1440 = vadd.f32 %v1434, %v1438
    %v1441 = vpack.c.bf16 %v1440, %v1439
    %s1442 = scalar_lea.vmem %s3, 16
    %v1443 = vld [vmem:[%s1442] sm:$0xf]
    %v1444 = vld [vmem:[%s1442 + $0x4] sm:$0xf]
    %v1445 = vld [vmem:[%s1442 + $0x8] sm:$0xf]
    %v1446 = vld [vmem:[%s1442 + $0xc] sm:$0xf]
    %v1447 = vld [vmem:[%s4 + $0x1] sm:$0x1]
    %v1448 = vlaneseq
    %v1449 = vshrl.u32 %v1448, 7
    %v1450 = vsub.s32 0, %v1449
    %v1451 = vrot.slane %v1447, %v1450
    %v1456 = vunpack.c.l.b16 %v1443
    %v1457 = vunpack.c.l.b16 %v1444
    %v1458 = vunpack.c.l.b16 %v1445
    %v1459 = vunpack.c.l.b16 %v1446
    %v1460 = vpack.c.b16 %v1457, %v1456
    %v1461 = vpack.c.b16 %v1459, %v1458
    %v1465 = vsel %vm105, %v1441, 0
    %1467 = vmatprep.subr.bf16.mxu0 0
    %1468 = vmatpush1.bf16.msra.mxu0 %v1460
    %1469 = vmatprep.subr.bf16.mxu0 0
    %1470 = vmatpush1.bf16.msra.mxu0 %v1461
    %1471 = vmatprep.subr.bf16.mxu0 0
    %1472 = vmatpush1.bf16.msra.mxu0 0
    %1473 = vmatprep.subr.bf16.mxu0 0
    %1474 = vmatpush1.bf16.msra.mxu0 0
    %1475 = vmatprep.subr.bf16.mxu0 0
    %1476 = vmatpush1.bf16.msra.mxu0 0
    %1477 = vmatprep.subr.bf16.mxu0 0
    %1478 = vmatpush1.bf16.msra.mxu0 0
    %1479 = vmatprep.subr.bf16.mxu0 0
    %1480 = vmatpush1.bf16.msra.mxu0 0
    %1481 = vmatprep.subr.bf16.mxu0 0
    %1482 = vmatpush1.bf16.msra.mxu0 0
    %1483 = vmatprep.subr.bf16.mxu0 0
    %1484 = vmatpush1.bf16.msra.mxu0 0
    %1485 = vmatprep.subr.bf16.mxu0 0
    %1486 = vmatpush1.bf16.msra.mxu0 0
    %1487 = vmatprep.subr.bf16.mxu0 0
    %1488 = vmatpush1.bf16.msra.mxu0 0
    %1489 = vmatprep.subr.bf16.mxu0 0
    %1490 = vmatpush1.bf16.msra.mxu0 0
    %1491 = vmatprep.subr.bf16.mxu0 0
    %1492 = vmatpush1.bf16.msra.mxu0 0
    %1493 = vmatprep.subr.bf16.mxu0 0
    %1494 = vmatpush1.bf16.msra.mxu0 0
    %1495 = vmatprep.subr.bf16.mxu0 0
    %1496 = vmatpush1.bf16.msra.mxu0 0
    %1497 = vmatprep.subr.bf16.mxu0 0
    %1498 = vmatpush1.bf16.msra.mxu0 0
    %1499 = vmatprep.mubr.bf16.mxu0 0
    %1500 = vmatmul.mubr.bf16.gmra.mrb[0].mxu0 %v1465
    %v1501 = vpop.f32.mrb[0].mxu0
    %v1502 = vadd.f32 %v1451, %v1501
    %v1503 = vpop.f32.mrb[0].mxu0
    %v1504 = vpop.f32.mrb[0].mxu0
    %v1505 = vadd.f32 %v1451, %v1504
    %v1506 = vpop.f32.mrb[0].mxu0
    %1507 = vdwg.mxu0
    %v1508 = vpack.c.bf16 %v1505, %v1502
    %1510 = vrot.lane.b32.xlu0 %v1508, 120
    %v1511 = vpop.permute.xlu0 %1510
    %1512 = vrot.lane.b32.xlu0 %v1508, 112
    %v1513 = vpop.permute.xlu0 %1512
    %1514 = vrot.lane.b32.xlu0 %v1508, 104
    %v1515 = vpop.permute.xlu0 %1514
    %v1516 = vrot.slane %v1508, 4
    %1517 = vrot.lane.b32.xlu0 %v1516, 120
    %v1518 = vpop.permute.xlu0 %1517
    %1519 = vrot.lane.b32.xlu0 %v1516, 112
    %v1520 = vpop.permute.xlu0 %1519
    %1521 = vrot.lane.b32.xlu0 %v1516, 104
    %v1522 = vpop.permute.xlu0 %1521
    %1523 = vrot.lane.b32.xlu0 %v1508, 96
    %v1524 = vpop.permute.xlu0 %1523
    %v1526 = vsel %vm228, %v1508, 0
    %v1529 = vsel %vm228, %v1524, 0
    %1531 = vmatprep.subr.bf16.mxu0 0
    %1532 = vmatpush1.bf16.xpose.msra.mxu0 %v1529
    %1533 = vmatprep.subr.bf16.mxu0 0
    %1534 = vmatpush1.bf16.xpose.msra.mxu0 0
    %1535 = vmatprep.subr.bf16.mxu0 0
    %1536 = vmatpush1.bf16.xpose.msra.mxu0 0
    %1537 = vmatprep.subr.bf16.mxu0 0
    %1538 = vmatpush1.bf16.xpose.msra.mxu0 0
    %1539 = vmatprep.subr.bf16.mxu0 0
    %1540 = vmatpush1.bf16.xpose.msra.mxu0 0
    %1541 = vmatprep.subr.bf16.mxu0 0
    %1542 = vmatpush1.bf16.xpose.msra.mxu0 0
    %1543 = vmatprep.subr.bf16.mxu0 0
    %1544 = vmatpush1.bf16.xpose.msra.mxu0 0
    %1545 = vmatprep.subr.bf16.mxu0 0
    %1546 = vmatpush1.bf16.xpose.msra.mxu0 0
    %1547 = vmatprep.subr.bf16.mxu0 0
    %1548 = vmatpush1.bf16.xpose.msra.mxu0 0
    %1549 = vmatprep.subr.bf16.mxu0 0
    %1550 = vmatpush1.bf16.xpose.msra.mxu0 0
    %1551 = vmatprep.subr.bf16.mxu0 0
    %1552 = vmatpush1.bf16.xpose.msra.mxu0 0
    %1553 = vmatprep.subr.bf16.mxu0 0
    %1554 = vmatpush1.bf16.xpose.msra.mxu0 0
    %1555 = vmatprep.subr.bf16.mxu0 0
    %1556 = vmatpush1.bf16.xpose.msra.mxu0 0
    %1557 = vmatprep.subr.bf16.mxu0 0
    %1558 = vmatpush1.bf16.xpose.msra.mxu0 0
    %1559 = vmatprep.subr.bf16.mxu0 0
    %1560 = vmatpush1.bf16.xpose.msra.mxu0 0
    %1561 = vmatprep.subr.bf16.mxu0 0
    %1562 = vmatpush1.bf16.xpose.msra.mxu0 0
    %1563 = vmatprep.mubr.bf16.mxu0 0
    %1564 = vmatmul.mubr.bf16.gmra.mrb[0].mxu0 %v1526
    %v1565 = vpop.f32.mrb[0].mxu0
    %v1566 = vadd.f32 0.0, %v1565
    %v1567 = vpop.f32.mrb[0].mxu0
    %v1568 = vpop.f32.mrb[0].mxu0
    %v1569 = vpop.f32.mrb[0].mxu0
    %1570 = vdwg.mxu0
    %1571 = vrot.lane.b32.xlu0 %v1511, 96
    %v1572 = vpop.permute.xlu0 %1571
    %v1574 = vsel %vm228, %v1511, 0
    %v1577 = vsel %vm228, %v1572, 0
    %1579 = vmatprep.subr.bf16.mxu0 0
    %1580 = vmatpush1.bf16.xpose.msra.mxu0 %v1577
    %1581 = vmatprep.subr.bf16.mxu0 0
    %1582 = vmatpush1.bf16.xpose.msra.mxu0 0
    %1583 = vmatprep.subr.bf16.mxu0 0
    %1584 = vmatpush1.bf16.xpose.msra.mxu0 0
    %1585 = vmatprep.subr.bf16.mxu0 0
    %1586 = vmatpush1.bf16.xpose.msra.mxu0 0
    %1587 = vmatprep.subr.bf16.mxu0 0
    %1588 = vmatpush1.bf16.xpose.msra.mxu0 0
    %1589 = vmatprep.subr.bf16.mxu0 0
    %1590 = vmatpush1.bf16.xpose.msra.mxu0 0
    %1591 = vmatprep.subr.bf16.mxu0 0
    %1592 = vmatpush1.bf16.xpose.msra.mxu0 0
    %1593 = vmatprep.subr.bf16.mxu0 0
    %1594 = vmatpush1.bf16.xpose.msra.mxu0 0
    %1595 = vmatprep.subr.bf16.mxu0 0
    %1596 = vmatpush1.bf16.xpose.msra.mxu0 0
    %1597 = vmatprep.subr.bf16.mxu0 0
    %1598 = vmatpush1.bf16.xpose.msra.mxu0 0
    %1599 = vmatprep.subr.bf16.mxu0 0
    %1600 = vmatpush1.bf16.xpose.msra.mxu0 0
    %1601 = vmatprep.subr.bf16.mxu0 0
    %1602 = vmatpush1.bf16.xpose.msra.mxu0 0
    %1603 = vmatprep.subr.bf16.mxu0 0
    %1604 = vmatpush1.bf16.xpose.msra.mxu0 0
    %1605 = vmatprep.subr.bf16.mxu0 0
    %1606 = vmatpush1.bf16.xpose.msra.mxu0 0
    %1607 = vmatprep.subr.bf16.mxu0 0
    %1608 = vmatpush1.bf16.xpose.msra.mxu0 0
    %1609 = vmatprep.subr.bf16.mxu0 0
    %1610 = vmatpush1.bf16.xpose.msra.mxu0 0
    %1611 = vmatprep.mubr.bf16.mxu0 0
    %1612 = vmatmul.mubr.bf16.gmra.mrb[0].mxu0 %v1574
    %v1613 = vpop.f32.mrb[0].mxu0
    %v1614 = vadd.f32 0.0, %v1613
    %v1615 = vpop.f32.mrb[0].mxu0
    %v1616 = vpop.f32.mrb[0].mxu0
    %v1617 = vpop.f32.mrb[0].mxu0
    %1618 = vdwg.mxu0
    %1619 = vrot.lane.b32.xlu0 %v1513, 96
    %v1620 = vpop.permute.xlu0 %1619
    %v1622 = vsel %vm228, %v1513, 0
    %v1625 = vsel %vm228, %v1620, 0
    %1627 = vmatprep.subr.bf16.mxu0 0
    %1628 = vmatpush1.bf16.xpose.msra.mxu0 %v1625
    %1629 = vmatprep.subr.bf16.mxu0 0
    %1630 = vmatpush1.bf16.xpose.msra.mxu0 0
    %1631 = vmatprep.subr.bf16.mxu0 0
    %1632 = vmatpush1.bf16.xpose.msra.mxu0 0
    %1633 = vmatprep.subr.bf16.mxu0 0
    %1634 = vmatpush1.bf16.xpose.msra.mxu0 0
    %1635 = vmatprep.subr.bf16.mxu0 0
    %1636 = vmatpush1.bf16.xpose.msra.mxu0 0
    %1637 = vmatprep.subr.bf16.mxu0 0
    %1638 = vmatpush1.bf16.xpose.msra.mxu0 0
    %1639 = vmatprep.subr.bf16.mxu0 0
    %1640 = vmatpush1.bf16.xpose.msra.mxu0 0
    %1641 = vmatprep.subr.bf16.mxu0 0
    %1642 = vmatpush1.bf16.xpose.msra.mxu0 0
    %1643 = vmatprep.subr.bf16.mxu0 0
    %1644 = vmatpush1.bf16.xpose.msra.mxu0 0
    %1645 = vmatprep.subr.bf16.mxu0 0
    %1646 = vmatpush1.bf16.xpose.msra.mxu0 0
    %1647 = vmatprep.subr.bf16.mxu0 0
    %1648 = vmatpush1.bf16.xpose.msra.mxu0 0
    %1649 = vmatprep.subr.bf16.mxu0 0
    %1650 = vmatpush1.bf16.xpose.msra.mxu0 0
    %1651 = vmatprep.subr.bf16.mxu0 0
    %1652 = vmatpush1.bf16.xpose.msra.mxu0 0
    %1653 = vmatprep.subr.bf16.mxu0 0
    %1654 = vmatpush1.bf16.xpose.msra.mxu0 0
    %1655 = vmatprep.subr.bf16.mxu0 0
    %1656 = vmatpush1.bf16.xpose.msra.mxu0 0
    %1657 = vmatprep.subr.bf16.mxu0 0
    %1658 = vmatpush1.bf16.xpose.msra.mxu0 0
    %1659 = vmatprep.mubr.bf16.mxu0 0
    %1660 = vmatmul.mubr.bf16.gmra.mrb[0].mxu0 %v1622
    %v1661 = vpop.f32.mrb[0].mxu0
    %v1662 = vadd.f32 0.0, %v1661
    %v1663 = vpop.f32.mrb[0].mxu0
    %v1664 = vpop.f32.mrb[0].mxu0
    %v1665 = vpop.f32.mrb[0].mxu0
    %1666 = vdwg.mxu0
    %1667 = vrot.lane.b32.xlu0 %v1515, 96
    %v1668 = vpop.permute.xlu0 %1667
    %v1670 = vsel %vm228, %v1515, 0
    %v1673 = vsel %vm228, %v1668, 0
    %1675 = vmatprep.subr.bf16.mxu0 0
    %1676 = vmatpush1.bf16.xpose.msra.mxu0 %v1673
    %1677 = vmatprep.subr.bf16.mxu0 0
    %1678 = vmatpush1.bf16.xpose.msra.mxu0 0
    %1679 = vmatprep.subr.bf16.mxu0 0
    %1680 = vmatpush1.bf16.xpose.msra.mxu0 0
    %1681 = vmatprep.subr.bf16.mxu0 0
    %1682 = vmatpush1.bf16.xpose.msra.mxu0 0
    %1683 = vmatprep.subr.bf16.mxu0 0
    %1684 = vmatpush1.bf16.xpose.msra.mxu0 0
    %1685 = vmatprep.subr.bf16.mxu0 0
    %1686 = vmatpush1.bf16.xpose.msra.mxu0 0
    %1687 = vmatprep.subr.bf16.mxu0 0
    %1688 = vmatpush1.bf16.xpose.msra.mxu0 0
    %1689 = vmatprep.subr.bf16.mxu0 0
    %1690 = vmatpush1.bf16.xpose.msra.mxu0 0
    %1691 = vmatprep.subr.bf16.mxu0 0
    %1692 = vmatpush1.bf16.xpose.msra.mxu0 0
    %1693 = vmatprep.subr.bf16.mxu0 0
    %1694 = vmatpush1.bf16.xpose.msra.mxu0 0
    %1695 = vmatprep.subr.bf16.mxu0 0
    %1696 = vmatpush1.bf16.xpose.msra.mxu0 0
    %1697 = vmatprep.subr.bf16.mxu0 0
    %1698 = vmatpush1.bf16.xpose.msra.mxu0 0
    %1699 = vmatprep.subr.bf16.mxu0 0
    %1700 = vmatpush1.bf16.xpose.msra.mxu0 0
    %1701 = vmatprep.subr.bf16.mxu0 0
    %1702 = vmatpush1.bf16.xpose.msra.mxu0 0
    %1703 = vmatprep.subr.bf16.mxu0 0
    %1704 = vmatpush1.bf16.xpose.msra.mxu0 0
    %1705 = vmatprep.subr.bf16.mxu0 0
    %1706 = vmatpush1.bf16.xpose.msra.mxu0 0
    %1707 = vmatprep.mubr.bf16.mxu0 0
    %1708 = vmatmul.mubr.bf16.gmra.mrb[0].mxu0 %v1670
    %v1709 = vpop.f32.mrb[0].mxu0
    %v1710 = vadd.f32 0.0, %v1709
    %v1711 = vpop.f32.mrb[0].mxu0
    %v1712 = vpop.f32.mrb[0].mxu0
    %v1713 = vpop.f32.mrb[0].mxu0
    %1714 = vdwg.mxu0
    %1715 = vrot.lane.b32.xlu0 %v1516, 96
    %v1716 = vpop.permute.xlu0 %1715
    %v1718 = vsel %vm228, %v1516, 0
    %v1721 = vsel %vm228, %v1716, 0
    %1723 = vmatprep.subr.bf16.mxu0 0
    %1724 = vmatpush1.bf16.xpose.msra.mxu0 %v1721
    %1725 = vmatprep.subr.bf16.mxu0 0
    %1726 = vmatpush1.bf16.xpose.msra.mxu0 0
    %1727 = vmatprep.subr.bf16.mxu0 0
    %1728 = vmatpush1.bf16.xpose.msra.mxu0 0
    %1729 = vmatprep.subr.bf16.mxu0 0
    %1730 = vmatpush1.bf16.xpose.msra.mxu0 0
    %1731 = vmatprep.subr.bf16.mxu0 0
    %1732 = vmatpush1.bf16.xpose.msra.mxu0 0
    %1733 = vmatprep.subr.bf16.mxu0 0
    %1734 = vmatpush1.bf16.xpose.msra.mxu0 0
    %1735 = vmatprep.subr.bf16.mxu0 0
    %1736 = vmatpush1.bf16.xpose.msra.mxu0 0
    %1737 = vmatprep.subr.bf16.mxu0 0
    %1738 = vmatpush1.bf16.xpose.msra.mxu0 0
    %1739 = vmatprep.subr.bf16.mxu0 0
    %1740 = vmatpush1.bf16.xpose.msra.mxu0 0
    %1741 = vmatprep.subr.bf16.mxu0 0
    %1742 = vmatpush1.bf16.xpose.msra.mxu0 0
    %1743 = vmatprep.subr.bf16.mxu0 0
    %1744 = vmatpush1.bf16.xpose.msra.mxu0 0
    %1745 = vmatprep.subr.bf16.mxu0 0
    %1746 = vmatpush1.bf16.xpose.msra.mxu0 0
    %1747 = vmatprep.subr.bf16.mxu0 0
    %1748 = vmatpush1.bf16.xpose.msra.mxu0 0
    %1749 = vmatprep.subr.bf16.mxu0 0
    %1750 = vmatpush1.bf16.xpose.msra.mxu0 0
    %1751 = vmatprep.subr.bf16.mxu0 0
    %1752 = vmatpush1.bf16.xpose.msra.mxu0 0
    %1753 = vmatprep.subr.bf16.mxu0 0
    %1754 = vmatpush1.bf16.xpose.msra.mxu0 0
    %1755 = vmatprep.mubr.bf16.mxu0 0
    %1756 = vmatmul.mubr.bf16.gmra.mrb[0].mxu0 %v1718
    %v1757 = vpop.f32.mrb[0].mxu0
    %v1758 = vadd.f32 0.0, %v1757
    %v1759 = vpop.f32.mrb[0].mxu0
    %v1760 = vpop.f32.mrb[0].mxu0
    %v1761 = vpop.f32.mrb[0].mxu0
    %1762 = vdwg.mxu0
    %1763 = vrot.lane.b32.xlu0 %v1518, 96
    %v1764 = vpop.permute.xlu0 %1763
    %v1766 = vsel %vm228, %v1518, 0
    %v1769 = vsel %vm228, %v1764, 0
    %1771 = vmatprep.subr.bf16.mxu0 0
    %1772 = vmatpush1.bf16.xpose.msra.mxu0 %v1769
    %1773 = vmatprep.subr.bf16.mxu0 0
    %1774 = vmatpush1.bf16.xpose.msra.mxu0 0
    %1775 = vmatprep.subr.bf16.mxu0 0
    %1776 = vmatpush1.bf16.xpose.msra.mxu0 0
    %1777 = vmatprep.subr.bf16.mxu0 0
    %1778 = vmatpush1.bf16.xpose.msra.mxu0 0
    %1779 = vmatprep.subr.bf16.mxu0 0
    %1780 = vmatpush1.bf16.xpose.msra.mxu0 0
    %1781 = vmatprep.subr.bf16.mxu0 0
    %1782 = vmatpush1.bf16.xpose.msra.mxu0 0
    %1783 = vmatprep.subr.bf16.mxu0 0
    %1784 = vmatpush1.bf16.xpose.msra.mxu0 0
    %1785 = vmatprep.subr.bf16.mxu0 0
    %1786 = vmatpush1.bf16.xpose.msra.mxu0 0
    %1787 = vmatprep.subr.bf16.mxu0 0
    %1788 = vmatpush1.bf16.xpose.msra.mxu0 0
    %1789 = vmatprep.subr.bf16.mxu0 0
    %1790 = vmatpush1.bf16.xpose.msra.mxu0 0
    %1791 = vmatprep.subr.bf16.mxu0 0
    %1792 = vmatpush1.bf16.xpose.msra.mxu0 0
    %1793 = vmatprep.subr.bf16.mxu0 0
    %1794 = vmatpush1.bf16.xpose.msra.mxu0 0
    %1795 = vmatprep.subr.bf16.mxu0 0
    %1796 = vmatpush1.bf16.xpose.msra.mxu0 0
    %1797 = vmatprep.subr.bf16.mxu0 0
    %1798 = vmatpush1.bf16.xpose.msra.mxu0 0
    %1799 = vmatprep.subr.bf16.mxu0 0
    %1800 = vmatpush1.bf16.xpose.msra.mxu0 0
    %1801 = vmatprep.subr.bf16.mxu0 0
    %1802 = vmatpush1.bf16.xpose.msra.mxu0 0
    %1803 = vmatprep.mubr.bf16.mxu0 0
    %1804 = vmatmul.mubr.bf16.gmra.mrb[0].mxu0 %v1766
    %v1805 = vpop.f32.mrb[0].mxu0
    %v1806 = vadd.f32 0.0, %v1805
    %v1807 = vpop.f32.mrb[0].mxu0
    %v1808 = vpop.f32.mrb[0].mxu0
    %v1809 = vpop.f32.mrb[0].mxu0
    %1810 = vdwg.mxu0
    %1811 = vrot.lane.b32.xlu0 %v1520, 96
    %v1812 = vpop.permute.xlu0 %1811
    %v1814 = vsel %vm228, %v1520, 0
    %v1817 = vsel %vm228, %v1812, 0
    %1819 = vmatprep.subr.bf16.mxu0 0
    %1820 = vmatpush1.bf16.xpose.msra.mxu0 %v1817
    %1821 = vmatprep.subr.bf16.mxu0 0
    %1822 = vmatpush1.bf16.xpose.msra.mxu0 0
    %1823 = vmatprep.subr.bf16.mxu0 0
    %1824 = vmatpush1.bf16.xpose.msra.mxu0 0
    %1825 = vmatprep.subr.bf16.mxu0 0
    %1826 = vmatpush1.bf16.xpose.msra.mxu0 0
    %1827 = vmatprep.subr.bf16.mxu0 0
    %1828 = vmatpush1.bf16.xpose.msra.mxu0 0
    %1829 = vmatprep.subr.bf16.mxu0 0
    %1830 = vmatpush1.bf16.xpose.msra.mxu0 0
    %1831 = vmatprep.subr.bf16.mxu0 0
    %1832 = vmatpush1.bf16.xpose.msra.mxu0 0
    %1833 = vmatprep.subr.bf16.mxu0 0
    %1834 = vmatpush1.bf16.xpose.msra.mxu0 0
    %1835 = vmatprep.subr.bf16.mxu0 0
    %1836 = vmatpush1.bf16.xpose.msra.mxu0 0
    %1837 = vmatprep.subr.bf16.mxu0 0
    %1838 = vmatpush1.bf16.xpose.msra.mxu0 0
    %1839 = vmatprep.subr.bf16.mxu0 0
    %1840 = vmatpush1.bf16.xpose.msra.mxu0 0
    %1841 = vmatprep.subr.bf16.mxu0 0
    %1842 = vmatpush1.bf16.xpose.msra.mxu0 0
    %1843 = vmatprep.subr.bf16.mxu0 0
    %1844 = vmatpush1.bf16.xpose.msra.mxu0 0
    %1845 = vmatprep.subr.bf16.mxu0 0
    %1846 = vmatpush1.bf16.xpose.msra.mxu0 0
    %1847 = vmatprep.subr.bf16.mxu0 0
    %1848 = vmatpush1.bf16.xpose.msra.mxu0 0
    %1849 = vmatprep.subr.bf16.mxu0 0
    %1850 = vmatpush1.bf16.xpose.msra.mxu0 0
    %1851 = vmatprep.mubr.bf16.mxu0 0
    %1852 = vmatmul.mubr.bf16.gmra.mrb[0].mxu0 %v1814
    %v1853 = vpop.f32.mrb[0].mxu0
    %v1854 = vadd.f32 0.0, %v1853
    %v1855 = vpop.f32.mrb[0].mxu0
    %v1856 = vpop.f32.mrb[0].mxu0
    %v1857 = vpop.f32.mrb[0].mxu0
    %1858 = vdwg.mxu0
    %1859 = vrot.lane.b32.xlu0 %v1522, 96
    %v1860 = vpop.permute.xlu0 %1859
    %v1862 = vsel %vm228, %v1522, 0
    %v1865 = vsel %vm228, %v1860, 0
    %1867 = vmatprep.subr.bf16.mxu0 0
    %1868 = vmatpush1.bf16.xpose.msra.mxu0 %v1865
    %1869 = vmatprep.subr.bf16.mxu0 0
    %1870 = vmatpush1.bf16.xpose.msra.mxu0 0
    %1871 = vmatprep.subr.bf16.mxu0 0
    %1872 = vmatpush1.bf16.xpose.msra.mxu0 0
    %1873 = vmatprep.subr.bf16.mxu0 0
    %1874 = vmatpush1.bf16.xpose.msra.mxu0 0
    %1875 = vmatprep.subr.bf16.mxu0 0
    %1876 = vmatpush1.bf16.xpose.msra.mxu0 0
    %1877 = vmatprep.subr.bf16.mxu0 0
    %1878 = vmatpush1.bf16.xpose.msra.mxu0 0
    %1879 = vmatprep.subr.bf16.mxu0 0
    %1880 = vmatpush1.bf16.xpose.msra.mxu0 0
    %1881 = vmatprep.subr.bf16.mxu0 0
    %1882 = vmatpush1.bf16.xpose.msra.mxu0 0
    %1883 = vmatprep.subr.bf16.mxu0 0
    %1884 = vmatpush1.bf16.xpose.msra.mxu0 0
    %1885 = vmatprep.subr.bf16.mxu0 0
    %1886 = vmatpush1.bf16.xpose.msra.mxu0 0
    %1887 = vmatprep.subr.bf16.mxu0 0
    %1888 = vmatpush1.bf16.xpose.msra.mxu0 0
    %1889 = vmatprep.subr.bf16.mxu0 0
    %1890 = vmatpush1.bf16.xpose.msra.mxu0 0
    %1891 = vmatprep.subr.bf16.mxu0 0
    %1892 = vmatpush1.bf16.xpose.msra.mxu0 0
    %1893 = vmatprep.subr.bf16.mxu0 0
    %1894 = vmatpush1.bf16.xpose.msra.mxu0 0
    %1895 = vmatprep.subr.bf16.mxu0 0
    %1896 = vmatpush1.bf16.xpose.msra.mxu0 0
    %1897 = vmatprep.subr.bf16.mxu0 0
    %1898 = vmatpush1.bf16.xpose.msra.mxu0 0
    %1899 = vmatprep.mubr.bf16.mxu0 0
    %1900 = vmatmul.mubr.bf16.gmra.mrb[0].mxu0 %v1862
    %v1901 = vpop.f32.mrb[0].mxu0
    %v1902 = vadd.f32 0.0, %v1901
    %v1903 = vpop.f32.mrb[0].mxu0
    %v1904 = vpop.f32.mrb[0].mxu0
    %v1905 = vpop.f32.mrb[0].mxu0
    %1906 = vdwg.mxu0
    %v1907 = vsel %vm228, %v1566, -inf
    %1908 = vmax.xlane.f32.xlu0 %v1907
    %v1909 = vpop.xlane.xlu0 %1908
    %v1910 = vsel %vm228, %v1614, -inf
    %1911 = vmax.xlane.f32.xlu0 %v1910
    %v1912 = vpop.xlane.xlu0 %1911
    %v1913 = vsel %vm228, %v1662, -inf
    %1914 = vmax.xlane.f32.xlu0 %v1913
    %v1915 = vpop.xlane.xlu0 %1914
    %v1916 = vsel %vm228, %v1710, -inf
    %1917 = vmax.xlane.f32.xlu0 %v1916
    %v1918 = vpop.xlane.xlu0 %1917
    %v1919 = vsel %vm228, %v1758, -inf
    %1920 = vmax.xlane.f32.xlu0 %v1919
    %v1921 = vpop.xlane.xlu0 %1920
    %v1922 = vsel %vm228, %v1806, -inf
    %1923 = vmax.xlane.f32.xlu0 %v1922
    %v1924 = vpop.xlane.xlu0 %1923
    %v1925 = vsel %vm228, %v1854, -inf
    %1926 = vmax.xlane.f32.xlu0 %v1925
    %v1927 = vpop.xlane.xlu0 %1926
    %v1928 = vsel %vm228, %v1902, -inf
    %1929 = vmax.xlane.f32.xlu0 %v1928
    %v1930 = vpop.xlane.xlu0 %1929
    %v1931 = vsub.f32 %v1566, %v1909
    %v1932 = vsub.f32 %v1614, %v1912
    %v1933 = vsub.f32 %v1662, %v1915
    %v1934 = vsub.f32 %v1710, %v1918
    %v1935 = vsub.f32 %v1758, %v1921
    %v1936 = vsub.f32 %v1806, %v1924
    %v1937 = vsub.f32 %v1854, %v1927
    %v1938 = vsub.f32 %v1902, %v1930
    %v1939 = vmul.f32 %v1931, 1.442695
    %v1940 = vpow.pop %v1939
    %v1941 = vmul.f32 %v1932, 1.442695
    %v1942 = vpow.pop %v1941
    %v1943 = vmul.f32 %v1933, 1.442695
    %v1944 = vpow.pop %v1943
    %v1945 = vmul.f32 %v1934, 1.442695
    %v1946 = vpow.pop %v1945
    %v1947 = vmul.f32 %v1935, 1.442695
    %v1948 = vpow.pop %v1947
    %v1949 = vmul.f32 %v1936, 1.442695
    %v1950 = vpow.pop %v1949
    %v1951 = vmul.f32 %v1937, 1.442695
    %v1952 = vpow.pop %v1951
    %v1953 = vmul.f32 %v1938, 1.442695
    %v1954 = vpow.pop %v1953
    %v1955 = vsel %vm228, %v1940, 0.0
    %1956 = vadd.xlane.f32.xlu0 %v1955
    %v1957 = vpop.xlane.xlu0 %1956
    %v1958 = vsel %vm228, %v1942, 0.0
    %1959 = vadd.xlane.f32.xlu0 %v1958
    %v1960 = vpop.xlane.xlu0 %1959
    %v1961 = vsel %vm228, %v1944, 0.0
    %1962 = vadd.xlane.f32.xlu0 %v1961
    %v1963 = vpop.xlane.xlu0 %1962
    %v1964 = vsel %vm228, %v1946, 0.0
    %1965 = vadd.xlane.f32.xlu0 %v1964
    %v1966 = vpop.xlane.xlu0 %1965
    %v1967 = vsel %vm228, %v1948, 0.0
    %1968 = vadd.xlane.f32.xlu0 %v1967
    %v1969 = vpop.xlane.xlu0 %1968
    %v1970 = vsel %vm228, %v1950, 0.0
    %1971 = vadd.xlane.f32.xlu0 %v1970
    %v1972 = vpop.xlane.xlu0 %1971
    %v1973 = vsel %vm228, %v1952, 0.0
    %1974 = vadd.xlane.f32.xlu0 %v1973
    %v1975 = vpop.xlane.xlu0 %1974
    %v1976 = vsel %vm228, %v1954, 0.0
    %1977 = vadd.xlane.f32.xlu0 %v1976
    %v1978 = vpop.xlane.xlu0 %1977
    %v1979 = vrcp.pop %v1957
    %v1980 = vrcp.pop %v1960
    %v1981 = vrcp.pop %v1963
    %v1982 = vrcp.pop %v1966
    %v1983 = vrcp.pop %v1969
    %v1984 = vrcp.pop %v1972
    %v1985 = vrcp.pop %v1975
    %v1986 = vrcp.pop %v1978
    %v1987 = vmul.f32 %v1940, %v1979
    %v1988 = vmul.f32 %v1942, %v1980
    %v1989 = vmul.f32 %v1944, %v1981
    %v1990 = vmul.f32 %v1946, %v1982
    %v1991 = vmul.f32 %v1948, %v1983
    %v1992 = vmul.f32 %v1950, %v1984
    %v1993 = vmul.f32 %v1952, %v1985
    %v1994 = vmul.f32 %v1954, %v1986
    %v1995 = vpack.c.bf16 %v1987, %v1987
    %v1996 = vpack.c.bf16 %v1988, %v1988
    %v1997 = vpack.c.bf16 %v1989, %v1989
    %v1998 = vpack.c.bf16 %v1990, %v1990
    %v1999 = vpack.c.bf16 %v1991, %v1991
    %v2000 = vpack.c.bf16 %v1992, %v1992
    %v2001 = vpack.c.bf16 %v1993, %v1993
    %v2002 = vpack.c.bf16 %v1994, %v1994
    %2003 = vrot.lane.b32.xlu0 %v1508, 64
    %v2004 = vpop.permute.xlu0 %2003
    %v2006 = vsel %vm228, %v1995, 0
    %v2009 = vsel %vm712, %v2004, 0
    %2011 = vmatprep.subr.bf16.mxu0 0
    %2012 = vmatpush1.bf16.msra.mxu0 %v2009
    %2013 = vmatprep.subr.bf16.mxu0 0
    %2014 = vmatpush1.bf16.msra.mxu0 0
    %2015 = vmatprep.subr.bf16.mxu0 0
    %2016 = vmatpush1.bf16.msra.mxu0 0
    %2017 = vmatprep.subr.bf16.mxu0 0
    %2018 = vmatpush1.bf16.msra.mxu0 0
    %2019 = vmatprep.subr.bf16.mxu0 0
    %2020 = vmatpush1.bf16.msra.mxu0 0
    %2021 = vmatprep.subr.bf16.mxu0 0
    %2022 = vmatpush1.bf16.msra.mxu0 0
    %2023 = vmatprep.subr.bf16.mxu0 0
    %2024 = vmatpush1.bf16.msra.mxu0 0
    %2025 = vmatprep.subr.bf16.mxu0 0
    %2026 = vmatpush1.bf16.msra.mxu0 0
    %2027 = vmatprep.subr.bf16.mxu0 0
    %2028 = vmatpush1.bf16.msra.mxu0 0
    %2029 = vmatprep.subr.bf16.mxu0 0
    %2030 = vmatpush1.bf16.msra.mxu0 0
    %2031 = vmatprep.subr.bf16.mxu0 0
    %2032 = vmatpush1.bf16.msra.mxu0 0
    %2033 = vmatprep.subr.bf16.mxu0 0
    %2034 = vmatpush1.bf16.msra.mxu0 0
    %2035 = vmatprep.subr.bf16.mxu0 0
    %2036 = vmatpush1.bf16.msra.mxu0 0
    %2037 = vmatprep.subr.bf16.mxu0 0
    %2038 = vmatpush1.bf16.msra.mxu0 0
    %2039 = vmatprep.subr.bf16.mxu0 0
    %2040 = vmatpush1.bf16.msra.mxu0 0
    %2041 = vmatprep.subr.bf16.mxu0 0
    %2042 = vmatpush1.bf16.msra.mxu0 0
    %2043 = vmatprep.mubr.bf16.mxu0 0
    %2044 = vmatmul.mubr.bf16.gmra.mrb[0].mxu0 %v2006
    %v2045 = vpop.f32.mrb[0].mxu0
    %v2046 = vadd.f32 0.0, %v2045
    %v2047 = vpop.f32.mrb[0].mxu0
    %v2048 = vpop.f32.mrb[0].mxu0
    %v2049 = vpop.f32.mrb[0].mxu0
    %2050 = vdwg.mxu0
    %2051 = vrot.lane.b32.xlu0 %v1511, 64
    %v2052 = vpop.permute.xlu0 %2051
    %v2054 = vsel %vm228, %v1996, 0
    %v2057 = vsel %vm712, %v2052, 0
    %2059 = vmatprep.subr.bf16.mxu0 0
    %2060 = vmatpush1.bf16.msra.mxu0 %v2057
    %2061 = vmatprep.subr.bf16.mxu0 0
    %2062 = vmatpush1.bf16.msra.mxu0 0
    %2063 = vmatprep.subr.bf16.mxu0 0
    %2064 = vmatpush1.bf16.msra.mxu0 0
    %2065 = vmatprep.subr.bf16.mxu0 0
    %2066 = vmatpush1.bf16.msra.mxu0 0
    %2067 = vmatprep.subr.bf16.mxu0 0
    %2068 = vmatpush1.bf16.msra.mxu0 0
    %2069 = vmatprep.subr.bf16.mxu0 0
    %2070 = vmatpush1.bf16.msra.mxu0 0
    %2071 = vmatprep.subr.bf16.mxu0 0
    %2072 = vmatpush1.bf16.msra.mxu0 0
    %2073 = vmatprep.subr.bf16.mxu0 0
    %2074 = vmatpush1.bf16.msra.mxu0 0
    %2075 = vmatprep.subr.bf16.mxu0 0
    %2076 = vmatpush1.bf16.msra.mxu0 0
    %2077 = vmatprep.subr.bf16.mxu0 0
    %2078 = vmatpush1.bf16.msra.mxu0 0
    %2079 = vmatprep.subr.bf16.mxu0 0
    %2080 = vmatpush1.bf16.msra.mxu0 0
    %2081 = vmatprep.subr.bf16.mxu0 0
    %2082 = vmatpush1.bf16.msra.mxu0 0
    %2083 = vmatprep.subr.bf16.mxu0 0
    %2084 = vmatpush1.bf16.msra.mxu0 0
    %2085 = vmatprep.subr.bf16.mxu0 0
    %2086 = vmatpush1.bf16.msra.mxu0 0
    %2087 = vmatprep.subr.bf16.mxu0 0
    %2088 = vmatpush1.bf16.msra.mxu0 0
    %2089 = vmatprep.subr.bf16.mxu0 0
    %2090 = vmatpush1.bf16.msra.mxu0 0
    %2091 = vmatprep.mubr.bf16.mxu0 0
    %2092 = vmatmul.mubr.bf16.gmra.mrb[0].mxu0 %v2054
    %v2093 = vpop.f32.mrb[0].mxu0
    %v2094 = vadd.f32 0.0, %v2093
    %v2095 = vpop.f32.mrb[0].mxu0
    %v2096 = vpop.f32.mrb[0].mxu0
    %v2097 = vpop.f32.mrb[0].mxu0
    %2098 = vdwg.mxu0
    %2099 = vrot.lane.b32.xlu0 %v1513, 64
    %v2100 = vpop.permute.xlu0 %2099
    %v2102 = vsel %vm228, %v1997, 0
    %v2105 = vsel %vm712, %v2100, 0
    %2107 = vmatprep.subr.bf16.mxu0 0
    %2108 = vmatpush1.bf16.msra.mxu0 %v2105
    %2109 = vmatprep.subr.bf16.mxu0 0
    %2110 = vmatpush1.bf16.msra.mxu0 0
    %2111 = vmatprep.subr.bf16.mxu0 0
    %2112 = vmatpush1.bf16.msra.mxu0 0
    %2113 = vmatprep.subr.bf16.mxu0 0
    %2114 = vmatpush1.bf16.msra.mxu0 0
    %2115 = vmatprep.subr.bf16.mxu0 0
    %2116 = vmatpush1.bf16.msra.mxu0 0
    %2117 = vmatprep.subr.bf16.mxu0 0
    %2118 = vmatpush1.bf16.msra.mxu0 0
    %2119 = vmatprep.subr.bf16.mxu0 0
    %2120 = vmatpush1.bf16.msra.mxu0 0
    %2121 = vmatprep.subr.bf16.mxu0 0
    %2122 = vmatpush1.bf16.msra.mxu0 0
    %2123 = vmatprep.subr.bf16.mxu0 0
    %2124 = vmatpush1.bf16.msra.mxu0 0
    %2125 = vmatprep.subr.bf16.mxu0 0
    %2126 = vmatpush1.bf16.msra.mxu0 0
    %2127 = vmatprep.subr.bf16.mxu0 0
    %2128 = vmatpush1.bf16.msra.mxu0 0
    %2129 = vmatprep.subr.bf16.mxu0 0
    %2130 = vmatpush1.bf16.msra.mxu0 0
    %2131 = vmatprep.subr.bf16.mxu0 0
    %2132 = vmatpush1.bf16.msra.mxu0 0
    %2133 = vmatprep.subr.bf16.mxu0 0
    %2134 = vmatpush1.bf16.msra.mxu0 0
    %2135 = vmatprep.subr.bf16.mxu0 0
    %2136 = vmatpush1.bf16.msra.mxu0 0
    %2137 = vmatprep.subr.bf16.mxu0 0
    %2138 = vmatpush1.bf16.msra.mxu0 0
    %2139 = vmatprep.mubr.bf16.mxu0 0
    %2140 = vmatmul.mubr.bf16.gmra.mrb[0].mxu0 %v2102
    %v2141 = vpop.f32.mrb[0].mxu0
    %v2142 = vadd.f32 0.0, %v2141
    %v2143 = vpop.f32.mrb[0].mxu0
    %v2144 = vpop.f32.mrb[0].mxu0
    %v2145 = vpop.f32.mrb[0].mxu0
    %2146 = vdwg.mxu0
    %2147 = vrot.lane.b32.xlu0 %v1515, 64
    %v2148 = vpop.permute.xlu0 %2147
    %v2150 = vsel %vm228, %v1998, 0
    %v2153 = vsel %vm712, %v2148, 0
    %2155 = vmatprep.subr.bf16.mxu0 0
    %2156 = vmatpush1.bf16.msra.mxu0 %v2153
    %2157 = vmatprep.subr.bf16.mxu0 0
    %2158 = vmatpush1.bf16.msra.mxu0 0
    %2159 = vmatprep.subr.bf16.mxu0 0
    %2160 = vmatpush1.bf16.msra.mxu0 0
    %2161 = vmatprep.subr.bf16.mxu0 0
    %2162 = vmatpush1.bf16.msra.mxu0 0
    %2163 = vmatprep.subr.bf16.mxu0 0
    %2164 = vmatpush1.bf16.msra.mxu0 0
    %2165 = vmatprep.subr.bf16.mxu0 0
    %2166 = vmatpush1.bf16.msra.mxu0 0
    %2167 = vmatprep.subr.bf16.mxu0 0
    %2168 = vmatpush1.bf16.msra.mxu0 0
    %2169 = vmatprep.subr.bf16.mxu0 0
    %2170 = vmatpush1.bf16.msra.mxu0 0
    %2171 = vmatprep.subr.bf16.mxu0 0
    %2172 = vmatpush1.bf16.msra.mxu0 0
    %2173 = vmatprep.subr.bf16.mxu0 0
    %2174 = vmatpush1.bf16.msra.mxu0 0
    %2175 = vmatprep.subr.bf16.mxu0 0
    %2176 = vmatpush1.bf16.msra.mxu0 0
    %2177 = vmatprep.subr.bf16.mxu0 0
    %2178 = vmatpush1.bf16.msra.mxu0 0
    %2179 = vmatprep.subr.bf16.mxu0 0
    %2180 = vmatpush1.bf16.msra.mxu0 0
    %2181 = vmatprep.subr.bf16.mxu0 0
    %2182 = vmatpush1.bf16.msra.mxu0 0
    %2183 = vmatprep.subr.bf16.mxu0 0
    %2184 = vmatpush1.bf16.msra.mxu0 0
    %2185 = vmatprep.subr.bf16.mxu0 0
    %2186 = vmatpush1.bf16.msra.mxu0 0
    %2187 = vmatprep.mubr.bf16.mxu0 0
    %2188 = vmatmul.mubr.bf16.gmra.mrb[0].mxu0 %v2150
    %v2189 = vpop.f32.mrb[0].mxu0
    %v2190 = vadd.f32 0.0, %v2189
    %v2191 = vpop.f32.mrb[0].mxu0
    %v2192 = vpop.f32.mrb[0].mxu0
    %v2193 = vpop.f32.mrb[0].mxu0
    %2194 = vdwg.mxu0
    %2195 = vrot.lane.b32.xlu0 %v1516, 64
    %v2196 = vpop.permute.xlu0 %2195
    %v2198 = vsel %vm228, %v1999, 0
    %v2201 = vsel %vm712, %v2196, 0
    %2203 = vmatprep.subr.bf16.mxu0 0
    %2204 = vmatpush1.bf16.msra.mxu0 %v2201
    %2205 = vmatprep.subr.bf16.mxu0 0
    %2206 = vmatpush1.bf16.msra.mxu0 0
    %2207 = vmatprep.subr.bf16.mxu0 0
    %2208 = vmatpush1.bf16.msra.mxu0 0
    %2209 = vmatprep.subr.bf16.mxu0 0
    %2210 = vmatpush1.bf16.msra.mxu0 0
    %2211 = vmatprep.subr.bf16.mxu0 0
    %2212 = vmatpush1.bf16.msra.mxu0 0
    %2213 = vmatprep.subr.bf16.mxu0 0
    %2214 = vmatpush1.bf16.msra.mxu0 0
    %2215 = vmatprep.subr.bf16.mxu0 0
    %2216 = vmatpush1.bf16.msra.mxu0 0
    %2217 = vmatprep.subr.bf16.mxu0 0
    %2218 = vmatpush1.bf16.msra.mxu0 0
    %2219 = vmatprep.subr.bf16.mxu0 0
    %2220 = vmatpush1.bf16.msra.mxu0 0
    %2221 = vmatprep.subr.bf16.mxu0 0
    %2222 = vmatpush1.bf16.msra.mxu0 0
    %2223 = vmatprep.subr.bf16.mxu0 0
    %2224 = vmatpush1.bf16.msra.mxu0 0
    %2225 = vmatprep.subr.bf16.mxu0 0
    %2226 = vmatpush1.bf16.msra.mxu0 0
    %2227 = vmatprep.subr.bf16.mxu0 0
    %2228 = vmatpush1.bf16.msra.mxu0 0
    %2229 = vmatprep.subr.bf16.mxu0 0
    %2230 = vmatpush1.bf16.msra.mxu0 0
    %2231 = vmatprep.subr.bf16.mxu0 0
    %2232 = vmatpush1.bf16.msra.mxu0 0
    %2233 = vmatprep.subr.bf16.mxu0 0
    %2234 = vmatpush1.bf16.msra.mxu0 0
    %2235 = vmatprep.mubr.bf16.mxu0 0
    %2236 = vmatmul.mubr.bf16.gmra.mrb[0].mxu0 %v2198
    %v2237 = vpop.f32.mrb[0].mxu0
    %v2238 = vadd.f32 0.0, %v2237
    %v2239 = vpop.f32.mrb[0].mxu0
    %v2240 = vpop.f32.mrb[0].mxu0
    %v2241 = vpop.f32.mrb[0].mxu0
    %2242 = vdwg.mxu0
    %2243 = vrot.lane.b32.xlu0 %v1518, 64
    %v2244 = vpop.permute.xlu0 %2243
    %v2246 = vsel %vm228, %v2000, 0
    %v2249 = vsel %vm712, %v2244, 0
    %2251 = vmatprep.subr.bf16.mxu0 0
    %2252 = vmatpush1.bf16.msra.mxu0 %v2249
    %2253 = vmatprep.subr.bf16.mxu0 0
    %2254 = vmatpush1.bf16.msra.mxu0 0
    %2255 = vmatprep.subr.bf16.mxu0 0
    %2256 = vmatpush1.bf16.msra.mxu0 0
    %2257 = vmatprep.subr.bf16.mxu0 0
    %2258 = vmatpush1.bf16.msra.mxu0 0
    %2259 = vmatprep.subr.bf16.mxu0 0
    %2260 = vmatpush1.bf16.msra.mxu0 0
    %2261 = vmatprep.subr.bf16.mxu0 0
    %2262 = vmatpush1.bf16.msra.mxu0 0
    %2263 = vmatprep.subr.bf16.mxu0 0
    %2264 = vmatpush1.bf16.msra.mxu0 0
    %2265 = vmatprep.subr.bf16.mxu0 0
    %2266 = vmatpush1.bf16.msra.mxu0 0
    %2267 = vmatprep.subr.bf16.mxu0 0
    %2268 = vmatpush1.bf16.msra.mxu0 0
    %2269 = vmatprep.subr.bf16.mxu0 0
    %2270 = vmatpush1.bf16.msra.mxu0 0
    %2271 = vmatprep.subr.bf16.mxu0 0
    %2272 = vmatpush1.bf16.msra.mxu0 0
    %2273 = vmatprep.subr.bf16.mxu0 0
    %2274 = vmatpush1.bf16.msra.mxu0 0
    %2275 = vmatprep.subr.bf16.mxu0 0
    %2276 = vmatpush1.bf16.msra.mxu0 0
    %2277 = vmatprep.subr.bf16.mxu0 0
    %2278 = vmatpush1.bf16.msra.mxu0 0
    %2279 = vmatprep.subr.bf16.mxu0 0
    %2280 = vmatpush1.bf16.msra.mxu0 0
    %2281 = vmatprep.subr.bf16.mxu0 0
    %2282 = vmatpush1.bf16.msra.mxu0 0
    %2283 = vmatprep.mubr.bf16.mxu0 0
    %2284 = vmatmul.mubr.bf16.gmra.mrb[0].mxu0 %v2246
    %v2285 = vpop.f32.mrb[0].mxu0
    %v2286 = vadd.f32 0.0, %v2285
    %v2287 = vpop.f32.mrb[0].mxu0
    %v2288 = vpop.f32.mrb[0].mxu0
    %v2289 = vpop.f32.mrb[0].mxu0
    %2290 = vdwg.mxu0
    %2291 = vrot.lane.b32.xlu0 %v1520, 64
    %v2292 = vpop.permute.xlu0 %2291
    %v2294 = vsel %vm228, %v2001, 0
    %v2297 = vsel %vm712, %v2292, 0
    %2299 = vmatprep.subr.bf16.mxu0 0
    %2300 = vmatpush1.bf16.msra.mxu0 %v2297
    %2301 = vmatprep.subr.bf16.mxu0 0
    %2302 = vmatpush1.bf16.msra.mxu0 0
    %2303 = vmatprep.subr.bf16.mxu0 0
    %2304 = vmatpush1.bf16.msra.mxu0 0
    %2305 = vmatprep.subr.bf16.mxu0 0
    %2306 = vmatpush1.bf16.msra.mxu0 0
    %2307 = vmatprep.subr.bf16.mxu0 0
    %2308 = vmatpush1.bf16.msra.mxu0 0
    %2309 = vmatprep.subr.bf16.mxu0 0
    %2310 = vmatpush1.bf16.msra.mxu0 0
    %2311 = vmatprep.subr.bf16.mxu0 0
    %2312 = vmatpush1.bf16.msra.mxu0 0
    %2313 = vmatprep.subr.bf16.mxu0 0
    %2314 = vmatpush1.bf16.msra.mxu0 0
    %2315 = vmatprep.subr.bf16.mxu0 0
    %2316 = vmatpush1.bf16.msra.mxu0 0
    %2317 = vmatprep.subr.bf16.mxu0 0
    %2318 = vmatpush1.bf16.msra.mxu0 0
    %2319 = vmatprep.subr.bf16.mxu0 0
    %2320 = vmatpush1.bf16.msra.mxu0 0
    %2321 = vmatprep.subr.bf16.mxu0 0
    %2322 = vmatpush1.bf16.msra.mxu0 0
    %2323 = vmatprep.subr.bf16.mxu0 0
    %2324 = vmatpush1.bf16.msra.mxu0 0
    %2325 = vmatprep.subr.bf16.mxu0 0
    %2326 = vmatpush1.bf16.msra.mxu0 0
    %2327 = vmatprep.subr.bf16.mxu0 0
    %2328 = vmatpush1.bf16.msra.mxu0 0
    %2329 = vmatprep.subr.bf16.mxu0 0
    %2330 = vmatpush1.bf16.msra.mxu0 0
    %2331 = vmatprep.mubr.bf16.mxu0 0
    %2332 = vmatmul.mubr.bf16.gmra.mrb[0].mxu0 %v2294
    %v2333 = vpop.f32.mrb[0].mxu0
    %v2334 = vadd.f32 0.0, %v2333
    %v2335 = vpop.f32.mrb[0].mxu0
    %v2336 = vpop.f32.mrb[0].mxu0
    %v2337 = vpop.f32.mrb[0].mxu0
    %2338 = vdwg.mxu0
    %2339 = vrot.lane.b32.xlu0 %v1522, 64
    %v2340 = vpop.permute.xlu0 %2339
    %v2342 = vsel %vm228, %v2002, 0
    %v2345 = vsel %vm712, %v2340, 0
    %2347 = vmatprep.subr.bf16.mxu0 0
    %2348 = vmatpush1.bf16.msra.mxu0 %v2345
    %2349 = vmatprep.subr.bf16.mxu0 0
    %2350 = vmatpush1.bf16.msra.mxu0 0
    %2351 = vmatprep.subr.bf16.mxu0 0
    %2352 = vmatpush1.bf16.msra.mxu0 0
    %2353 = vmatprep.subr.bf16.mxu0 0
    %2354 = vmatpush1.bf16.msra.mxu0 0
    %2355 = vmatprep.subr.bf16.mxu0 0
    %2356 = vmatpush1.bf16.msra.mxu0 0
    %2357 = vmatprep.subr.bf16.mxu0 0
    %2358 = vmatpush1.bf16.msra.mxu0 0
    %2359 = vmatprep.subr.bf16.mxu0 0
    %2360 = vmatpush1.bf16.msra.mxu0 0
    %2361 = vmatprep.subr.bf16.mxu0 0
    %2362 = vmatpush1.bf16.msra.mxu0 0
    %2363 = vmatprep.subr.bf16.mxu0 0
    %2364 = vmatpush1.bf16.msra.mxu0 0
    %2365 = vmatprep.subr.bf16.mxu0 0
    %2366 = vmatpush1.bf16.msra.mxu0 0
    %2367 = vmatprep.subr.bf16.mxu0 0
    %2368 = vmatpush1.bf16.msra.mxu0 0
    %2369 = vmatprep.subr.bf16.mxu0 0
    %2370 = vmatpush1.bf16.msra.mxu0 0
    %2371 = vmatprep.subr.bf16.mxu0 0
    %2372 = vmatpush1.bf16.msra.mxu0 0
    %2373 = vmatprep.subr.bf16.mxu0 0
    %2374 = vmatpush1.bf16.msra.mxu0 0
    %2375 = vmatprep.subr.bf16.mxu0 0
    %2376 = vmatpush1.bf16.msra.mxu0 0
    %2377 = vmatprep.subr.bf16.mxu0 0
    %2378 = vmatpush1.bf16.msra.mxu0 0
    %2379 = vmatprep.mubr.bf16.mxu0 0
    %2380 = vmatmul.mubr.bf16.gmra.mrb[0].mxu0 %v2342
    %v2381 = vpop.f32.mrb[0].mxu0
    %v2382 = vadd.f32 0.0, %v2381
    %v2383 = vpop.f32.mrb[0].mxu0
    %v2384 = vpop.f32.mrb[0].mxu0
    %v2385 = vpop.f32.mrb[0].mxu0
    %2386 = vdwg.mxu0
    %2388 = vrot.lane.b32.xlu0 %v2094, 8
    %v2389 = vpop.permute.xlu0 %2388
    %2392 = vrot.lane.b32.xlu0 %v2142, 16
    %v2393 = vpop.permute.xlu0 %2392
    %2396 = vrot.lane.b32.xlu0 %v2190, 24
    %v2397 = vpop.permute.xlu0 %2396
    %v2399 = vsel %vm228, %v2046, %v2389
    %v2400 = vsel %vm1105, %v2399, %v2393
    %v2401 = vsel %vm1107, %v2400, %v2397
    %2403 = vrot.lane.b32.xlu0 %v2286, 8
    %v2404 = vpop.permute.xlu0 %2403
    %2407 = vrot.lane.b32.xlu0 %v2334, 16
    %v2408 = vpop.permute.xlu0 %2407
    %2411 = vrot.lane.b32.xlu0 %v2382, 24
    %v2412 = vpop.permute.xlu0 %2411
    %v2414 = vsel %vm228, %v2238, %v2404
    %v2415 = vsel %vm1105, %v2414, %v2408
    %v2416 = vsel %vm1107, %v2415, %v2412
    %v2417 = vpack.c.bf16 %v2416, %v2401
    %s2418 = scalar_lea.vmem %s5, 16
    %v2419 = vld [vmem:[%s2418] sm:$0xf]
    %v2420 = vld [vmem:[%s2418 + $0x4] sm:$0xf]
    %v2421 = vld [vmem:[%s2418 + $0x8] sm:$0xf]
    %v2422 = vld [vmem:[%s2418 + $0xc] sm:$0xf]
    %v2423 = vld [vmem:[%s6 + $0x1] sm:$0x1]
    %v2424 = vlaneseq
    %v2425 = vshrl.u32 %v2424, 7
    %v2426 = vsub.s32 0, %v2425
    %v2427 = vrot.slane %v2423, %v2426
    %v2432 = vunpack.c.l.b16 %v2419
    %v2433 = vunpack.c.l.b16 %v2420
    %v2434 = vunpack.c.l.b16 %v2421
    %v2435 = vunpack.c.l.b16 %v2422
    %v2436 = vpack.c.b16 %v2433, %v2432
    %v2437 = vpack.c.b16 %v2435, %v2434
    %v2441 = vsel %vm105, %v2417, 0
    %2443 = vmatprep.subr.bf16.mxu0 0
    %2444 = vmatpush1.bf16.msra.mxu0 %v2436
    %2445 = vmatprep.subr.bf16.mxu0 0
    %2446 = vmatpush1.bf16.msra.mxu0 %v2437
    %2447 = vmatprep.subr.bf16.mxu0 0
    %2448 = vmatpush1.bf16.msra.mxu0 0
    %2449 = vmatprep.subr.bf16.mxu0 0
    %2450 = vmatpush1.bf16.msra.mxu0 0
    %2451 = vmatprep.subr.bf16.mxu0 0
    %2452 = vmatpush1.bf16.msra.mxu0 0
    %2453 = vmatprep.subr.bf16.mxu0 0
    %2454 = vmatpush1.bf16.msra.mxu0 0
    %2455 = vmatprep.subr.bf16.mxu0 0
    %2456 = vmatpush1.bf16.msra.mxu0 0
    %2457 = vmatprep.subr.bf16.mxu0 0
    %2458 = vmatpush1.bf16.msra.mxu0 0
    %2459 = vmatprep.subr.bf16.mxu0 0
    %2460 = vmatpush1.bf16.msra.mxu0 0
    %2461 = vmatprep.subr.bf16.mxu0 0
    %2462 = vmatpush1.bf16.msra.mxu0 0
    %2463 = vmatprep.subr.bf16.mxu0 0
    %2464 = vmatpush1.bf16.msra.mxu0 0
    %2465 = vmatprep.subr.bf16.mxu0 0
    %2466 = vmatpush1.bf16.msra.mxu0 0
    %2467 = vmatprep.subr.bf16.mxu0 0
    %2468 = vmatpush1.bf16.msra.mxu0 0
    %2469 = vmatprep.subr.bf16.mxu0 0
    %2470 = vmatpush1.bf16.msra.mxu0 0
    %2471 = vmatprep.subr.bf16.mxu0 0
    %2472 = vmatpush1.bf16.msra.mxu0 0
    %2473 = vmatprep.subr.bf16.mxu0 0
    %2474 = vmatpush1.bf16.msra.mxu0 0
    %2475 = vmatprep.mubr.bf16.mxu0 0
    %2476 = vmatmul.mubr.bf16.gmra.mrb[0].mxu0 %v2441
    %v2477 = vpop.f32.mrb[0].mxu0
    %v2478 = vadd.f32 %v2427, %v2477
    %v2479 = vpop.f32.mrb[0].mxu0
    %v2480 = vpop.f32.mrb[0].mxu0
    %v2481 = vadd.f32 %v2427, %v2480
    %v2482 = vpop.f32.mrb[0].mxu0
    %2483 = vdwg.mxu0
    %v2484 = vadd.f32 %v2478, %v1399
    %v2485 = vadd.f32 %v2481, %v1400
    %v2486 = vld [vmem:[#allocation5 + $0x1] sm:$0x1]
    %v2487 = vld [vmem:[#allocation7 + $0x1] sm:$0x1]
    %v2488 = vsel %vm105, %v2484, 0.0
    %2489 = vadd.xlane.f32.xlu0 %v2488
    %v2490 = vpop.xlane.xlu0 %2489
    %v2491 = vsel %vm105, %v2485, 0.0
    %2492 = vadd.xlane.f32.xlu0 %v2491
    %v2493 = vpop.xlane.xlu0 %2492
    %v2494 = vmul.f32 %v2490, %v112
    %v2495 = vmul.f32 %v2493, %v112
    %v2496 = vsub.f32 %v2484, %v2494
    %v2497 = vsub.f32 %v2485, %v2495
    %v2498 = vmul.f32 %v2496, %v2496
    %v2499 = vmul.f32 %v2497, %v2497
    %v2500 = vsel %vm105, %v2498, 0.0
    %2501 = vadd.xlane.f32.xlu0 %v2500
    %v2502 = vpop.xlane.xlu0 %2501
    %v2503 = vsel %vm105, %v2499, 0.0
    %2504 = vadd.xlane.f32.xlu0 %v2503
    %v2505 = vpop.xlane.xlu0 %2504
    %v2506 = vmul.f32 %v2502, %v112
    %v2507 = vmul.f32 %v2505, %v112
    %v2508 = vadd.f32 %v2506, 1e-06
    %v2509 = vadd.f32 %v2507, 1e-06
    %v2510 = vrsqrt.pop %v2508
    %v2511 = vrsqrt.pop %v2509
    %v2512 = vmul.f32 %v2496, %v2510
    %v2513 = vmul.f32 %v2497, %v2511
    %v2514 = vlaneseq
    %v2515 = vshrl.u32 %v2514, 7
    %v2516 = vsub.s32 0, %v2515
    %v2517 = vrot.slane %v2486, %v2516
    %v2518 = vmul.f32 %v2512, %v2517
    %v2519 = vmul.f32 %v2513, %v2517
    %v2520 = vlaneseq
    %v2521 = vshrl.u32 %v2520, 7
    %v2522 = vsub.s32 0, %v2521
    %v2523 = vrot.slane %v2487, %v2522
    %v2524 = vadd.f32 %v2518, %v2523
    %v2525 = vadd.f32 %v2519, %v2523
    %v2526 = vpack.c.bf16 %v2525, %v2524
    %s2527 = scalar_lea.vmem %s9, 16
    %v2528 = vld [vmem:[%s2527] sm:$0xf]
    %v2529 = vld [vmem:[%s2527 + $0x4] sm:$0xf]
    %v2530 = vld [vmem:[%s2527 + $0x8] sm:$0xf]
    %v2531 = vld [vmem:[%s2527 + $0xc] sm:$0xf]
    %v2532 = vld [vmem:[#allocation8 + $0x1] sm:$0x1]
    %v2533 = vlaneseq
    %v2534 = vshrl.u32 %v2533, 7
    %v2535 = vsub.s32 0, %v2534
    %v2536 = vrot.slane %v2532, %v2535
    %v2541 = vunpack.c.l.b16 %v2528
    %v2542 = vunpack.c.l.b16 %v2529
    %v2543 = vunpack.c.l.b16 %v2530
    %v2544 = vunpack.c.l.b16 %v2531
    %v2545 = vpack.c.b16 %v2542, %v2541
    %v2546 = vpack.c.b16 %v2544, %v2543
    %v2550 = vsel %vm105, %v2526, 0
    %2552 = vmatprep.subr.bf16.mxu0 0
    %2553 = vmatpush1.bf16.msra.mxu0 %v2545
    %2554 = vmatprep.subr.bf16.mxu0 0
    %2555 = vmatpush1.bf16.msra.mxu0 %v2546
    %2556 = vmatprep.subr.bf16.mxu0 0
    %2557 = vmatpush1.bf16.msra.mxu0 0
    %2558 = vmatprep.subr.bf16.mxu0 0
    %2559 = vmatpush1.bf16.msra.mxu0 0
    %2560 = vmatprep.subr.bf16.mxu0 0
    %2561 = vmatpush1.bf16.msra.mxu0 0
    %2562 = vmatprep.subr.bf16.mxu0 0
    %2563 = vmatpush1.bf16.msra.mxu0 0
    %2564 = vmatprep.subr.bf16.mxu0 0
    %2565 = vmatpush1.bf16.msra.mxu0 0
    %2566 = vmatprep.subr.bf16.mxu0 0
    %2567 = vmatpush1.bf16.msra.mxu0 0
    %2568 = vmatprep.subr.bf16.mxu0 0
    %2569 = vmatpush1.bf16.msra.mxu0 0
    %2570 = vmatprep.subr.bf16.mxu0 0
    %2571 = vmatpush1.bf16.msra.mxu0 0
    %2572 = vmatprep.subr.bf16.mxu0 0
    %2573 = vmatpush1.bf16.msra.mxu0 0
    %2574 = vmatprep.subr.bf16.mxu0 0
    %2575 = vmatpush1.bf16.msra.mxu0 0
    %2576 = vmatprep.subr.bf16.mxu0 0
    %2577 = vmatpush1.bf16.msra.mxu0 0
    %2578 = vmatprep.subr.bf16.mxu0 0
    %2579 = vmatpush1.bf16.msra.mxu0 0
    %2580 = vmatprep.subr.bf16.mxu0 0
    %2581 = vmatpush1.bf16.msra.mxu0 0
    %2582 = vmatprep.subr.bf16.mxu0 0
    %2583 = vmatpush1.bf16.msra.mxu0 0
    %2584 = vmatprep.mubr.bf16.mxu0 0
    %2585 = vmatmul.mubr.bf16.gmra.mrb[0].mxu0 %v2550
    %v2586 = vpop.f32.mrb[0].mxu0
    %v2587 = vadd.f32 %v2536, %v2586
    %v2588 = vpop.f32.mrb[0].mxu0
    %v2589 = vpop.f32.mrb[0].mxu0
    %v2590 = vadd.f32 %v2536, %v2589
    %v2591 = vpop.f32.mrb[0].mxu0
    %2592 = vdwg.mxu0
    %v2593 = vmul.f32 %v2587, 0.5
    %v2594 = vmul.f32 %v2590, 0.5
    %v2595 = vmul.f32 %v2587, 0.044715
    %v2596 = vmul.f32 %v2590, 0.044715
    %v2597 = vmul.f32 %v2595, %v2587
    %v2598 = vmul.f32 %v2596, %v2590
    %v2599 = vmul.f32 %v2597, %v2587
    %v2600 = vmul.f32 %v2598, %v2590
    %v2601 = vadd.f32 %v2587, %v2599
    %v2602 = vadd.f32 %v2590, %v2600
    %v2603 = vmul.f32 %v2601, 0.7978846
    %v2604 = vmul.f32 %v2602, 0.7978846
    %v2605 = vtanh.pop %v2603
    %v2606 = vtanh.pop %v2604
    %v2607 = vadd.f32 %v2605, 1.0
    %v2608 = vadd.f32 %v2606, 1.0
    %v2609 = vmul.f32 %v2593, %v2607
    %v2610 = vmul.f32 %v2594, %v2608
    %v2611 = vpack.c.bf16 %v2610, %v2609
    %s2612 = scalar_lea.vmem %s11, 32
    %v2613 = vld [vmem:[%s2612] sm:$0xf]
    %v2614 = vld [vmem:[%s2612 + $0x4] sm:$0xf]
    %v2615 = vld [vmem:[%s2612 + $0x8] sm:$0xf]
    %v2616 = vld [vmem:[%s2612 + $0xc] sm:$0xf]
    %v2617 = vld [vmem:[%s2612 + $0x10] sm:$0xf]
    %v2618 = vld [vmem:[%s2612 + $0x14] sm:$0xf]
    %v2619 = vld [vmem:[%s2612 + $0x18] sm:$0xf]
    %v2620 = vld [vmem:[%s2612 + $0x1c] sm:$0xf]
    %v2621 = vld [vmem:[%s12 + $0x1] sm:$0x1]
    %v2622 = vlaneseq
    %v2623 = vshrl.u32 %v2622, 7
    %v2624 = vsub.s32 0, %v2623
    %v2625 = vrot.slane %v2621, %v2624
    %v2634 = vunpack.c.l.b16 %v2613
    %v2635 = vunpack.c.l.b16 %v2614
    %v2636 = vunpack.c.l.b16 %v2615
    %v2637 = vunpack.c.l.b16 %v2616
    %v2638 = vunpack.c.l.b16 %v2617
    %v2639 = vunpack.c.l.b16 %v2618
    %v2640 = vunpack.c.l.b16 %v2619
    %v2641 = vunpack.c.l.b16 %v2620
    %v2642 = vpack.c.b16 %v2635, %v2634
    %v2643 = vpack.c.b16 %v2637, %v2636
    %v2644 = vpack.c.b16 %v2639, %v2638
    %v2645 = vpack.c.b16 %v2641, %v2640
    %v2651 = vsel %vm1354, %v2611, 0
    %2653 = vmatprep.subr.bf16.mxu0 0
    %2654 = vmatpush1.bf16.msra.mxu0 %v2642
    %2655 = vmatprep.subr.bf16.mxu0 0
    %2656 = vmatpush1.bf16.msra.mxu0 %v2643
    %2657 = vmatprep.subr.bf16.mxu0 0
    %2658 = vmatpush1.bf16.msra.mxu0 %v2644
    %2659 = vmatprep.subr.bf16.mxu0 0
    %2660 = vmatpush1.bf16.msra.mxu0 %v2645
    %2661 = vmatprep.subr.bf16.mxu0 0
    %2662 = vmatpush1.bf16.msra.mxu0 0
    %2663 = vmatprep.subr.bf16.mxu0 0
    %2664 = vmatpush1.bf16.msra.mxu0 0
    %2665 = vmatprep.subr.bf16.mxu0 0
    %2666 = vmatpush1.bf16.msra.mxu0 0
    %2667 = vmatprep.subr.bf16.mxu0 0
    %2668 = vmatpush1.bf16.msra.mxu0 0
    %2669 = vmatprep.subr.bf16.mxu0 0
    %2670 = vmatpush1.bf16.msra.mxu0 0
    %2671 = vmatprep.subr.bf16.mxu0 0
    %2672 = vmatpush1.bf16.msra.mxu0 0
    %2673 = vmatprep.subr.bf16.mxu0 0
    %2674 = vmatpush1.bf16.msra.mxu0 0
    %2675 = vmatprep.subr.bf16.mxu0 0
    %2676 = vmatpush1.bf16.msra.mxu0 0
    %2677 = vmatprep.subr.bf16.mxu0 0
    %2678 = vmatpush1.bf16.msra.mxu0 0
    %2679 = vmatprep.subr.bf16.mxu0 0
    %2680 = vmatpush1.bf16.msra.mxu0 0
    %2681 = vmatprep.subr.bf16.mxu0 0
    %2682 = vmatpush1.bf16.msra.mxu0 0
    %2683 = vmatprep.subr.bf16.mxu0 0
    %2684 = vmatpush1.bf16.msra.mxu0 0
    %2685 = vmatprep.mubr.bf16.mxu0 0
    %2686 = vmatmul.mubr.bf16.gmra.mrb[0].mxu0 %v2651
    %v2687 = vpop.f32.mrb[0].mxu0
    %v2688 = vadd.f32 %v2625, %v2687
    %v2689 = vpop.f32.mrb[0].mxu0
    %v2690 = vpop.f32.mrb[0].mxu0
    %v2691 = vadd.f32 %v2625, %v2690
    %v2692 = vpop.f32.mrb[0].mxu0
    %2693 = vdwg.mxu0
    %v2694 = vadd.f32 %v2688, %v2484
    %v2695 = vadd.f32 %v2691, %v2485
    %v2696 = vld [vmem:[%s13] sm:$0x1]
    %v2697 = vld [vmem:[%s14] sm:$0x1]
    %v2698 = vsel %vm105, %v2694, 0.0
    %2699 = vadd.xlane.f32.xlu0 %v2698
    %v2700 = vpop.xlane.xlu0 %2699
    %v2701 = vsel %vm105, %v2695, 0.0
    %2702 = vadd.xlane.f32.xlu0 %v2701
    %v2703 = vpop.xlane.xlu0 %2702
    %v2704 = vmul.f32 %v2700, %v112
    %v2705 = vmul.f32 %v2703, %v112
    %v2706 = vsub.f32 %v2694, %v2704
    %v2707 = vsub.f32 %v2695, %v2705
    %v2708 = vmul.f32 %v2706, %v2706
    %v2709 = vmul.f32 %v2707, %v2707
    %v2710 = vsel %vm105, %v2708, 0.0
    %2711 = vadd.xlane.f32.xlu0 %v2710
    %v2712 = vpop.xlane.xlu0 %2711
    %v2713 = vsel %vm105, %v2709, 0.0
    %2714 = vadd.xlane.f32.xlu0 %v2713
    %v2715 = vpop.xlane.xlu0 %2714
    %v2716 = vmul.f32 %v2712, %v112
    %v2717 = vmul.f32 %v2715, %v112
    %v2718 = vadd.f32 %v2716, 1e-06
    %v2719 = vadd.f32 %v2717, 1e-06
    %v2720 = vrsqrt.pop %v2718
    %v2721 = vrsqrt.pop %v2719
    %v2722 = vmul.f32 %v2706, %v2720
    %v2723 = vmul.f32 %v2707, %v2721
    %v2725 = vlaneseq
    %v2726 = vshrl.u32 %v2725, 7
    %v2727 = vsub.s32 0, %v2726
    %v2728 = vrot.slane %v2696, %v2727
    %v2730 = vmul.f32 %v2722, %v2728
    %v2731 = vmul.f32 %v2723, %v2728
    %v2733 = vlaneseq
    %v2734 = vshrl.u32 %v2733, 7
    %v2735 = vsub.s32 0, %v2734
    %v2736 = vrot.slane %v2697, %v2735
    %v2738 = vadd.f32 %v2730, %v2736
    %v2739 = vadd.f32 %v2731, %v2736
    %2740 = vst.msk [vmem:[#allocation10] sm:$0xff] %vm105, %v2738
    %2741 = vst.msk [vmem:[#allocation10 + $0x8] sm:$0xff] %vm105, %v2739
    // Predicated region
    $region78: #{tpu_custom_call.1} parent=1 // pred_check
      _
    $region79: #{tpu_custom_call.1} parent=1 // pred_check_branch
      %2743 = sbr.rel (0) target = $region81
    $region80: #{tpu_custom_call.1} parent=1 // pred_region
      %s2745 = ssub.s32 256, 256
      %2746 = vsyncadd [#allocation4], %s2745
      %s2747 = sshll.u32 [#allocation10], 4
      %s2748 = int_to_ptr.vmem [resolvable:$true] %s2747
      %2753 = dma.vmem_to_hbm [thread:$0]  %s2748, 256, %s15, [#allocation4], 128, 128, 8
    $region81: #{tpu_custom_call.1} parent=1 // pred_fallthru
      _
    // Predicated region
    $region82: #{tpu_custom_call.1} parent=1 // pred_check
      _
    $region83: #{tpu_custom_call.1} parent=1 // pred_check_branch
      %2755 = sbr.rel (0) target = $region85
    $region84: #{tpu_custom_call.1} parent=1 // pred_region
      %2756 = dma.done [#allocation4], 256
    $region85: #{tpu_custom_call.1} parent=1 // pred_fallthru
      _
    %2757 = vsyncpa [#allocation3], 1
    %2758 = vsyncpa [#allocation6], 1
    %2759 = vsyncpa [#allocation9], 1
    %2760 = vsyncpa [#allocation4], 1

</llo_original>
